<compile_context>
chip_gen: v5e
topology: v5e:2x2
jax: 0.10.0
libtpu: 0.0.40
codegen_flags: <defaults>
</compile_context>

<pallas_src>
import functools

import jax
import jax.numpy as jnp
from jax.experimental import pallas as pl
from jax.experimental.pallas import tpu as pltpu

LANE = 128  # output channels padded to one full lane tile


def _ru(x, m):
    return (x + m - 1) // m * m


def _slab_dims(H, W):
    """Geometry of the padded-plane slab format for an (H, W) plane.

    Original (h, w) lives at slab row BASE + h*Wp + w; every other row is zero.
    """
    Wp = W + 4
    PAD = 2 * Wp + 2                 # halo rows a 5x5 in-plane stencil reaches on each side
    BASE = _ru(PAD, 16)              # 16-aligned -> the kernel's output store is aligned
    P = _ru((H - 1) * Wp + W, 8)     # accumulator rows (covers every valid (h, w))
    S = _ru(BASE + P + PAD, 16)      # total rows per plane
    return Wp, PAD, BASE, P, S


def _vmem_budget(S, C_store, P, K):
    in_blk = S * C_store * 2
    out_blk = S * LANE * 2
    acc = P * LANE * 4
    wts = 5 * K * LANE * 2
    lhs = P * K * 2
    need = 2 * in_blk + 2 * out_blk + acc + wts + 3 * lhs + P * LANE * 4 + (2 << 20)
    # TODO(synk): on v7x (64 MiB VMEM) switch to row-block M tiles once H*W grows.
    return int(min(max(need, 32 << 20), 100 << 20))


# ------------- Pallas kernel: tap-fused shifted-matmul 3D conv + bias + ReLU -------------
def _make_conv_kernel(*, Cin, Wp, BASE, PAD, P, D_in, chunk):
    n_chunks = 25 // chunk

    def kernel(x_ref, w_ref, b_ref, m_ref, o_ref, acc_ref):
        # x_ref  : [S_in, C_store] bf16   input slab plane at clamped depth z+kd-2
        # w_ref  : [5, 25*Cin, 128] bf16  all kd weight slices (resident)
        # b_ref  : [1, 128]  f32          bias (resident)
        # m_ref  : [P, 1]    f32          row-validity mask (resident)
        # o_ref  : [S_out, 128] bf16      output slab plane (halo/invalid rows zeroed)
        # acc_ref: [P, 128]  f32          accumulator across the kd grid axis
        z = pl.program_id(1)
        kd = pl.program_id(2)

        @pl.when(kd == 0)
        def _init():
            acc_ref[...] = jnp.zeros_like(acc_ref)

        zin = z + kd - 2  # true input depth for this tap; clamped plane is skipped below

        @pl.when(jnp.logical_and(zin >= 0, zin < D_in))
        def _accumulate():
            xc = x_ref[...][:, :Cin]          # [S_in, Cin] bf16 (shift the narrow LHS)
            wk = w_ref[kd]                    # [25*Cin, 128] bf16, dynamic kd index
            contrib = None
            for g in range(n_chunks):         # static unroll; chunk taps fused per dot
                cols = []
                for j in range(chunk):
                    t = g * chunk + j
                    kh, kw = divmod(t, 5)
                    off = BASE - PAD + kh * Wp + kw   # static, always >= 0
                    cols.append(xc[off:off + P, :])
                lhs = cols[0] if chunk == 1 else jnp.concatenate(cols, axis=-1)
                y = jnp.dot(lhs, wk[g * chunk * Cin:(g + 1) * chunk * Cin, :],
                            preferred_element_type=jnp.float32)   # [P, 128] f32
                contrib = y if contrib is None else contrib + y
            acc_ref[...] += contrib            # single accumulator RMW per kd

        @pl.when(kd == pl.num_programs(2) - 1)
        def _finalize():
            val = jnp.maximum(acc_ref[...] + b_ref[...], 0.0) * m_ref[...]
            o_ref[...] = jnp.zeros_like(o_ref)                 # zero halo/invalid rows
            o_ref[BASE:BASE + P, :] = val.astype(o_ref.dtype)  # 16-row-aligned store

    return kernel


def conv3d_relu_slab(x_slab, weight, bias, *, H, W):
    """Conv3d(kernel=5, stride=1, padding=2) + ReLU on a slab-format input.

    x_slab : [N, D, S, C_store] bf16 slab format for (H, W); lanes >= Cin are zero.
    weight : [Cout, Cin, 5, 5, 5] (PyTorch layout);  bias : [Cout]
    returns: [N, D, S, LANE] bf16 slab-format output (valid lanes :Cout, rest zero).
    """
    N, D, S, C_store = x_slab.shape
    Cout, Cin = weight.shape[0], weight.shape[1]
    assert Cout <= LANE and Cin <= C_store
    Wp, PAD, BASE, P, S_chk = _slab_dims(H, W)
    assert S == S_chk

    # Fuse all 25 (kh,kw) taps into the contraction dim for small Cin, else per-kh.
    chunk = 25 if 25 * Cin <= 512 else 5
    K = 25 * Cin

    # Weights -> [kd, (kh,kw,ci), LANE] bf16 ; bias -> [1, LANE] f32 ; row mask -> [P, 1] f32.
    wt = jnp.transpose(weight, (2, 3, 4, 1, 0)).reshape(5, K, Cout)
    wt = jnp.pad(wt, ((0, 0), (0, 0), (0, LANE - Cout))).astype(jnp.bfloat16)
    b2 = jnp.pad(bias.reshape(1, Cout), ((0, 0), (0, LANE - Cout))).astype(jnp.float32)
    rows = jnp.arange(P, dtype=jnp.int32)
    mask = ((rows % Wp < W) & (rows // Wp < H)).astype(jnp.float32).reshape(P, 1)

    out = pl.pallas_call(
        _make_conv_kernel(Cin=Cin, Wp=Wp, BASE=BASE, PAD=PAD, P=P, D_in=D, chunk=chunk),
        out_shape=jax.ShapeDtypeStruct((N, D, S, LANE), jnp.bfloat16),
        grid_spec=pltpu.PrefetchScalarGridSpec(
            num_scalar_prefetch=0,
            grid=(N, D, 5),                                  # kd = reduction axis (last)
            in_specs=[
                # input plane at depth clamp(z+kd-2); out-of-range contribution skipped in-kernel
                pl.BlockSpec((None, None, S, C_store),
                             lambda n, z, kd: (n, jnp.minimum(jnp.maximum(z + kd - 2, 0),
                                                              D - 1), 0, 0)),
                # all 5 kd weight slices, constant map -> resident
                pl.BlockSpec((5, K, LANE), lambda n, z, kd: (0, 0, 0)),
                # bias, resident
                pl.BlockSpec((1, LANE), lambda n, z, kd: (0, 0)),
                # row-validity mask, resident
                pl.BlockSpec((P, 1), lambda n, z, kd: (0, 0)),
            ],
            out_specs=pl.BlockSpec((None, None, S, LANE), lambda n, z, kd: (n, z, 0, 0)),
            scratch_shapes=[pltpu.VMEM((P, LANE), jnp.float32)],
        ),
        compiler_params=pltpu.CompilerParams(
            dimension_semantics=("parallel", "parallel", "arbitrary"),
            vmem_limit_bytes=_vmem_budget(S, C_store, P, K),
        ),
    )(x_slab, wt, b2, mask)
    return out


# ---------------- slab-format conversion + upsample (XLA glue at block boundaries) ----------------
def build_slab(x_cl, *, H, W):
    """[N, D, H, W, C] -> [N, D, S, C] bf16 slab format (original (h,w) at BASE + h*Wp + w)."""
    N, D, Hx, Wx, C = x_cl.shape
    assert (Hx, Wx) == (H, W)
    Wp, PAD, BASE, P, S = _slab_dims(H, W)
    xp = jnp.pad(x_cl, ((0, 0), (0, 0), (0, 0), (0, Wp - W), (0, 0)))
    flat = xp.reshape(N, D, H * Wp, C)
    slab = jnp.pad(flat, ((0, 0), (0, 0), (BASE, S - BASE - H * Wp), (0, 0)))
    return slab.astype(jnp.bfloat16)


def slab_to_dense(slab, *, H, W, C):
    """[N, D, S, C_store] slab -> [N, D, H, W, C] bf16."""
    N, D, S, _ = slab.shape
    Wp, PAD, BASE, P, S_chk = _slab_dims(H, W)
    assert S == S_chk
    core = slab[:, :, BASE:BASE + H * Wp, :C]
    return core.reshape(N, D, H, Wp, C)[:, :, :, :W, :]


def upsample2x_nearest_cl(x):
    """nn.Upsample(scale_factor=2, mode='nearest') on a channels-last 5-D tensor."""
    N, D, H, W, C = x.shape
    y = jnp.broadcast_to(x[:, :, None, :, None, :, None, :],
                         (N, D, 2, H, 2, W, 2, C))
    return y.reshape(N, 2 * D, 2 * H, 2 * W, C)


def upsample_forward(params, x1, x2):
    (w1, b1), (w2, b2), (w3, b3), (w4, b4) = params
    N, _, D, H, W = x1.shape
    inter = w1.shape[0]
    cout = w4.shape[0]

    # NCDHW -> NDHWC once at the module boundary; channels-last slabs inside.
    x1_cl = jnp.transpose(x1, (0, 2, 3, 4, 1))
    x2_cl = jnp.transpose(x2, (0, 2, 3, 4, 1)).astype(jnp.bfloat16)

    # self.up = ConvBlock(in_ch, inter_ch): two convs chained through the slab format.
    s = build_slab(x1_cl, H=H, W=W)
    s = conv3d_relu_slab(s, w1, b1, H=H, W=W)
    s = conv3d_relu_slab(s, w2, b2, H=H, W=W)

    # nn.Upsample(scale_factor=2) + channel concat.
    # TODO(synk): fuse the //2 nearest-upsample indexing and the channel concat directly
    #             into conv3's in-kernel slab gather instead of materializing them here.
    h = slab_to_dense(s, H=H, W=W, C=inter)
    h = upsample2x_nearest_cl(h)
    cat = jnp.concatenate([h, x2_cl], axis=-1)
    D2, H2, W2 = 2 * D, 2 * H, 2 * W

    # self.conv = ConvBlock(2*inter_ch, out_ch): two convs chained through the slab format.
    s = build_slab(cat, H=H2, W=W2)
    s = conv3d_relu_slab(s, w3, b3, H=H2, W=W2)
    s = conv3d_relu_slab(s, w4, b4, H=H2, W=W2)

    out = slab_to_dense(s, H=H2, W=W2, C=cout)
    # back to NCDHW f32 only at the boundary
    return jnp.transpose(out, (0, 4, 1, 2, 3)).astype(jnp.float32)


# ---------------- deterministic parameter init (PyTorch-style bounds) ----------------
def init_conv_params(key, cin, cout, k=5):
    kw, kb = jax.random.split(key)
    fan_in = cin * k * k * k
    bound = 1.0 / (fan_in ** 0.5)
    w = jax.random.uniform(kw, (cout, cin, k, k, k), jnp.float32, -bound, bound)
    b = jax.random.uniform(kb, (cout,), jnp.float32, -bound, bound)
    return w, b


# ---------------- pure-JAX reference for verification ----------------
def conv3d_relu_ref(x, w, b):
    out = jax.lax.conv_general_dilated(
        x, w, window_strides=(1, 1, 1), padding=[(2, 2)] * 3,
        dimension_numbers=("NCDHW", "OIDHW", "NCDHW"))
    out = out + b.reshape(1, -1, 1, 1, 1)
    return jnp.maximum(out, 0.0)


def upsample2x_nearest_ref(x):
    x = jnp.repeat(x, 2, axis=2)
    x = jnp.repeat(x, 2, axis=3)
    x = jnp.repeat(x, 2, axis=4)
    return x


def upsample_forward_ref(params, x1, x2):
    (w1, b1), (w2, b2), (w3, b3), (w4, b4) = params
    h = conv3d_relu_ref(x1, w1, b1)
    h = conv3d_relu_ref(h, w2, b2)
    h = upsample2x_nearest_ref(h)
    out = jnp.concatenate([h, x2], axis=1)
    out = conv3d_relu_ref(out, w3, b3)
    return conv3d_relu_ref(out, w4, b4)


if __name__ == "__main__":
    key = jax.random.PRNGKey(0)
    k1, k2, k3, k4, kx1, kx2 = jax.random.split(key, 6)

    in_ch, inter_ch, out_ch = 4, 4, 4
    N, S = 2, 4  # x1 spatial = 4, x2 spatial = 8 (matches upsampled x1)

    params = (
        init_conv_params(k1, in_ch, inter_ch),        # ConvBlock.up conv1
        init_conv_params(k2, inter_ch, inter_ch),     # ConvBlock.up conv2
        init_conv_params(k3, 2 * inter_ch, out_ch),   # ConvBlock.conv conv1
        init_conv_params(k4, out_ch, out_ch),         # ConvBlock.conv conv2
    )

    x1 = jax.random.uniform(kx1, (N, in_ch, S, S, S), jnp.float32, -0.5, 0.5)
    x2 = jax.random.uniform(kx2, (N, inter_ch, 2 * S, 2 * S, 2 * S),
                            jnp.float32, -0.5, 0.5)

    fwd = jax.jit(functools.partial(upsample_forward, params))
    out = jax.block_until_ready(fwd(x1, x2))

    assert out.shape == (N, out_ch, 2 * S, 2 * S, 2 * S), out.shape
    assert out.dtype == jnp.float32

    ref = jax.block_until_ready(upsample_forward_ref(params, x1, x2))
    # bf16-streamed / f32-accumulated path vs. all-f32 XLA reference
    assert bool(jnp.allclose(out, ref, atol=2e-2, rtol=2e-2)), "mismatch vs reference"

    print("KERNEL_OK")
</pallas_src>

<mosaic_0001>
module attributes {stable_mosaic.version = 11 : i64} {
  func.func @kernel(%arg0: i32, %arg1: i32, %arg2: i32, %arg3: memref<1x1x96x4xbf16, #tpu.memory_space<vmem>>, %arg4: memref<5x100x128xbf16, #tpu.memory_space<vmem>>, %arg5: memref<1x128xf32, #tpu.memory_space<vmem>>, %arg6: memref<32x1xf32, #tpu.memory_space<vmem>>, %arg7: memref<1x1x96x128xbf16, #tpu.memory_space<vmem>>, %arg8: memref<32x128xf32, #tpu.memory_space<vmem>>) attributes {dimension_semantics = [#tpu.dimension_semantics<parallel>, #tpu.dimension_semantics<parallel>, #tpu.dimension_semantics<arbitrary>], iteration_bounds = array<i64: 2, 4, 5>, scalar_prefetch = 0 : i64, scratch_operands = 1 : i64, tpu.core_type = #tpu.core_type<tc>, window_params = [{transform_indices = @transform_0, window_bounds = array<i64: 1, 1, 96, 4>}, {pipeline_mode = #tpu.pipeline_mode<synchronous>, transform_indices = @transform_1, window_bounds = array<i64: 5, 100, 128>}, {pipeline_mode = #tpu.pipeline_mode<synchronous>, transform_indices = @transform_2, window_bounds = array<i64: 1, 128>}, {pipeline_mode = #tpu.pipeline_mode<synchronous>, transform_indices = @transform_3, window_bounds = array<i64: 32, 1>}, {transform_indices = @transform_4, window_bounds = array<i64: 1, 1, 96, 128>}]} {
    %c0_i32 = arith.constant 0 : i32
    %0 = arith.cmpi eq, %arg2, %c0_i32 : i32
    %1 = arith.extui %0 : i1 to i32
    %c0_i32_0 = arith.constant 0 : i32
    %2 = arith.cmpi ne, %1, %c0_i32_0 : i32
    scf.if %2 {
      %cst = arith.constant 0.000000e+00 : f32
      %13 = vector.broadcast %cst : f32 to vector<32x128xf32>
      %c0 = arith.constant 0 : index
      %c0_5 = arith.constant 0 : index
      %14 = vector.load %arg8[%c0, %c0_5] : memref<32x128xf32, #tpu.memory_space<vmem>>, vector<32x128xf32>
      tpu.vector_store %arg8[%c0, %c0_5], %13 {strides = array<i32>} : memref<32x128xf32, #tpu.memory_space<vmem>>, vector<32x128xf32>,
    } else {
    }
    %3 = arith.addi %arg1, %arg2 : i32
    %c2_i32 = arith.constant 2 : i32
    %4 = arith.subi %3, %c2_i32 : i32
    %c0_i32_1 = arith.constant 0 : i32
    %5 = arith.cmpi sge, %4, %c0_i32_1 : i32
    %c4_i32 = arith.constant 4 : i32
    %6 = arith.cmpi slt, %4, %c4_i32 : i32
    %7 = arith.andi %5, %6 : i1
    %8 = arith.extui %7 : i1 to i32
    %c0_i32_2 = arith.constant 0 : i32
    %9 = arith.cmpi ne, %8, %c0_i32_2 : i32
    scf.if %9 {
      %c0 = arith.constant 0 : index
      %c0_5 = arith.constant 0 : index
      %c0_6 = arith.constant 0 : index
      %c0_7 = arith.constant 0 : index
      %13 = vector.load %arg3[%c0, %c0_5, %c0_6, %c0_7] : memref<1x1x96x4xbf16, #tpu.memory_space<vmem>>, vector<1x1x96x4xbf16>
      %14 = vector.shape_cast %13 : vector<1x1x96x4xbf16> to vector<96x4xbf16>
      %15 = arith.index_cast %arg2 : i32 to index
      %c0_8 = arith.constant 0 : index
      %c0_9 = arith.constant 0 : index
      %16 = vector.load %arg4[%15, %c0_8, %c0_9] : memref<5x100x128xbf16, #tpu.memory_space<vmem>>, vector<1x100x128xbf16>
      %17 = vector.shape_cast %16 : vector<1x100x128xbf16> to vector<100x128xbf16>
      %18 = vector.extract_strided_slice %14 {offsets = [14, 0], sizes = [32, 4], strides = [1, 1]} : vector<96x4xbf16> to vector<32x4xbf16>
      %19 = vector.extract_strided_slice %14 {offsets = [15, 0], sizes = [32, 4], strides = [1, 1]} : vector<96x4xbf16> to vector<32x4xbf16>
      %20 = vector.extract_strided_slice %14 {offsets = [16, 0], sizes = [32, 4], strides = [1, 1]} : vector<96x4xbf16> to vector<32x4xbf16>
      %21 = vector.extract_strided_slice %14 {offsets = [17, 0], sizes = [32, 4], strides = [1, 1]} : vector<96x4xbf16> to vector<32x4xbf16>
      %22 = vector.extract_strided_slice %14 {offsets = [18, 0], sizes = [32, 4], strides = [1, 1]} : vector<96x4xbf16> to vector<32x4xbf16>
      %23 = vector.extract_strided_slice %14 {offsets = [22, 0], sizes = [32, 4], strides = [1, 1]} : vector<96x4xbf16> to vector<32x4xbf16>
      %24 = vector.extract_strided_slice %14 {offsets = [23, 0], sizes = [32, 4], strides = [1, 1]} : vector<96x4xbf16> to vector<32x4xbf16>
      %25 = vector.extract_strided_slice %14 {offsets = [24, 0], sizes = [32, 4], strides = [1, 1]} : vector<96x4xbf16> to vector<32x4xbf16>
      %26 = vector.extract_strided_slice %14 {offsets = [25, 0], sizes = [32, 4], strides = [1, 1]} : vector<96x4xbf16> to vector<32x4xbf16>
      %27 = vector.extract_strided_slice %14 {offsets = [26, 0], sizes = [32, 4], strides = [1, 1]} : vector<96x4xbf16> to vector<32x4xbf16>
      %28 = vector.extract_strided_slice %14 {offsets = [30, 0], sizes = [32, 4], strides = [1, 1]} : vector<96x4xbf16> to vector<32x4xbf16>
      %29 = vector.extract_strided_slice %14 {offsets = [31, 0], sizes = [32, 4], strides = [1, 1]} : vector<96x4xbf16> to vector<32x4xbf16>
      %30 = vector.extract_strided_slice %14 {offsets = [32, 0], sizes = [32, 4], strides = [1, 1]} : vector<96x4xbf16> to vector<32x4xbf16>
      %31 = vector.extract_strided_slice %14 {offsets = [33, 0], sizes = [32, 4], strides = [1, 1]} : vector<96x4xbf16> to vector<32x4xbf16>
      %32 = vector.extract_strided_slice %14 {offsets = [34, 0], sizes = [32, 4], strides = [1, 1]} : vector<96x4xbf16> to vector<32x4xbf16>
      %33 = vector.extract_strided_slice %14 {offsets = [38, 0], sizes = [32, 4], strides = [1, 1]} : vector<96x4xbf16> to vector<32x4xbf16>
      %34 = vector.extract_strided_slice %14 {offsets = [39, 0], sizes = [32, 4], strides = [1, 1]} : vector<96x4xbf16> to vector<32x4xbf16>
      %35 = vector.extract_strided_slice %14 {offsets = [40, 0], sizes = [32, 4], strides = [1, 1]} : vector<96x4xbf16> to vector<32x4xbf16>
      %36 = vector.extract_strided_slice %14 {offsets = [41, 0], sizes = [32, 4], strides = [1, 1]} : vector<96x4xbf16> to vector<32x4xbf16>
      %37 = vector.extract_strided_slice %14 {offsets = [42, 0], sizes = [32, 4], strides = [1, 1]} : vector<96x4xbf16> to vector<32x4xbf16>
      %38 = vector.extract_strided_slice %14 {offsets = [46, 0], sizes = [32, 4], strides = [1, 1]} : vector<96x4xbf16> to vector<32x4xbf16>
      %39 = vector.extract_strided_slice %14 {offsets = [47, 0], sizes = [32, 4], strides = [1, 1]} : vector<96x4xbf16> to vector<32x4xbf16>
      %40 = vector.extract_strided_slice %14 {offsets = [48, 0], sizes = [32, 4], strides = [1, 1]} : vector<96x4xbf16> to vector<32x4xbf16>
      %41 = vector.extract_strided_slice %14 {offsets = [49, 0], sizes = [32, 4], strides = [1, 1]} : vector<96x4xbf16> to vector<32x4xbf16>
      %42 = vector.extract_strided_slice %14 {offsets = [50, 0], sizes = [32, 4], strides = [1, 1]} : vector<96x4xbf16> to vector<32x4xbf16>
      %43 = tpu.concatenate %18, %19, %20, %21, %22, %23, %24, %25, %26, %27, %28, %29, %30, %31, %32, %33 in 1 : vector<32x4xbf16>, vector<32x4xbf16>, vector<32x4xbf16>, vector<32x4xbf16>, vector<32x4xbf16>, vector<32x4xbf16>, vector<32x4xbf16>, vector<32x4xbf16>, vector<32x4xbf16>, vector<32x4xbf16>, vector<32x4xbf16>, vector<32x4xbf16>, vector<32x4xbf16>, vector<32x4xbf16>, vector<32x4xbf16>, vector<32x4xbf16> -> vector<32x64xbf16>
      %44 = tpu.concatenate %34, %35, %36, %37, %38, %39, %40, %41, %42 in 1 : vector<32x4xbf16>, vector<32x4xbf16>, vector<32x4xbf16>, vector<32x4xbf16>, vector<32x4xbf16>, vector<32x4xbf16>, vector<32x4xbf16>, vector<32x4xbf16>, vector<32x4xbf16> -> vector<32x36xbf16>
      %45 = tpu.concatenate %43, %44 in 1 : vector<32x64xbf16>, vector<32x36xbf16> -> vector<32x100xbf16>
      %cst = arith.constant dense<0.000000e+00> : vector<32x128xf32>
      %46 = tpu.matmul %45, %17, %cst {dimension_numbers = #tpu.dot_dimension_numbers<[1], [0], [0], [1], [0, 0, 1, 1], [], []>} : vector<32x100xbf16>, vector<100x128xbf16>, vector<32x128xf32> -> vector<32x128xf32>
      %c0_10 = arith.constant 0 : index
      %c0_11 = arith.constant 0 : index
      %47 = vector.load %arg8[%c0_10, %c0_11] : memref<32x128xf32, #tpu.memory_space<vmem>>, vector<32x128xf32>
      %48 = arith.addf %47, %46 : vector<32x128xf32>
      %c0_12 = arith.constant 0 : index
      %c0_13 = arith.constant 0 : index
      %49 = vector.load %arg8[%c0_12, %c0_13] : memref<32x128xf32, #tpu.memory_space<vmem>>, vector<32x128xf32>
      tpu.vector_store %arg8[%c0_12, %c0_13], %48 {strides = array<i32>} : memref<32x128xf32, #tpu.memory_space<vmem>>, vector<32x128xf32>,
    } else {
    }
    %c4_i32_3 = arith.constant 4 : i32
    %10 = arith.cmpi eq, %arg2, %c4_i32_3 : i32
    %11 = arith.extui %10 : i1 to i32
    %c0_i32_4 = arith.constant 0 : i32
    %12 = arith.cmpi ne, %11, %c0_i32_4 : i32
    scf.if %12 {
      %c0 = arith.constant 0 : index
      %c0_5 = arith.constant 0 : index
      %13 = vector.load %arg8[%c0, %c0_5] : memref<32x128xf32, #tpu.memory_space<vmem>>, vector<32x128xf32>
      %c0_6 = arith.constant 0 : index
      %c0_7 = arith.constant 0 : index
      %14 = vector.load %arg5[%c0_6, %c0_7] : memref<1x128xf32, #tpu.memory_space<vmem>>, vector<1x128xf32>
      %15 = vector.broadcast %14 : vector<1x128xf32> to vector<32x128xf32>
      %16 = arith.addf %13, %15 : vector<32x128xf32>
      %cst = arith.constant 0.000000e+00 : f32
      %17 = vector.broadcast %cst : f32 to vector<32x128xf32>
      %18 = arith.maximumf %16, %17 : vector<32x128xf32>
      %c0_8 = arith.constant 0 : index
      %c0_9 = arith.constant 0 : index
      %19 = vector.load %arg6[%c0_8, %c0_9] : memref<32x1xf32, #tpu.memory_space<vmem>>, vector<32x1xf32>
      %20 = vector.broadcast %19 : vector<32x1xf32> to vector<32x128xf32>
      %21 = arith.mulf %18, %20 : vector<32x128xf32>
      %cst_10 = arith.constant 0.000000e+00 : bf16
      %22 = vector.broadcast %cst_10 : bf16 to vector<96x128xbf16>
      %c0_11 = arith.constant 0 : index
      %c0_12 = arith.constant 0 : index
      %c0_13 = arith.constant 0 : index
      %c0_14 = arith.constant 0 : index
      %23 = vector.load %arg7[%c0_11, %c0_12, %c0_13, %c0_14] : memref<1x1x96x128xbf16, #tpu.memory_space<vmem>>, vector<1x1x96x128xbf16>
      %24 = vector.shape_cast %23 : vector<1x1x96x128xbf16> to vector<96x128xbf16>
      %25 = vector.shape_cast %22 : vector<96x128xbf16> to vector<1x1x96x128xbf16>
      tpu.vector_store %arg7[%c0_11, %c0_12, %c0_13, %c0_14], %25 {strides = array<i32>} : memref<1x1x96x128xbf16, #tpu.memory_space<vmem>>, vector<1x1x96x128xbf16>,
      %26 = arith.truncf %21 : vector<32x128xf32> to vector<32x128xbf16>
      %c0_15 = arith.constant 0 : index
      %c0_16 = arith.constant 0 : index
      %c32 = arith.constant 32 : index
      %c0_17 = arith.constant 0 : index
      %27 = vector.load %arg7[%c0_15, %c0_16, %c32, %c0_17] : memref<1x1x96x128xbf16, #tpu.memory_space<vmem>>, vector<1x1x32x128xbf16>
      %28 = vector.shape_cast %27 : vector<1x1x32x128xbf16> to vector<32x128xbf16>
      %29 = vector.shape_cast %26 : vector<32x128xbf16> to vector<1x1x32x128xbf16>
      tpu.vector_store %arg7[%c0_15, %c0_16, %c32, %c0_17], %29 {strides = array<i32>} : memref<1x1x96x128xbf16, #tpu.memory_space<vmem>>, vector<1x1x32x128xbf16>,
    } else {
    }
    return
  }
  func.func @transform_0(%arg0: i32, %arg1: i32, %arg2: i32) -> (i32, i32, i32, i32) {
    %0 = arith.addi %arg1, %arg2 : i32
    %c2_i32 = arith.constant 2 : i32
    %1 = arith.subi %0, %c2_i32 : i32
    %c0_i32 = arith.constant 0 : i32
    %2 = arith.maxsi %1, %c0_i32 : i32
    %c3_i32 = arith.constant 3 : i32
    %3 = arith.minsi %2, %c3_i32 : i32
    %c0_i32_0 = arith.constant 0 : i32
    %c0_i32_1 = arith.constant 0 : i32
    %c0_i32_2 = arith.constant 0 : i32
    return %arg0, %3, %c0_i32_0, %c0_i32_1 : i32, i32, i32, i32
  }
  func.func @transform_1(%arg0: i32, %arg1: i32, %arg2: i32) -> (i32, i32, i32) {
    %c0_i32 = arith.constant 0 : i32
    %c0_i32_0 = arith.constant 0 : i32
    %c0_i32_1 = arith.constant 0 : i32
    %c0_i32_2 = arith.constant 0 : i32
    return %c0_i32, %c0_i32_0, %c0_i32_1 : i32, i32, i32
  }
  func.func @transform_2(%arg0: i32, %arg1: i32, %arg2: i32) -> (i32, i32) {
    %c0_i32 = arith.constant 0 : i32
    %c0_i32_0 = arith.constant 0 : i32
    %c0_i32_1 = arith.constant 0 : i32
    return %c0_i32, %c0_i32_0 : i32, i32
  }
  func.func @transform_3(%arg0: i32, %arg1: i32, %arg2: i32) -> (i32, i32) {
    %c0_i32 = arith.constant 0 : i32
    %c0_i32_0 = arith.constant 0 : i32
    %c0_i32_1 = arith.constant 0 : i32
    return %c0_i32, %c0_i32_0 : i32, i32
  }
  func.func @transform_4(%arg0: i32, %arg1: i32, %arg2: i32) -> (i32, i32, i32, i32) {
    %c0_i32 = arith.constant 0 : i32
    %c0_i32_0 = arith.constant 0 : i32
    %c0_i32_1 = arith.constant 0 : i32
    return %arg0, %arg1, %c0_i32, %c0_i32_0 : i32, i32, i32, i32
  }
}

module attributes {stable_mosaic.version = 11 : i64} {
  func.func @kernel(%arg0: i32, %arg1: i32, %arg2: i32, %arg3: memref<1x1x96x128xbf16, #tpu.memory_space<vmem>>, %arg4: memref<5x100x128xbf16, #tpu.memory_space<vmem>>, %arg5: memref<1x128xf32, #tpu.memory_space<vmem>>, %arg6: memref<32x1xf32, #tpu.memory_space<vmem>>, %arg7: memref<1x1x96x128xbf16, #tpu.memory_space<vmem>>, %arg8: memref<32x128xf32, #tpu.memory_space<vmem>>) attributes {dimension_semantics = [#tpu.dimension_semantics<parallel>, #tpu.dimension_semantics<parallel>, #tpu.dimension_semantics<arbitrary>], iteration_bounds = array<i64: 2, 4, 5>, scalar_prefetch = 0 : i64, scratch_operands = 1 : i64, tpu.core_type = #tpu.core_type<tc>, window_params = [{transform_indices = @transform_0, window_bounds = array<i64: 1, 1, 96, 128>}, {pipeline_mode = #tpu.pipeline_mode<synchronous>, transform_indices = @transform_1, window_bounds = array<i64: 5, 100, 128>}, {pipeline_mode = #tpu.pipeline_mode<synchronous>, transform_indices = @transform_2, window_bounds = array<i64: 1, 128>}, {pipeline_mode = #tpu.pipeline_mode<synchronous>, transform_indices = @transform_3, window_bounds = array<i64: 32, 1>}, {transform_indices = @transform_4, window_bounds = array<i64: 1, 1, 96, 128>}]} {
    %c0_i32 = arith.constant 0 : i32
    %0 = arith.cmpi eq, %arg2, %c0_i32 : i32
    %1 = arith.extui %0 : i1 to i32
    %c0_i32_0 = arith.constant 0 : i32
    %2 = arith.cmpi ne, %1, %c0_i32_0 : i32
    scf.if %2 {
      %cst = arith.constant 0.000000e+00 : f32
      %13 = vector.broadcast %cst : f32 to vector<32x128xf32>
      %c0 = arith.constant 0 : index
      %c0_5 = arith.constant 0 : index
      %14 = vector.load %arg8[%c0, %c0_5] : memref<32x128xf32, #tpu.memory_space<vmem>>, vector<32x128xf32>
      tpu.vector_store %arg8[%c0, %c0_5], %13 {strides = array<i32>} : memref<32x128xf32, #tpu.memory_space<vmem>>, vector<32x128xf32>,
    } else {
    }
    %3 = arith.addi %arg1, %arg2 : i32
    %c2_i32 = arith.constant 2 : i32
    %4 = arith.subi %3, %c2_i32 : i32
    %c0_i32_1 = arith.constant 0 : i32
    %5 = arith.cmpi sge, %4, %c0_i32_1 : i32
    %c4_i32 = arith.constant 4 : i32
    %6 = arith.cmpi slt, %4, %c4_i32 : i32
    %7 = arith.andi %5, %6 : i1
    %8 = arith.extui %7 : i1 to i32
    %c0_i32_2 = arith.constant 0 : i32
    %9 = arith.cmpi ne, %8, %c0_i32_2 : i32
    scf.if %9 {
      %c0 = arith.constant 0 : index
      %c0_5 = arith.constant 0 : index
      %c0_6 = arith.constant 0 : index
      %c0_7 = arith.constant 0 : index
      %13 = vector.load %arg3[%c0, %c0_5, %c0_6, %c0_7] : memref<1x1x96x128xbf16, #tpu.memory_space<vmem>>, vector<1x1x96x128xbf16>
      %14 = vector.shape_cast %13 : vector<1x1x96x128xbf16> to vector<96x128xbf16>
      %15 = vector.extract_strided_slice %14 {offsets = [0, 0], sizes = [96, 4], strides = [1, 1]} : vector<96x128xbf16> to vector<96x4xbf16>
      %16 = arith.index_cast %arg2 : i32 to index
      %c0_8 = arith.constant 0 : index
      %c0_9 = arith.constant 0 : index
      %17 = vector.load %arg4[%16, %c0_8, %c0_9] : memref<5x100x128xbf16, #tpu.memory_space<vmem>>, vector<1x100x128xbf16>
      %18 = vector.shape_cast %17 : vector<1x100x128xbf16> to vector<100x128xbf16>
      %19 = vector.extract_strided_slice %15 {offsets = [14, 0], sizes = [32, 4], strides = [1, 1]} : vector<96x4xbf16> to vector<32x4xbf16>
      %20 = vector.extract_strided_slice %15 {offsets = [15, 0], sizes = [32, 4], strides = [1, 1]} : vector<96x4xbf16> to vector<32x4xbf16>
      %21 = vector.extract_strided_slice %15 {offsets = [16, 0], sizes = [32, 4], strides = [1, 1]} : vector<96x4xbf16> to vector<32x4xbf16>
      %22 = vector.extract_strided_slice %15 {offsets = [17, 0], sizes = [32, 4], strides = [1, 1]} : vector<96x4xbf16> to vector<32x4xbf16>
      %23 = vector.extract_strided_slice %15 {offsets = [18, 0], sizes = [32, 4], strides = [1, 1]} : vector<96x4xbf16> to vector<32x4xbf16>
      %24 = vector.extract_strided_slice %15 {offsets = [22, 0], sizes = [32, 4], strides = [1, 1]} : vector<96x4xbf16> to vector<32x4xbf16>
      %25 = vector.extract_strided_slice %15 {offsets = [23, 0], sizes = [32, 4], strides = [1, 1]} : vector<96x4xbf16> to vector<32x4xbf16>
      %26 = vector.extract_strided_slice %15 {offsets = [24, 0], sizes = [32, 4], strides = [1, 1]} : vector<96x4xbf16> to vector<32x4xbf16>
      %27 = vector.extract_strided_slice %15 {offsets = [25, 0], sizes = [32, 4], strides = [1, 1]} : vector<96x4xbf16> to vector<32x4xbf16>
      %28 = vector.extract_strided_slice %15 {offsets = [26, 0], sizes = [32, 4], strides = [1, 1]} : vector<96x4xbf16> to vector<32x4xbf16>
      %29 = vector.extract_strided_slice %15 {offsets = [30, 0], sizes = [32, 4], strides = [1, 1]} : vector<96x4xbf16> to vector<32x4xbf16>
      %30 = vector.extract_strided_slice %15 {offsets = [31, 0], sizes = [32, 4], strides = [1, 1]} : vector<96x4xbf16> to vector<32x4xbf16>
      %31 = vector.extract_strided_slice %15 {offsets = [32, 0], sizes = [32, 4], strides = [1, 1]} : vector<96x4xbf16> to vector<32x4xbf16>
      %32 = vector.extract_strided_slice %15 {offsets = [33, 0], sizes = [32, 4], strides = [1, 1]} : vector<96x4xbf16> to vector<32x4xbf16>
      %33 = vector.extract_strided_slice %15 {offsets = [34, 0], sizes = [32, 4], strides = [1, 1]} : vector<96x4xbf16> to vector<32x4xbf16>
      %34 = vector.extract_strided_slice %15 {offsets = [38, 0], sizes = [32, 4], strides = [1, 1]} : vector<96x4xbf16> to vector<32x4xbf16>
      %35 = vector.extract_strided_slice %15 {offsets = [39, 0], sizes = [32, 4], strides = [1, 1]} : vector<96x4xbf16> to vector<32x4xbf16>
      %36 = vector.extract_strided_slice %15 {offsets = [40, 0], sizes = [32, 4], strides = [1, 1]} : vector<96x4xbf16> to vector<32x4xbf16>
      %37 = vector.extract_strided_slice %15 {offsets = [41, 0], sizes = [32, 4], strides = [1, 1]} : vector<96x4xbf16> to vector<32x4xbf16>
      %38 = vector.extract_strided_slice %15 {offsets = [42, 0], sizes = [32, 4], strides = [1, 1]} : vector<96x4xbf16> to vector<32x4xbf16>
      %39 = vector.extract_strided_slice %15 {offsets = [46, 0], sizes = [32, 4], strides = [1, 1]} : vector<96x4xbf16> to vector<32x4xbf16>
      %40 = vector.extract_strided_slice %15 {offsets = [47, 0], sizes = [32, 4], strides = [1, 1]} : vector<96x4xbf16> to vector<32x4xbf16>
      %41 = vector.extract_strided_slice %15 {offsets = [48, 0], sizes = [32, 4], strides = [1, 1]} : vector<96x4xbf16> to vector<32x4xbf16>
      %42 = vector.extract_strided_slice %15 {offsets = [49, 0], sizes = [32, 4], strides = [1, 1]} : vector<96x4xbf16> to vector<32x4xbf16>
      %43 = vector.extract_strided_slice %15 {offsets = [50, 0], sizes = [32, 4], strides = [1, 1]} : vector<96x4xbf16> to vector<32x4xbf16>
      %44 = tpu.concatenate %19, %20, %21, %22, %23, %24, %25, %26, %27, %28, %29, %30, %31, %32, %33, %34 in 1 : vector<32x4xbf16>, vector<32x4xbf16>, vector<32x4xbf16>, vector<32x4xbf16>, vector<32x4xbf16>, vector<32x4xbf16>, vector<32x4xbf16>, vector<32x4xbf16>, vector<32x4xbf16>, vector<32x4xbf16>, vector<32x4xbf16>, vector<32x4xbf16>, vector<32x4xbf16>, vector<32x4xbf16>, vector<32x4xbf16>, vector<32x4xbf16> -> vector<32x64xbf16>
      %45 = tpu.concatenate %35, %36, %37, %38, %39, %40, %41, %42, %43 in 1 : vector<32x4xbf16>, vector<32x4xbf16>, vector<32x4xbf16>, vector<32x4xbf16>, vector<32x4xbf16>, vector<32x4xbf16>, vector<32x4xbf16>, vector<32x4xbf16>, vector<32x4xbf16> -> vector<32x36xbf16>
      %46 = tpu.concatenate %44, %45 in 1 : vector<32x64xbf16>, vector<32x36xbf16> -> vector<32x100xbf16>
      %cst = arith.constant dense<0.000000e+00> : vector<32x128xf32>
      %47 = tpu.matmul %46, %18, %cst {dimension_numbers = #tpu.dot_dimension_numbers<[1], [0], [0], [1], [0, 0, 1, 1], [], []>} : vector<32x100xbf16>, vector<100x128xbf16>, vector<32x128xf32> -> vector<32x128xf32>
      %c0_10 = arith.constant 0 : index
      %c0_11 = arith.constant 0 : index
      %48 = vector.load %arg8[%c0_10, %c0_11] : memref<32x128xf32, #tpu.memory_space<vmem>>, vector<32x128xf32>
      %49 = arith.addf %48, %47 : vector<32x128xf32>
      %c0_12 = arith.constant 0 : index
      %c0_13 = arith.constant 0 : index
      %50 = vector.load %arg8[%c0_12, %c0_13] : memref<32x128xf32, #tpu.memory_space<vmem>>, vector<32x128xf32>
      tpu.vector_store %arg8[%c0_12, %c0_13], %49 {strides = array<i32>} : memref<32x128xf32, #tpu.memory_space<vmem>>, vector<32x128xf32>,
    } else {
    }
    %c4_i32_3 = arith.constant 4 : i32
    %10 = arith.cmpi eq, %arg2, %c4_i32_3 : i32
    %11 = arith.extui %10 : i1 to i32
    %c0_i32_4 = arith.constant 0 : i32
    %12 = arith.cmpi ne, %11, %c0_i32_4 : i32
    scf.if %12 {
      %c0 = arith.constant 0 : index
      %c0_5 = arith.constant 0 : index
      %13 = vector.load %arg8[%c0, %c0_5] : memref<32x128xf32, #tpu.memory_space<vmem>>, vector<32x128xf32>
      %c0_6 = arith.constant 0 : index
      %c0_7 = arith.constant 0 : index
      %14 = vector.load %arg5[%c0_6, %c0_7] : memref<1x128xf32, #tpu.memory_space<vmem>>, vector<1x128xf32>
      %15 = vector.broadcast %14 : vector<1x128xf32> to vector<32x128xf32>
      %16 = arith.addf %13, %15 : vector<32x128xf32>
      %cst = arith.constant 0.000000e+00 : f32
      %17 = vector.broadcast %cst : f32 to vector<32x128xf32>
      %18 = arith.maximumf %16, %17 : vector<32x128xf32>
      %c0_8 = arith.constant 0 : index
      %c0_9 = arith.constant 0 : index
      %19 = vector.load %arg6[%c0_8, %c0_9] : memref<32x1xf32, #tpu.memory_space<vmem>>, vector<32x1xf32>
      %20 = vector.broadcast %19 : vector<32x1xf32> to vector<32x128xf32>
      %21 = arith.mulf %18, %20 : vector<32x128xf32>
      %cst_10 = arith.constant 0.000000e+00 : bf16
      %22 = vector.broadcast %cst_10 : bf16 to vector<96x128xbf16>
      %c0_11 = arith.constant 0 : index
      %c0_12 = arith.constant 0 : index
      %c0_13 = arith.constant 0 : index
      %c0_14 = arith.constant 0 : index
      %23 = vector.load %arg7[%c0_11, %c0_12, %c0_13, %c0_14] : memref<1x1x96x128xbf16, #tpu.memory_space<vmem>>, vector<1x1x96x128xbf16>
      %24 = vector.shape_cast %23 : vector<1x1x96x128xbf16> to vector<96x128xbf16>
      %25 = vector.shape_cast %22 : vector<96x128xbf16> to vector<1x1x96x128xbf16>
      tpu.vector_store %arg7[%c0_11, %c0_12, %c0_13, %c0_14], %25 {strides = array<i32>} : memref<1x1x96x128xbf16, #tpu.memory_space<vmem>>, vector<1x1x96x128xbf16>,
      %26 = arith.truncf %21 : vector<32x128xf32> to vector<32x128xbf16>
      %c0_15 = arith.constant 0 : index
      %c0_16 = arith.constant 0 : index
      %c32 = arith.constant 32 : index
      %c0_17 = arith.constant 0 : index
      %27 = vector.load %arg7[%c0_15, %c0_16, %c32, %c0_17] : memref<1x1x96x128xbf16, #tpu.memory_space<vmem>>, vector<1x1x32x128xbf16>
      %28 = vector.shape_cast %27 : vector<1x1x32x128xbf16> to vector<32x128xbf16>
      %29 = vector.shape_cast %26 : vector<32x128xbf16> to vector<1x1x32x128xbf16>
      tpu.vector_store %arg7[%c0_15, %c0_16, %c32, %c0_17], %29 {strides = array<i32>} : memref<1x1x96x128xbf16, #tpu.memory_space<vmem>>, vector<1x1x32x128xbf16>,
    } else {
    }
    return
  }
  func.func @transform_0(%arg0: i32, %arg1: i32, %arg2: i32) -> (i32, i32, i32, i32) {
    %0 = arith.addi %arg1, %arg2 : i32
    %c2_i32 = arith.constant 2 : i32
    %1 = arith.subi %0, %c2_i32 : i32
    %c0_i32 = arith.constant 0 : i32
    %2 = arith.maxsi %1, %c0_i32 : i32
    %c3_i32 = arith.constant 3 : i32
    %3 = arith.minsi %2, %c3_i32 : i32
    %c0_i32_0 = arith.constant 0 : i32
    %c0_i32_1 = arith.constant 0 : i32
    %c0_i32_2 = arith.constant 0 : i32
    return %arg0, %3, %c0_i32_0, %c0_i32_1 : i32, i32, i32, i32
  }
  func.func @transform_1(%arg0: i32, %arg1: i32, %arg2: i32) -> (i32, i32, i32) {
    %c0_i32 = arith.constant 0 : i32
    %c0_i32_0 = arith.constant 0 : i32
    %c0_i32_1 = arith.constant 0 : i32
    %c0_i32_2 = arith.constant 0 : i32
    return %c0_i32, %c0_i32_0, %c0_i32_1 : i32, i32, i32
  }
  func.func @transform_2(%arg0: i32, %arg1: i32, %arg2: i32) -> (i32, i32) {
    %c0_i32 = arith.constant 0 : i32
    %c0_i32_0 = arith.constant 0 : i32
    %c0_i32_1 = arith.constant 0 : i32
    return %c0_i32, %c0_i32_0 : i32, i32
  }
  func.func @transform_3(%arg0: i32, %arg1: i32, %arg2: i32) -> (i32, i32) {
    %c0_i32 = arith.constant 0 : i32
    %c0_i32_0 = arith.constant 0 : i32
    %c0_i32_1 = arith.constant 0 : i32
    return %c0_i32, %c0_i32_0 : i32, i32
  }
  func.func @transform_4(%arg0: i32, %arg1: i32, %arg2: i32) -> (i32, i32, i32, i32) {
    %c0_i32 = arith.constant 0 : i32
    %c0_i32_0 = arith.constant 0 : i32
    %c0_i32_1 = arith.constant 0 : i32
    return %arg0, %arg1, %c0_i32, %c0_i32_0 : i32, i32, i32, i32
  }
}

module attributes {stable_mosaic.version = 11 : i64} {
  func.func @kernel(%arg0: i32, %arg1: i32, %arg2: i32, %arg3: memref<1x1x160x8xbf16, #tpu.memory_space<vmem>>, %arg4: memref<5x200x128xbf16, #tpu.memory_space<vmem>>, %arg5: memref<1x128xf32, #tpu.memory_space<vmem>>, %arg6: memref<96x1xf32, #tpu.memory_space<vmem>>, %arg7: memref<1x1x160x128xbf16, #tpu.memory_space<vmem>>, %arg8: memref<96x128xf32, #tpu.memory_space<vmem>>) attributes {dimension_semantics = [#tpu.dimension_semantics<parallel>, #tpu.dimension_semantics<parallel>, #tpu.dimension_semantics<arbitrary>], iteration_bounds = array<i64: 2, 8, 5>, scalar_prefetch = 0 : i64, scratch_operands = 1 : i64, tpu.core_type = #tpu.core_type<tc>, window_params = [{transform_indices = @transform_0, window_bounds = array<i64: 1, 1, 160, 8>}, {pipeline_mode = #tpu.pipeline_mode<synchronous>, transform_indices = @transform_1, window_bounds = array<i64: 5, 200, 128>}, {pipeline_mode = #tpu.pipeline_mode<synchronous>, transform_indices = @transform_2, window_bounds = array<i64: 1, 128>}, {pipeline_mode = #tpu.pipeline_mode<synchronous>, transform_indices = @transform_3, window_bounds = array<i64: 96, 1>}, {transform_indices = @transform_4, window_bounds = array<i64: 1, 1, 160, 128>}]} {
    %c0_i32 = arith.constant 0 : i32
    %0 = arith.cmpi eq, %arg2, %c0_i32 : i32
    %1 = arith.extui %0 : i1 to i32
    %c0_i32_0 = arith.constant 0 : i32
    %2 = arith.cmpi ne, %1, %c0_i32_0 : i32
    scf.if %2 {
      %cst = arith.constant 0.000000e+00 : f32
      %13 = vector.broadcast %cst : f32 to vector<96x128xf32>
      %c0 = arith.constant 0 : index
      %c0_4 = arith.constant 0 : index
      %14 = vector.load %arg8[%c0, %c0_4] : memref<96x128xf32, #tpu.memory_space<vmem>>, vector<96x128xf32>
      tpu.vector_store %arg8[%c0, %c0_4], %13 {strides = array<i32>} : memref<96x128xf32, #tpu.memory_space<vmem>>, vector<96x128xf32>,
    } else {
    }
    %3 = arith.addi %arg1, %arg2 : i32
    %c2_i32 = arith.constant 2 : i32
    %4 = arith.subi %3, %c2_i32 : i32
    %c0_i32_1 = arith.constant 0 : i32
    %5 = arith.cmpi sge, %4, %c0_i32_1 : i32
    %c8_i32 = arith.constant 8 : i32
    %6 = arith.cmpi slt, %4, %c8_i32 : i32
    %7 = arith.andi %5, %6 : i1
    %8 = arith.extui %7 : i1 to i32
    %c0_i32_2 = arith.constant 0 : i32
    %9 = arith.cmpi ne, %8, %c0_i32_2 : i32
    scf.if %9 {
      %c0 = arith.constant 0 : index
      %c0_4 = arith.constant 0 : index
      %c0_5 = arith.constant 0 : index
      %c0_6 = arith.constant 0 : index
      %13 = vector.load %arg3[%c0, %c0_4, %c0_5, %c0_6] : memref<1x1x160x8xbf16, #tpu.memory_space<vmem>>, vector<1x1x160x8xbf16>
      %14 = vector.shape_cast %13 : vector<1x1x160x8xbf16> to vector<160x8xbf16>
      %15 = arith.index_cast %arg2 : i32 to index
      %c0_7 = arith.constant 0 : index
      %c0_8 = arith.constant 0 : index
      %16 = vector.load %arg4[%15, %c0_7, %c0_8] : memref<5x200x128xbf16, #tpu.memory_space<vmem>>, vector<1x200x128xbf16>
      %17 = vector.shape_cast %16 : vector<1x200x128xbf16> to vector<200x128xbf16>
      %18 = vector.extract_strided_slice %14 {offsets = [6, 0], sizes = [96, 8], strides = [1, 1]} : vector<160x8xbf16> to vector<96x8xbf16>
      %19 = vector.extract_strided_slice %14 {offsets = [7, 0], sizes = [96, 8], strides = [1, 1]} : vector<160x8xbf16> to vector<96x8xbf16>
      %20 = vector.extract_strided_slice %14 {offsets = [8, 0], sizes = [96, 8], strides = [1, 1]} : vector<160x8xbf16> to vector<96x8xbf16>
      %21 = vector.extract_strided_slice %14 {offsets = [9, 0], sizes = [96, 8], strides = [1, 1]} : vector<160x8xbf16> to vector<96x8xbf16>
      %22 = vector.extract_strided_slice %14 {offsets = [10, 0], sizes = [96, 8], strides = [1, 1]} : vector<160x8xbf16> to vector<96x8xbf16>
      %23 = vector.extract_strided_slice %14 {offsets = [18, 0], sizes = [96, 8], strides = [1, 1]} : vector<160x8xbf16> to vector<96x8xbf16>
      %24 = vector.extract_strided_slice %14 {offsets = [19, 0], sizes = [96, 8], strides = [1, 1]} : vector<160x8xbf16> to vector<96x8xbf16>
      %25 = vector.extract_strided_slice %14 {offsets = [20, 0], sizes = [96, 8], strides = [1, 1]} : vector<160x8xbf16> to vector<96x8xbf16>
      %26 = vector.extract_strided_slice %14 {offsets = [21, 0], sizes = [96, 8], strides = [1, 1]} : vector<160x8xbf16> to vector<96x8xbf16>
      %27 = vector.extract_strided_slice %14 {offsets = [22, 0], sizes = [96, 8], strides = [1, 1]} : vector<160x8xbf16> to vector<96x8xbf16>
      %28 = vector.extract_strided_slice %14 {offsets = [30, 0], sizes = [96, 8], strides = [1, 1]} : vector<160x8xbf16> to vector<96x8xbf16>
      %29 = vector.extract_strided_slice %14 {offsets = [31, 0], sizes = [96, 8], strides = [1, 1]} : vector<160x8xbf16> to vector<96x8xbf16>
      %30 = vector.extract_strided_slice %14 {offsets = [32, 0], sizes = [96, 8], strides = [1, 1]} : vector<160x8xbf16> to vector<96x8xbf16>
      %31 = vector.extract_strided_slice %14 {offsets = [33, 0], sizes = [96, 8], strides = [1, 1]} : vector<160x8xbf16> to vector<96x8xbf16>
      %32 = vector.extract_strided_slice %14 {offsets = [34, 0], sizes = [96, 8], strides = [1, 1]} : vector<160x8xbf16> to vector<96x8xbf16>
      %33 = vector.extract_strided_slice %14 {offsets = [42, 0], sizes = [96, 8], strides = [1, 1]} : vector<160x8xbf16> to vector<96x8xbf16>
      %34 = vector.extract_strided_slice %14 {offsets = [43, 0], sizes = [96, 8], strides = [1, 1]} : vector<160x8xbf16> to vector<96x8xbf16>
      %35 = vector.extract_strided_slice %14 {offsets = [44, 0], sizes = [96, 8], strides = [1, 1]} : vector<160x8xbf16> to vector<96x8xbf16>
      %36 = vector.extract_strided_slice %14 {offsets = [45, 0], sizes = [96, 8], strides = [1, 1]} : vector<160x8xbf16> to vector<96x8xbf16>
      %37 = vector.extract_strided_slice %14 {offsets = [46, 0], sizes = [96, 8], strides = [1, 1]} : vector<160x8xbf16> to vector<96x8xbf16>
      %38 = vector.extract_strided_slice %14 {offsets = [54, 0], sizes = [96, 8], strides = [1, 1]} : vector<160x8xbf16> to vector<96x8xbf16>
      %39 = vector.extract_strided_slice %14 {offsets = [55, 0], sizes = [96, 8], strides = [1, 1]} : vector<160x8xbf16> to vector<96x8xbf16>
      %40 = vector.extract_strided_slice %14 {offsets = [56, 0], sizes = [96, 8], strides = [1, 1]} : vector<160x8xbf16> to vector<96x8xbf16>
      %41 = vector.extract_strided_slice %14 {offsets = [57, 0], sizes = [96, 8], strides = [1, 1]} : vector<160x8xbf16> to vector<96x8xbf16>
      %42 = vector.extract_strided_slice %14 {offsets = [58, 0], sizes = [96, 8], strides = [1, 1]} : vector<160x8xbf16> to vector<96x8xbf16>
      %43 = tpu.concatenate %18, %19, %20, %21, %22, %23, %24, %25, %26, %27, %28, %29, %30, %31, %32, %33 in 1 : vector<96x8xbf16>, vector<96x8xbf16>, vector<96x8xbf16>, vector<96x8xbf16>, vector<96x8xbf16>, vector<96x8xbf16>, vector<96x8xbf16>, vector<96x8xbf16>, vector<96x8xbf16>, vector<96x8xbf16>, vector<96x8xbf16>, vector<96x8xbf16>, vector<96x8xbf16>, vector<96x8xbf16>, vector<96x8xbf16>, vector<96x8xbf16> -> vector<96x128xbf16>
      %44 = tpu.concatenate %34, %35, %36, %37, %38, %39, %40, %41, %42 in 1 : vector<96x8xbf16>, vector<96x8xbf16>, vector<96x8xbf16>, vector<96x8xbf16>, vector<96x8xbf16>, vector<96x8xbf16>, vector<96x8xbf16>, vector<96x8xbf16>, vector<96x8xbf16> -> vector<96x72xbf16>
      %45 = tpu.concatenate %43, %44 in 1 : vector<96x128xbf16>, vector<96x72xbf16> -> vector<96x200xbf16>
      %cst = arith.constant dense<0.000000e+00> : vector<96x128xf32>
      %46 = tpu.matmul %45, %17, %cst {dimension_numbers = #tpu.dot_dimension_numbers<[1], [0], [0], [1], [0, 0, 1, 1], [], []>} : vector<96x200xbf16>, vector<200x128xbf16>, vector<96x128xf32> -> vector<96x128xf32>
      %c0_9 = arith.constant 0 : index
      %c0_10 = arith.constant 0 : index
      %47 = vector.load %arg8[%c0_9, %c0_10] : memref<96x128xf32, #tpu.memory_space<vmem>>, vector<96x128xf32>
      %48 = arith.addf %47, %46 : vector<96x128xf32>
      %c0_11 = arith.constant 0 : index
      %c0_12 = arith.constant 0 : index
      %49 = vector.load %arg8[%c0_11, %c0_12] : memref<96x128xf32, #tpu.memory_space<vmem>>, vector<96x128xf32>
      tpu.vector_store %arg8[%c0_11, %c0_12], %48 {strides = array<i32>} : memref<96x128xf32, #tpu.memory_space<vmem>>, vector<96x128xf32>,
    } else {
    }
    %c4_i32 = arith.constant 4 : i32
    %10 = arith.cmpi eq, %arg2, %c4_i32 : i32
    %11 = arith.extui %10 : i1 to i32
    %c0_i32_3 = arith.constant 0 : i32
    %12 = arith.cmpi ne, %11, %c0_i32_3 : i32
    scf.if %12 {
      %c0 = arith.constant 0 : index
      %c0_4 = arith.constant 0 : index
      %13 = vector.load %arg8[%c0, %c0_4] : memref<96x128xf32, #tpu.memory_space<vmem>>, vector<96x128xf32>
      %c0_5 = arith.constant 0 : index
      %c0_6 = arith.constant 0 : index
      %14 = vector.load %arg5[%c0_5, %c0_6] : memref<1x128xf32, #tpu.memory_space<vmem>>, vector<1x128xf32>
      %15 = vector.broadcast %14 : vector<1x128xf32> to vector<96x128xf32>
      %16 = arith.addf %13, %15 : vector<96x128xf32>
      %cst = arith.constant 0.000000e+00 : f32
      %17 = vector.broadcast %cst : f32 to vector<96x128xf32>
      %18 = arith.maximumf %16, %17 : vector<96x128xf32>
      %c0_7 = arith.constant 0 : index
      %c0_8 = arith.constant 0 : index
      %19 = vector.load %arg6[%c0_7, %c0_8] : memref<96x1xf32, #tpu.memory_space<vmem>>, vector<96x1xf32>
      %20 = vector.broadcast %19 : vector<96x1xf32> to vector<96x128xf32>
      %21 = arith.mulf %18, %20 : vector<96x128xf32>
      %cst_9 = arith.constant 0.000000e+00 : bf16
      %22 = vector.broadcast %cst_9 : bf16 to vector<160x128xbf16>
      %c0_10 = arith.constant 0 : index
      %c0_11 = arith.constant 0 : index
      %c0_12 = arith.constant 0 : index
      %c0_13 = arith.constant 0 : index
      %23 = vector.load %arg7[%c0_10, %c0_11, %c0_12, %c0_13] : memref<1x1x160x128xbf16, #tpu.memory_space<vmem>>, vector<1x1x160x128xbf16>
      %24 = vector.shape_cast %23 : vector<1x1x160x128xbf16> to vector<160x128xbf16>
      %25 = vector.shape_cast %22 : vector<160x128xbf16> to vector<1x1x160x128xbf16>
      tpu.vector_store %arg7[%c0_10, %c0_11, %c0_12, %c0_13], %25 {strides = array<i32>} : memref<1x1x160x128xbf16, #tpu.memory_space<vmem>>, vector<1x1x160x128xbf16>,
      %26 = arith.truncf %21 : vector<96x128xf32> to vector<96x128xbf16>
      %c0_14 = arith.constant 0 : index
      %c0_15 = arith.constant 0 : index
      %c32 = arith.constant 32 : index
      %c0_16 = arith.constant 0 : index
      %27 = vector.load %arg7[%c0_14, %c0_15, %c32, %c0_16] : memref<1x1x160x128xbf16, #tpu.memory_space<vmem>>, vector<1x1x96x128xbf16>
      %28 = vector.shape_cast %27 : vector<1x1x96x128xbf16> to vector<96x128xbf16>
      %29 = vector.shape_cast %26 : vector<96x128xbf16> to vector<1x1x96x128xbf16>
      tpu.vector_store %arg7[%c0_14, %c0_15, %c32, %c0_16], %29 {strides = array<i32>} : memref<1x1x160x128xbf16, #tpu.memory_space<vmem>>, vector<1x1x96x128xbf16>,
    } else {
    }
    return
  }
  func.func @transform_0(%arg0: i32, %arg1: i32, %arg2: i32) -> (i32, i32, i32, i32) {
    %0 = arith.addi %arg1, %arg2 : i32
    %c2_i32 = arith.constant 2 : i32
    %1 = arith.subi %0, %c2_i32 : i32
    %c0_i32 = arith.constant 0 : i32
    %2 = arith.maxsi %1, %c0_i32 : i32
    %c7_i32 = arith.constant 7 : i32
    %3 = arith.minsi %2, %c7_i32 : i32
    %c0_i32_0 = arith.constant 0 : i32
    %c0_i32_1 = arith.constant 0 : i32
    %c0_i32_2 = arith.constant 0 : i32
    return %arg0, %3, %c0_i32_0, %c0_i32_1 : i32, i32, i32, i32
  }
  func.func @transform_1(%arg0: i32, %arg1: i32, %arg2: i32) -> (i32, i32, i32) {
    %c0_i32 = arith.constant 0 : i32
    %c0_i32_0 = arith.constant 0 : i32
    %c0_i32_1 = arith.constant 0 : i32
    %c0_i32_2 = arith.constant 0 : i32
    return %c0_i32, %c0_i32_0, %c0_i32_1 : i32, i32, i32
  }
  func.func @transform_2(%arg0: i32, %arg1: i32, %arg2: i32) -> (i32, i32) {
    %c0_i32 = arith.constant 0 : i32
    %c0_i32_0 = arith.constant 0 : i32
    %c0_i32_1 = arith.constant 0 : i32
    return %c0_i32, %c0_i32_0 : i32, i32
  }
  func.func @transform_3(%arg0: i32, %arg1: i32, %arg2: i32) -> (i32, i32) {
    %c0_i32 = arith.constant 0 : i32
    %c0_i32_0 = arith.constant 0 : i32
    %c0_i32_1 = arith.constant 0 : i32
    return %c0_i32, %c0_i32_0 : i32, i32
  }
  func.func @transform_4(%arg0: i32, %arg1: i32, %arg2: i32) -> (i32, i32, i32, i32) {
    %c0_i32 = arith.constant 0 : i32
    %c0_i32_0 = arith.constant 0 : i32
    %c0_i32_1 = arith.constant 0 : i32
    return %arg0, %arg1, %c0_i32, %c0_i32_0 : i32, i32, i32, i32
  }
}

module attributes {stable_mosaic.version = 11 : i64} {
  func.func @kernel(%arg0: i32, %arg1: i32, %arg2: i32, %arg3: memref<1x1x160x128xbf16, #tpu.memory_space<vmem>>, %arg4: memref<5x100x128xbf16, #tpu.memory_space<vmem>>, %arg5: memref<1x128xf32, #tpu.memory_space<vmem>>, %arg6: memref<96x1xf32, #tpu.memory_space<vmem>>, %arg7: memref<1x1x160x128xbf16, #tpu.memory_space<vmem>>, %arg8: memref<96x128xf32, #tpu.memory_space<vmem>>) attributes {dimension_semantics = [#tpu.dimension_semantics<parallel>, #tpu.dimension_semantics<parallel>, #tpu.dimension_semantics<arbitrary>], iteration_bounds = array<i64: 2, 8, 5>, scalar_prefetch = 0 : i64, scratch_operands = 1 : i64, tpu.core_type = #tpu.core_type<tc>, window_params = [{transform_indices = @transform_0, window_bounds = array<i64: 1, 1, 160, 128>}, {pipeline_mode = #tpu.pipeline_mode<synchronous>, transform_indices = @transform_1, window_bounds = array<i64: 5, 100, 128>}, {pipeline_mode = #tpu.pipeline_mode<synchronous>, transform_indices = @transform_2, window_bounds = array<i64: 1, 128>}, {pipeline_mode = #tpu.pipeline_mode<synchronous>, transform_indices = @transform_3, window_bounds = array<i64: 96, 1>}, {transform_indices = @transform_4, window_bounds = array<i64: 1, 1, 160, 128>}]} {
    %c0_i32 = arith.constant 0 : i32
    %0 = arith.cmpi eq, %arg2, %c0_i32 : i32
    %1 = arith.extui %0 : i1 to i32
    %c0_i32_0 = arith.constant 0 : i32
    %2 = arith.cmpi ne, %1, %c0_i32_0 : i32
    scf.if %2 {
      %cst = arith.constant 0.000000e+00 : f32
      %13 = vector.broadcast %cst : f32 to vector<96x128xf32>
      %c0 = arith.constant 0 : index
      %c0_4 = arith.constant 0 : index
      %14 = vector.load %arg8[%c0, %c0_4] : memref<96x128xf32, #tpu.memory_space<vmem>>, vector<96x128xf32>
      tpu.vector_store %arg8[%c0, %c0_4], %13 {strides = array<i32>} : memref<96x128xf32, #tpu.memory_space<vmem>>, vector<96x128xf32>,
    } else {
    }
    %3 = arith.addi %arg1, %arg2 : i32
    %c2_i32 = arith.constant 2 : i32
    %4 = arith.subi %3, %c2_i32 : i32
    %c0_i32_1 = arith.constant 0 : i32
    %5 = arith.cmpi sge, %4, %c0_i32_1 : i32
    %c8_i32 = arith.constant 8 : i32
    %6 = arith.cmpi slt, %4, %c8_i32 : i32
    %7 = arith.andi %5, %6 : i1
    %8 = arith.extui %7 : i1 to i32
    %c0_i32_2 = arith.constant 0 : i32
    %9 = arith.cmpi ne, %8, %c0_i32_2 : i32
    scf.if %9 {
      %c0 = arith.constant 0 : index
      %c0_4 = arith.constant 0 : index
      %c0_5 = arith.constant 0 : index
      %c0_6 = arith.constant 0 : index
      %13 = vector.load %arg3[%c0, %c0_4, %c0_5, %c0_6] : memref<1x1x160x128xbf16, #tpu.memory_space<vmem>>, vector<1x1x160x128xbf16>
      %14 = vector.shape_cast %13 : vector<1x1x160x128xbf16> to vector<160x128xbf16>
      %15 = vector.extract_strided_slice %14 {offsets = [0, 0], sizes = [160, 4], strides = [1, 1]} : vector<160x128xbf16> to vector<160x4xbf16>
      %16 = arith.index_cast %arg2 : i32 to index
      %c0_7 = arith.constant 0 : index
      %c0_8 = arith.constant 0 : index
      %17 = vector.load %arg4[%16, %c0_7, %c0_8] : memref<5x100x128xbf16, #tpu.memory_space<vmem>>, vector<1x100x128xbf16>
      %18 = vector.shape_cast %17 : vector<1x100x128xbf16> to vector<100x128xbf16>
      %19 = vector.extract_strided_slice %15 {offsets = [6, 0], sizes = [96, 4], strides = [1, 1]} : vector<160x4xbf16> to vector<96x4xbf16>
      %20 = vector.extract_strided_slice %15 {offsets = [7, 0], sizes = [96, 4], strides = [1, 1]} : vector<160x4xbf16> to vector<96x4xbf16>
      %21 = vector.extract_strided_slice %15 {offsets = [8, 0], sizes = [96, 4], strides = [1, 1]} : vector<160x4xbf16> to vector<96x4xbf16>
      %22 = vector.extract_strided_slice %15 {offsets = [9, 0], sizes = [96, 4], strides = [1, 1]} : vector<160x4xbf16> to vector<96x4xbf16>
      %23 = vector.extract_strided_slice %15 {offsets = [10, 0], sizes = [96, 4], strides = [1, 1]} : vector<160x4xbf16> to vector<96x4xbf16>
      %24 = vector.extract_strided_slice %15 {offsets = [18, 0], sizes = [96, 4], strides = [1, 1]} : vector<160x4xbf16> to vector<96x4xbf16>
      %25 = vector.extract_strided_slice %15 {offsets = [19, 0], sizes = [96, 4], strides = [1, 1]} : vector<160x4xbf16> to vector<96x4xbf16>
      %26 = vector.extract_strided_slice %15 {offsets = [20, 0], sizes = [96, 4], strides = [1, 1]} : vector<160x4xbf16> to vector<96x4xbf16>
      %27 = vector.extract_strided_slice %15 {offsets = [21, 0], sizes = [96, 4], strides = [1, 1]} : vector<160x4xbf16> to vector<96x4xbf16>
      %28 = vector.extract_strided_slice %15 {offsets = [22, 0], sizes = [96, 4], strides = [1, 1]} : vector<160x4xbf16> to vector<96x4xbf16>
      %29 = vector.extract_strided_slice %15 {offsets = [30, 0], sizes = [96, 4], strides = [1, 1]} : vector<160x4xbf16> to vector<96x4xbf16>
      %30 = vector.extract_strided_slice %15 {offsets = [31, 0], sizes = [96, 4], strides = [1, 1]} : vector<160x4xbf16> to vector<96x4xbf16>
      %31 = vector.extract_strided_slice %15 {offsets = [32, 0], sizes = [96, 4], strides = [1, 1]} : vector<160x4xbf16> to vector<96x4xbf16>
      %32 = vector.extract_strided_slice %15 {offsets = [33, 0], sizes = [96, 4], strides = [1, 1]} : vector<160x4xbf16> to vector<96x4xbf16>
      %33 = vector.extract_strided_slice %15 {offsets = [34, 0], sizes = [96, 4], strides = [1, 1]} : vector<160x4xbf16> to vector<96x4xbf16>
      %34 = vector.extract_strided_slice %15 {offsets = [42, 0], sizes = [96, 4], strides = [1, 1]} : vector<160x4xbf16> to vector<96x4xbf16>
      %35 = vector.extract_strided_slice %15 {offsets = [43, 0], sizes = [96, 4], strides = [1, 1]} : vector<160x4xbf16> to vector<96x4xbf16>
      %36 = vector.extract_strided_slice %15 {offsets = [44, 0], sizes = [96, 4], strides = [1, 1]} : vector<160x4xbf16> to vector<96x4xbf16>
      %37 = vector.extract_strided_slice %15 {offsets = [45, 0], sizes = [96, 4], strides = [1, 1]} : vector<160x4xbf16> to vector<96x4xbf16>
      %38 = vector.extract_strided_slice %15 {offsets = [46, 0], sizes = [96, 4], strides = [1, 1]} : vector<160x4xbf16> to vector<96x4xbf16>
      %39 = vector.extract_strided_slice %15 {offsets = [54, 0], sizes = [96, 4], strides = [1, 1]} : vector<160x4xbf16> to vector<96x4xbf16>
      %40 = vector.extract_strided_slice %15 {offsets = [55, 0], sizes = [96, 4], strides = [1, 1]} : vector<160x4xbf16> to vector<96x4xbf16>
      %41 = vector.extract_strided_slice %15 {offsets = [56, 0], sizes = [96, 4], strides = [1, 1]} : vector<160x4xbf16> to vector<96x4xbf16>
      %42 = vector.extract_strided_slice %15 {offsets = [57, 0], sizes = [96, 4], strides = [1, 1]} : vector<160x4xbf16> to vector<96x4xbf16>
      %43 = vector.extract_strided_slice %15 {offsets = [58, 0], sizes = [96, 4], strides = [1, 1]} : vector<160x4xbf16> to vector<96x4xbf16>
      %44 = tpu.concatenate %19, %20, %21, %22, %23, %24, %25, %26, %27, %28, %29, %30, %31, %32, %33, %34 in 1 : vector<96x4xbf16>, vector<96x4xbf16>, vector<96x4xbf16>, vector<96x4xbf16>, vector<96x4xbf16>, vector<96x4xbf16>, vector<96x4xbf16>, vector<96x4xbf16>, vector<96x4xbf16>, vector<96x4xbf16>, vector<96x4xbf16>, vector<96x4xbf16>, vector<96x4xbf16>, vector<96x4xbf16>, vector<96x4xbf16>, vector<96x4xbf16> -> vector<96x64xbf16>
      %45 = tpu.concatenate %35, %36, %37, %38, %39, %40, %41, %42, %43 in 1 : vector<96x4xbf16>, vector<96x4xbf16>, vector<96x4xbf16>, vector<96x4xbf16>, vector<96x4xbf16>, vector<96x4xbf16>, vector<96x4xbf16>, vector<96x4xbf16>, vector<96x4xbf16> -> vector<96x36xbf16>
      %46 = tpu.concatenate %44, %45 in 1 : vector<96x64xbf16>, vector<96x36xbf16> -> vector<96x100xbf16>
      %cst = arith.constant dense<0.000000e+00> : vector<96x128xf32>
      %47 = tpu.matmul %46, %18, %cst {dimension_numbers = #tpu.dot_dimension_numbers<[1], [0], [0], [1], [0, 0, 1, 1], [], []>} : vector<96x100xbf16>, vector<100x128xbf16>, vector<96x128xf32> -> vector<96x128xf32>
      %c0_9 = arith.constant 0 : index
      %c0_10 = arith.constant 0 : index
      %48 = vector.load %arg8[%c0_9, %c0_10] : memref<96x128xf32, #tpu.memory_space<vmem>>, vector<96x128xf32>
      %49 = arith.addf %48, %47 : vector<96x128xf32>
      %c0_11 = arith.constant 0 : index
      %c0_12 = arith.constant 0 : index
      %50 = vector.load %arg8[%c0_11, %c0_12] : memref<96x128xf32, #tpu.memory_space<vmem>>, vector<96x128xf32>
      tpu.vector_store %arg8[%c0_11, %c0_12], %49 {strides = array<i32>} : memref<96x128xf32, #tpu.memory_space<vmem>>, vector<96x128xf32>,
    } else {
    }
    %c4_i32 = arith.constant 4 : i32
    %10 = arith.cmpi eq, %arg2, %c4_i32 : i32
    %11 = arith.extui %10 : i1 to i32
    %c0_i32_3 = arith.constant 0 : i32
    %12 = arith.cmpi ne, %11, %c0_i32_3 : i32
    scf.if %12 {
      %c0 = arith.constant 0 : index
      %c0_4 = arith.constant 0 : index
      %13 = vector.load %arg8[%c0, %c0_4] : memref<96x128xf32, #tpu.memory_space<vmem>>, vector<96x128xf32>
      %c0_5 = arith.constant 0 : index
      %c0_6 = arith.constant 0 : index
      %14 = vector.load %arg5[%c0_5, %c0_6] : memref<1x128xf32, #tpu.memory_space<vmem>>, vector<1x128xf32>
      %15 = vector.broadcast %14 : vector<1x128xf32> to vector<96x128xf32>
      %16 = arith.addf %13, %15 : vector<96x128xf32>
      %cst = arith.constant 0.000000e+00 : f32
      %17 = vector.broadcast %cst : f32 to vector<96x128xf32>
      %18 = arith.maximumf %16, %17 : vector<96x128xf32>
      %c0_7 = arith.constant 0 : index
      %c0_8 = arith.constant 0 : index
      %19 = vector.load %arg6[%c0_7, %c0_8] : memref<96x1xf32, #tpu.memory_space<vmem>>, vector<96x1xf32>
      %20 = vector.broadcast %19 : vector<96x1xf32> to vector<96x128xf32>
      %21 = arith.mulf %18, %20 : vector<96x128xf32>
      %cst_9 = arith.constant 0.000000e+00 : bf16
      %22 = vector.broadcast %cst_9 : bf16 to vector<160x128xbf16>
      %c0_10 = arith.constant 0 : index
      %c0_11 = arith.constant 0 : index
      %c0_12 = arith.constant 0 : index
      %c0_13 = arith.constant 0 : index
      %23 = vector.load %arg7[%c0_10, %c0_11, %c0_12, %c0_13] : memref<1x1x160x128xbf16, #tpu.memory_space<vmem>>, vector<1x1x160x128xbf16>
      %24 = vector.shape_cast %23 : vector<1x1x160x128xbf16> to vector<160x128xbf16>
      %25 = vector.shape_cast %22 : vector<160x128xbf16> to vector<1x1x160x128xbf16>
      tpu.vector_store %arg7[%c0_10, %c0_11, %c0_12, %c0_13], %25 {strides = array<i32>} : memref<1x1x160x128xbf16, #tpu.memory_space<vmem>>, vector<1x1x160x128xbf16>,
      %26 = arith.truncf %21 : vector<96x128xf32> to vector<96x128xbf16>
      %c0_14 = arith.constant 0 : index
      %c0_15 = arith.constant 0 : index
      %c32 = arith.constant 32 : index
      %c0_16 = arith.constant 0 : index
      %27 = vector.load %arg7[%c0_14, %c0_15, %c32, %c0_16] : memref<1x1x160x128xbf16, #tpu.memory_space<vmem>>, vector<1x1x96x128xbf16>
      %28 = vector.shape_cast %27 : vector<1x1x96x128xbf16> to vector<96x128xbf16>
      %29 = vector.shape_cast %26 : vector<96x128xbf16> to vector<1x1x96x128xbf16>
      tpu.vector_store %arg7[%c0_14, %c0_15, %c32, %c0_16], %29 {strides = array<i32>} : memref<1x1x160x128xbf16, #tpu.memory_space<vmem>>, vector<1x1x96x128xbf16>,
    } else {
    }
    return
  }
  func.func @transform_0(%arg0: i32, %arg1: i32, %arg2: i32) -> (i32, i32, i32, i32) {
    %0 = arith.addi %arg1, %arg2 : i32
    %c2_i32 = arith.constant 2 : i32
    %1 = arith.subi %0, %c2_i32 : i32
    %c0_i32 = arith.constant 0 : i32
    %2 = arith.maxsi %1, %c0_i32 : i32
    %c7_i32 = arith.constant 7 : i32
    %3 = arith.minsi %2, %c7_i32 : i32
    %c0_i32_0 = arith.constant 0 : i32
    %c0_i32_1 = arith.constant 0 : i32
    %c0_i32_2 = arith.constant 0 : i32
    return %arg0, %3, %c0_i32_0, %c0_i32_1 : i32, i32, i32, i32
  }
  func.func @transform_1(%arg0: i32, %arg1: i32, %arg2: i32) -> (i32, i32, i32) {
    %c0_i32 = arith.constant 0 : i32
    %c0_i32_0 = arith.constant 0 : i32
    %c0_i32_1 = arith.constant 0 : i32
    %c0_i32_2 = arith.constant 0 : i32
    return %c0_i32, %c0_i32_0, %c0_i32_1 : i32, i32, i32
  }
  func.func @transform_2(%arg0: i32, %arg1: i32, %arg2: i32) -> (i32, i32) {
    %c0_i32 = arith.constant 0 : i32
    %c0_i32_0 = arith.constant 0 : i32
    %c0_i32_1 = arith.constant 0 : i32
    return %c0_i32, %c0_i32_0 : i32, i32
  }
  func.func @transform_3(%arg0: i32, %arg1: i32, %arg2: i32) -> (i32, i32) {
    %c0_i32 = arith.constant 0 : i32
    %c0_i32_0 = arith.constant 0 : i32
    %c0_i32_1 = arith.constant 0 : i32
    return %c0_i32, %c0_i32_0 : i32, i32
  }
  func.func @transform_4(%arg0: i32, %arg1: i32, %arg2: i32) -> (i32, i32, i32, i32) {
    %c0_i32 = arith.constant 0 : i32
    %c0_i32_0 = arith.constant 0 : i32
    %c0_i32_1 = arith.constant 0 : i32
    return %arg0, %arg1, %c0_i32, %c0_i32_0 : i32, i32, i32, i32
  }
}

</mosaic_0001>

<llo_original>
// kernel: upsample_forward.5
$region0: #{upsample_forward.5}
  #allocation0 [shape = 'u32[]', space=smem, size = 0x4, offset = 0x4, fixed_abs, tag = 'smem constant byte address 0x4 - core index']
  #allocation1 [shape = 'u32[72,128]{1,0:T(1,128)}', space=vmem, size = 0x9000, scoped, tag = 'internal scratch']
  #allocation2 [shape = 'f32[32,128]{1,0:T(8,128)}', space=vmem, size = 0x4000, scoped, tag = 'scratch operand']
  %s0 = inlined_call_operand.vmem [shape: bf16[2,4,96,128], index: 0, kind: input, shape index: {}]
  %s1 = inlined_call_operand.vmem [shape: bf16[5,100,128], index: 1, kind: input, shape index: {}]
  %s2 = inlined_call_operand.vmem [shape: f32[1,128], index: 2, kind: input, shape index: {}]
  %s3 = inlined_call_operand.vmem [shape: f32[32,1], index: 3, kind: input, shape index: {}]
  %s4 = inlined_call_operand.vmem [shape: bf16[2,4,96,128], index: 4, kind: output, shape index: {}]
  %s5 = sld [smem:[#allocation0]]
  $region61: #{upsample_forward.5} parent=0
    _
  %s7 = ssub.s32 1, %s5
  %s8 = scalar_select 0, %s7, %s5
  loop: start=0, step=1, limit=42
  $region2: #{upsample_forward.5} parent=0 // loop_pre_header
    _
  $region3: #{upsample_forward.5} parent=0 // loop_header
    %s10 = sphi 0, %s14
    %p11 = scmp.ge.s32.totalorder %s10, 42
    %s17 = sphi 0, %s36
    %s18 = sphi 0, %s32
    %s19 = sphi 0, %s28
    %s20 = sphi 0, %s17
    %s21 = sphi 0, %s18
    %s22 = sphi 0, %s19
    %s23 = sphi 0, %s20
    %s24 = sphi 0, %s21
    %s25 = sphi 0, %s22
    %s53 = sphi 0, %s55
    %s56 = sphi 0, %s53
    %s57 = sphi 0, %s56
    %s73 = sphi 0, %s57
    %s77 = sphi 0, %s77
    %s79 = sphi 0, %s77
    %s80 = sphi 0, %s79
    %s94 = sphi 0, %s80
    %s98 = sphi 0, %s98
    %s100 = sphi 0, %s98
    %s101 = sphi 0, %s100
    %s115 = sphi 0, %s101
    %s119 = sphi 0, %s119
    %s121 = sphi 0, %s119
    %s122 = sphi 0, %s121
    %s136 = sphi 0, %s122
    %s144 = sphi 0, %s146
    %s147 = sphi 0, %s144
    %s148 = sphi 0, %s147
    %s164 = sphi 0, %s148
  $region4: #{upsample_forward.5} parent=0 // loop_header_branch
    %13 = sbr.rel (%p11) target = $region8
  $region5: #{upsample_forward.5} parent=0 // loop_body
    %s15 = ssub.s32 %s10, 1
    %s16 = ssub.s32 %s10, 2
    %s26 = sadd.s32 1, %s19
    %p27 = scmp.ge.s32.totalorder %s26, 5
    %s28 = scalar_select %p27, 0, %s26
    %s29 = sadd.s32 1, %s18
    %s30 = scalar_select %p27, %s29, %s18
    %p31 = scmp.ge.s32.totalorder %s30, 4
    %s32 = scalar_select %p31, 0, %s30
    %s33 = sadd.s32 1, %s17
    %s34 = scalar_select %p31, %s33, %s17
    %p35 = scmp.ge.s32.totalorder %s34, 2
    %s36 = scalar_select %p35, 0, %s34
    %s37 = sadd.s32 %s18, %s19
    %s38 = ssub.s32 %s37, 2
    %p39 = scmp.gt.s32.totalorder %s38, 0
    %s40 = scalar_select %p39, %s38, 0
    %p41 = scmp.lt.s32.totalorder %s40, 3
    %s42 = scalar_select %p41, %s40, 3
    %s43 = sadd.s32 %s32, %s28
    %s44 = ssub.s32 %s43, 2
    %p45 = scmp.gt.s32.totalorder %s44, 0
    %s46 = scalar_select %p45, %s44, 0
    %p47 = scmp.lt.s32.totalorder %s46, 3
    %s48 = scalar_select %p47, %s46, 3
    %s49 = ssub.s32 %s17, %s36
    %s50 = ssub.s32 %s42, %s48
    %s51 = sor.u32 %s49, %s50
    %p52 = scmp.eq.s32.totalorder %s51, 0
    %s54 = sadd.s32 %s53, 1
    %s55 = scalar_select %p52, %s53, %s54
    %p58 = pneg %p52
    %p59 = scmp.eq.s32.totalorder %s10, 39
    %p60 = por %p58, %p59
    %p61 = scmp.ne.s32.totalorder %s53, %s56
    %p62 = scmp.eq.s32.totalorder %s10, 0
    %p63 = por %p61, %p62
    %p64 = scmp.ne.s32.totalorder %s53, %s56
    %p65 = scmp.eq.s32.totalorder %s15, 39
    %p66 = por %p64, %p65
    %p67 = scmp.ne.s32.totalorder %s56, %s57
    %p68 = scmp.eq.s32.totalorder %s15, 0
    %p69 = por %p67, %p68
    %p70 = scmp.ne.s32.totalorder %s56, %s57
    %p71 = scmp.eq.s32.totalorder %s16, 39
    %p72 = por %p70, %p71
    %p74 = scmp.ne.s32.totalorder %s57, %s73
    %p75 = scmp.eq.s32.totalorder %s16, 0
    %p76 = por %p74, %p75
    %s78 = sadd.s32 %s77, 1
    %p81 = scmp.eq.s32.totalorder %s10, 39
    %p82 = scmp.ne.s32.totalorder %s77, %s79
    %p83 = scmp.eq.s32.totalorder %s10, 0
    %p84 = por %p82, %p83
    %p85 = scmp.ne.s32.totalorder %s77, %s79
    %p86 = scmp.eq.s32.totalorder %s15, 39
    %p87 = por %p85, %p86
    %p88 = scmp.ne.s32.totalorder %s79, %s80
    %p89 = scmp.eq.s32.totalorder %s15, 0
    %p90 = por %p88, %p89
    %p91 = scmp.ne.s32.totalorder %s79, %s80
    %p92 = scmp.eq.s32.totalorder %s16, 39
    %p93 = por %p91, %p92
    %p95 = scmp.ne.s32.totalorder %s80, %s94
    %p96 = scmp.eq.s32.totalorder %s16, 0
    %p97 = por %p95, %p96
    %s99 = sadd.s32 %s98, 1
    %p102 = scmp.eq.s32.totalorder %s10, 39
    %p103 = scmp.ne.s32.totalorder %s98, %s100
    %p104 = scmp.eq.s32.totalorder %s10, 0
    %p105 = por %p103, %p104
    %p106 = scmp.ne.s32.totalorder %s98, %s100
    %p107 = scmp.eq.s32.totalorder %s15, 39
    %p108 = por %p106, %p107
    %p109 = scmp.ne.s32.totalorder %s100, %s101
    %p110 = scmp.eq.s32.totalorder %s15, 0
    %p111 = por %p109, %p110
    %p112 = scmp.ne.s32.totalorder %s100, %s101
    %p113 = scmp.eq.s32.totalorder %s16, 39
    %p114 = por %p112, %p113
    %p116 = scmp.ne.s32.totalorder %s101, %s115
    %p117 = scmp.eq.s32.totalorder %s16, 0
    %p118 = por %p116, %p117
    %s120 = sadd.s32 %s119, 1
    %p123 = scmp.eq.s32.totalorder %s10, 39
    %p124 = scmp.ne.s32.totalorder %s119, %s121
    %p125 = scmp.eq.s32.totalorder %s10, 0
    %p126 = por %p124, %p125
    %p127 = scmp.ne.s32.totalorder %s119, %s121
    %p128 = scmp.eq.s32.totalorder %s15, 39
    %p129 = por %p127, %p128
    %p130 = scmp.ne.s32.totalorder %s121, %s122
    %p131 = scmp.eq.s32.totalorder %s15, 0
    %p132 = por %p130, %p131
    %p133 = scmp.ne.s32.totalorder %s121, %s122
    %p134 = scmp.eq.s32.totalorder %s16, 39
    %p135 = por %p133, %p134
    %p137 = scmp.ne.s32.totalorder %s122, %s136
    %p138 = scmp.eq.s32.totalorder %s16, 0
    %p139 = por %p137, %p138
    %s140 = ssub.s32 %s17, %s36
    %s141 = ssub.s32 %s18, %s32
    %s142 = sor.u32 %s140, %s141
    %p143 = scmp.eq.s32.totalorder %s142, 0
    %s145 = sadd.s32 %s144, 1
    %s146 = scalar_select %p143, %s144, %s145
    %p149 = pneg %p143
    %p150 = scmp.eq.s32.totalorder %s10, 39
    %p151 = por %p149, %p150
    %p152 = scmp.ne.s32.totalorder %s144, %s147
    %p153 = scmp.eq.s32.totalorder %s10, 0
    %p154 = por %p152, %p153
    %p155 = scmp.ne.s32.totalorder %s144, %s147
    %p156 = scmp.eq.s32.totalorder %s15, 39
    %p157 = por %p155, %p156
    %p158 = scmp.ne.s32.totalorder %s147, %s148
    %p159 = scmp.eq.s32.totalorder %s15, 0
    %p160 = por %p158, %p159
    %p161 = scmp.ne.s32.totalorder %s147, %s148
    %p162 = scmp.eq.s32.totalorder %s16, 39
    %p163 = por %p161, %p162
    %p165 = scmp.ne.s32.totalorder %s148, %s164
    %p166 = scmp.eq.s32.totalorder %s16, 0
    %p167 = por %p165, %p166
    %p168 = scmp.le.s32.totalorder 1, %s10
    %p169 = scmp.lt.s32.totalorder %s10, 41
    %p170 = pnand %p168, %p169
    %p171 = pneg %p170
    // Predicated region
    $region9: #{upsample_forward.5} parent=5 // pred_check
      _
    $region10: #{upsample_forward.5} parent=5 // pred_check_branch
      %173 = sbr.rel (%p170) target = $region12
    $region11: #{upsample_forward.5} parent=5 // pred_region
      %s174 = ssub.s32 %s10, 1
      // Predicated region
      $region13: #{upsample_forward.5} parent=11 // pred_check
        %p175 = pneg %p90
      $region14: #{upsample_forward.5} parent=11 // pred_check_branch
        %177 = sbr.rel (%p175) target = $region16
      $region15: #{upsample_forward.5} parent=11 // pred_region
        _
      $region16: #{upsample_forward.5} parent=11 // pred_fallthru
        _
      // Predicated region
      $region17: #{upsample_forward.5} parent=11 // pred_check
        %p178 = pneg %p111
      $region18: #{upsample_forward.5} parent=11 // pred_check_branch
        %180 = sbr.rel (%p178) target = $region20
      $region19: #{upsample_forward.5} parent=11 // pred_region
        _
      $region20: #{upsample_forward.5} parent=11 // pred_fallthru
        _
      // Predicated region
      $region21: #{upsample_forward.5} parent=11 // pred_check
        %p181 = pneg %p132
      $region22: #{upsample_forward.5} parent=11 // pred_check_branch
        %183 = sbr.rel (%p181) target = $region24
      $region23: #{upsample_forward.5} parent=11 // pred_region
        _
      $region24: #{upsample_forward.5} parent=11 // pred_fallthru
        _
    $region12: #{upsample_forward.5} parent=5 // pred_fallthru
      _
    %p184 = scmp.lt.s32.totalorder %s10, 40
    // Predicated region
    $region25: #{upsample_forward.5} parent=5 // pred_check
      %p185 = pneg %p184
    $region26: #{upsample_forward.5} parent=5 // pred_check_branch
      %187 = sbr.rel (%p185) target = $region28
    $region27: #{upsample_forward.5} parent=5 // pred_region
      // Predicated region
      $region29: #{upsample_forward.5} parent=27 // pred_check
        %p188 = pneg %p63
      $region30: #{upsample_forward.5} parent=27 // pred_check_branch
        %190 = sbr.rel (%p188) target = $region32
      $region31: #{upsample_forward.5} parent=27 // pred_region
        %s191 = sadd.s32 %s18, %s19
        %s192 = ssub.s32 %s191, 2
        %p193 = scmp.gt.s32.totalorder %s192, 0
        %s194 = scalar_select %p193, %s192, 0
        %p195 = scmp.lt.s32.totalorder %s194, 3
        %s196 = scalar_select %p195, %s194, 3
        %p197 = scmp.lt.s32.totalorder %s17, 1
        %s198 = scalar_select %p197, %s17, 1
        %p199 = scmp.lt.s32.totalorder %s196, 3
        %s200 = scalar_select %p199, %s196, 3
        %s201 = smul.addr %s200, 12
        %s202 = smul.addr %s198, 48
        %s203 = sadd.s32 %s201, %s202
        %s204 = smul.addr %s203, 4
        %s205 = scalar_lea.vmem %s0, %s204
        %s206 = sadd.s32 %s18, %s19
        %s207 = ssub.s32 %s206, 2
        %p208 = scmp.gt.s32.totalorder %s207, 0
        %s209 = scalar_select %p208, %s207, 0
        %p210 = scmp.lt.s32.totalorder %s209, 3
        %s211 = scalar_select %p210, %s209, 3
      $region32: #{upsample_forward.5} parent=27 // pred_fallthru
        _
    $region28: #{upsample_forward.5} parent=5 // pred_fallthru
      _
    %p212 = scmp.le.s32.totalorder 1, %s10
    %p213 = scmp.lt.s32.totalorder %s10, 41
    %p214 = pnand %p212, %p213
    %p215 = pneg %p214
    // Predicated region
    $region33: #{upsample_forward.5} parent=5 // pred_check
      _
    $region34: #{upsample_forward.5} parent=5 // pred_check_branch
      %217 = sbr.rel (%p214) target = $region36
    $region35: #{upsample_forward.5} parent=5 // pred_region
      %s218 = ssub.s32 %s10, 1
      %s219 = sadd.s32 %s21, %s22
      %s220 = ssub.s32 %s219, 2
      %p221 = scmp.gt.s32.totalorder %s220, 0
      %s222 = scalar_select %p221, %s220, 0
      %p223 = scmp.lt.s32.totalorder %s222, 3
      %s224 = scalar_select %p223, %s222, 3
      %p225 = scmp.lt.s32.totalorder %s20, 1
      %s226 = scalar_select %p225, %s20, 1
      %p227 = scmp.lt.s32.totalorder %s224, 3
      %s228 = scalar_select %p227, %s224, 3
      %s229 = smul.addr %s228, 12
      %s230 = smul.addr %s226, 48
      %s231 = sadd.s32 %s229, %s230
      %s232 = smul.addr %s231, 4
      %s233 = scalar_lea.vmem %s0, %s232
      %p234 = pneg %p69
      %p235 = pneg %p66
      %p236 = pneg %p90
      %p237 = pneg %p87
      %p238 = pneg %p111
      %p239 = pneg %p108
      %p240 = pneg %p132
      %p241 = pneg %p129
      %p242 = pneg %p160
      %p243 = pneg %p157
      %p244 = scmp.lt.s32.totalorder %s20, 1
      %s245 = scalar_select %p244, %s20, 1
      %p246 = scmp.lt.s32.totalorder %s21, 3
      %s247 = scalar_select %p246, %s21, 3
      %s248 = smul.addr %s247, 12
      %s249 = smul.addr %s245, 48
      %s250 = sadd.s32 %s248, %s249
      %s251 = smul.addr %s250, 4
      %s252 = scalar_lea.vmem %s4, %s251
      %s253 = sadd.s32 %s21, %s22
      %s254 = ssub.s32 %s253, 2
      %p255 = scmp.gt.s32.totalorder %s254, 0
      %s256 = scalar_select %p255, %s254, 0
      %p257 = scmp.lt.s32.totalorder %s256, 3
      %s258 = scalar_select %p257, %s256, 3
      %p259 = scmp.lt.s32.totalorder %s20, 1
      %s260 = scalar_select %p259, %s20, 1
      %p261 = scmp.lt.s32.totalorder %s258, 3
      %s262 = scalar_select %p261, %s258, 3
      %s263 = smul.addr %s262, 12
      %s264 = smul.addr %s260, 48
      %s265 = sadd.s32 %s263, %s264
      %s266 = smul.addr %s265, 4
      %s267 = scalar_lea.vmem %s0, %s266
      %s268 = sadd.s32 %s21, %s22
      %s269 = ssub.s32 %s268, 2
      %p270 = scmp.gt.s32.totalorder %s269, 0
      %s271 = scalar_select %p270, %s269, 0
      %p272 = scmp.lt.s32.totalorder %s271, 3
      %s273 = scalar_select %p272, %s271, 3
      %p274 = scmp.lt.s32.totalorder %s20, 1
      %s275 = scalar_select %p274, %s20, 1
      %p276 = scmp.lt.s32.totalorder %s21, 3
      %s277 = scalar_select %p276, %s21, 3
      %s278 = smul.addr %s277, 12
      %s279 = smul.addr %s275, 48
      %s280 = sadd.s32 %s278, %s279
      %s281 = smul.addr %s280, 4
      %s282 = scalar_lea.vmem %s4, %s281
      %p284 = scmp.eq.s32.totalorder %s22, 0
      // Predicated region
      $region37: #{upsample_forward.5} parent=35 // pred_check
        %p285 = pneg %p284
      $region38: #{upsample_forward.5} parent=35 // pred_check_branch
        %287 = sbr.rel (%p285) target = $region40
      $region39: #{upsample_forward.5} parent=35 // pred_region
        %288 = vst [vmem:[#allocation2] sm:$0xff] 0.0
        %289 = vst [vmem:[#allocation2 + $0x8] sm:$0xff] 0.0
        %290 = vst [vmem:[#allocation2 + $0x10] sm:$0xff] 0.0
        %291 = vst [vmem:[#allocation2 + $0x18] sm:$0xff] 0.0
      $region40: #{upsample_forward.5} parent=35 // pred_fallthru
        _
      %s292 = sadd.s32 %s21, %s22
      %s293 = ssub.s32 %s292, 2
      %p294 = scmp.ge.s32.totalorder %s293, 0
      %p295 = scmp.lt.s32.totalorder %s293, 4
      %p296 = pnand %p294, %p295
      %p297 = pneg %p296
      // Predicated region
      $region41: #{upsample_forward.5} parent=35 // pred_check
        _
      $region42: #{upsample_forward.5} parent=35 // pred_check_branch
        %299 = sbr.rel (%p296) target = $region44
      $region43: #{upsample_forward.5} parent=35 // pred_region
        %v300 = vld [vmem:[%s267 + $0x4] sm:$0xf]
        %v301 = vld [vmem:[%s267 + $0x8] sm:$0xf]
        %v302 = vld [vmem:[%s267 + $0xc] sm:$0xf]
        %v303 = vld [vmem:[%s267 + $0x10] sm:$0xf]
        %v304 = vld [vmem:[%s267 + $0x14] sm:$0xf]
        %v305 = vld [vmem:[%s267 + $0x18] sm:$0xf]
        %v306 = vld [vmem:[%s267 + $0x1c] sm:$0xf]
        %v307 = vld [vmem:[%s267 + $0x20] sm:$0xf]
        %v308 = vld [vmem:[%s267 + $0x24] sm:$0xf]
        %v309 = vld [vmem:[%s267 + $0x28] sm:$0xf]
        %s310 = smul.u32 %s22, 13
        %s311 = smul.addr %s310, 4
        %s312 = scalar_lea.vmem %s1, %s311
        %v313 = vld [vmem:[%s312] sm:$0xf]
        %v314 = vld [vmem:[%s312 + $0x4] sm:$0xf]
        %v315 = vld [vmem:[%s312 + $0x8] sm:$0xf]
        %v316 = vld [vmem:[%s312 + $0xc] sm:$0xf]
        %v317 = vld [vmem:[%s312 + $0x10] sm:$0xf]
        %v318 = vld [vmem:[%s312 + $0x14] sm:$0xf]
        %v319 = vld [vmem:[%s312 + $0x18] sm:$0xf]
        %v320 = vld [vmem:[%s312 + $0x1c] sm:$0xf]
        %v321 = vld [vmem:[%s312 + $0x20] sm:$0xf]
        %v322 = vld [vmem:[%s312 + $0x24] sm:$0xf]
        %v323 = vld [vmem:[%s312 + $0x28] sm:$0xf]
        %v324 = vld [vmem:[%s312 + $0x2c] sm:$0xf]
        %v325 = vld [vmem:[%s312 + $0x30] sm:$0x3]
        %v331 = vunpack.c.l.b16 %v300
        %v332 = vunpack.c.l.b16 %v301
        %v333 = vunpack.c.l.b16 %v302
        %v334 = vunpack.c.l.b16 %v303
        %v335 = vunpack.c.l.b16 %v304
        %v336 = vpack.c.b16 %v332, %v331
        %v337 = vpack.c.b16 %v334, %v333
        %v338 = vpack.c.b16 %v335, %v335
        %vm339 = vsmask.f32 7424
        %v341 = vshrl.u32 %v336, 16
        %v343 = vshll.u32 %v336, 16
        %v345 = vrot.slane %v343, 1
        %v346 = vor.u32 %v341, %v345
        %v348 = vshll.u32 %v337, 16
        %v350 = vrot.slane %v348, 1
        %v351 = vsel %vm339, %v346, %v350
        %v352 = vshrl.u32 %v337, 16
        %v354 = vor.u32 %v352, %v350
        %v356 = vshll.u32 %v338, 16
        %v358 = vrot.slane %v356, 1
        %v359 = vsel %vm339, %v354, %v358
        %v360 = vshrl.u32 %v338, 16
        %v362 = vor.u32 %v360, %v358
        %363 = vrot.lane.b32.xlu0 %v351, 4
        %v364 = vpop.permute.xlu0 %363
        %365 = vrot.lane.b32.xlu0 %v359, 4
        %v366 = vpop.permute.xlu0 %365
        %367 = vrot.lane.b32.xlu0 %v362, 4
        %v368 = vpop.permute.xlu0 %367
        %v369 = vpack.c.b16 %v333, %v332
        %v370 = vpack.c.b16 %v335, %v334
        %vm371 = vcmask 1042432
        %v372 = vrot.slane %v369, 5
        %v373 = vrot.slane %v370, 5
        %v374 = vsel %vm371, %v372, %v373
        %375 = vrot.lane.b32.xlu0 %v372, 8
        %v376 = vpop.permute.xlu0 %375
        %377 = vrot.lane.b32.xlu0 %v374, 8
        %v378 = vpop.permute.xlu0 %377
        %379 = vrot.lane.b32.xlu0 %v373, 8
        %v380 = vpop.permute.xlu0 %379
        %v382 = vunpack.c.l.b16 %v305
        %v383 = vpack.c.b16 %v382, %v382
        %vm384 = vsmask.f32 2304
        %v386 = vshrl.u32 %v369, 16
        %v388 = vrot.slane %v386, 5
        %v389 = vshll.u32 %v369, 16
        %v391 = vrot.slane %v389, 6
        %v392 = vor.u32 %v388, %v391
        %v394 = vshrl.u32 %v370, 16
        %v396 = vrot.slane %v394, 5
        %v397 = vshll.u32 %v370, 16
        %v399 = vrot.slane %v397, 6
        %v400 = vor.u32 %v396, %v399
        %v401 = vsel %vm384, %v392, %v400
        %v403 = vshll.u32 %v383, 16
        %v405 = vrot.slane %v403, 6
        %v406 = vsel %vm384, %v400, %v405
        %407 = vrot.lane.b32.xlu0 %v392, 12
        %v408 = vpop.permute.xlu0 %407
        %409 = vrot.lane.b32.xlu0 %v401, 12
        %v410 = vpop.permute.xlu0 %409
        %411 = vrot.lane.b32.xlu0 %v406, 12
        %v412 = vpop.permute.xlu0 %411
        %vm413 = vcmask 1041408
        %v414 = vrot.slane %v369, 6
        %v415 = vrot.slane %v370, 6
        %v416 = vsel %vm413, %v414, %v415
        %v417 = vrot.slane %v383, 6
        %v418 = vsel %vm413, %v415, %v417
        %419 = vrot.lane.b32.xlu0 %v414, 16
        %v420 = vpop.permute.xlu0 %419
        %421 = vrot.lane.b32.xlu0 %v416, 16
        %v422 = vpop.permute.xlu0 %421
        %423 = vrot.lane.b32.xlu0 %v418, 16
        %v424 = vpop.permute.xlu0 %423
        %425 = vrot.lane.b32.xlu0 %v369, 20
        %v426 = vpop.permute.xlu0 %425
        %427 = vrot.lane.b32.xlu0 %v370, 20
        %v428 = vpop.permute.xlu0 %427
        %429 = vrot.lane.b32.xlu0 %v383, 20
        %v430 = vpop.permute.xlu0 %429
        %v431 = vrot.slane %v389, 1
        %v432 = vor.u32 %v386, %v431
        %v433 = vrot.slane %v397, 1
        %v434 = vsel %vm339, %v432, %v433
        %v435 = vor.u32 %v394, %v433
        %v436 = vrot.slane %v403, 1
        %v437 = vsel %vm339, %v435, %v436
        %v438 = vshrl.u32 %v383, 16
        %v440 = vor.u32 %v438, %v436
        %441 = vrot.lane.b32.xlu0 %v434, 24
        %v442 = vpop.permute.xlu0 %441
        %443 = vrot.lane.b32.xlu0 %v437, 24
        %v444 = vpop.permute.xlu0 %443
        %445 = vrot.lane.b32.xlu0 %v440, 24
        %v446 = vpop.permute.xlu0 %445
        %v447 = vpack.c.b16 %v382, %v335
        %v448 = vrot.slane %v337, 5
        %v449 = vrot.slane %v447, 5
        %v450 = vsel %vm371, %v448, %v449
        %451 = vrot.lane.b32.xlu0 %v448, 28
        %v452 = vpop.permute.xlu0 %451
        %453 = vrot.lane.b32.xlu0 %v450, 28
        %v454 = vpop.permute.xlu0 %453
        %455 = vrot.lane.b32.xlu0 %v449, 28
        %v456 = vpop.permute.xlu0 %455
        %v458 = vunpack.c.l.b16 %v306
        %v459 = vpack.c.b16 %v458, %v458
        %v460 = vrot.slane %v352, 5
        %v461 = vrot.slane %v348, 6
        %v462 = vor.u32 %v460, %v461
        %v464 = vshrl.u32 %v447, 16
        %v466 = vrot.slane %v464, 5
        %v467 = vshll.u32 %v447, 16
        %v469 = vrot.slane %v467, 6
        %v470 = vor.u32 %v466, %v469
        %v471 = vsel %vm384, %v462, %v470
        %v473 = vshll.u32 %v459, 16
        %v475 = vrot.slane %v473, 6
        %v476 = vsel %vm384, %v470, %v475
        %477 = vrot.lane.b32.xlu0 %v462, 32
        %v478 = vpop.permute.xlu0 %477
        %479 = vrot.lane.b32.xlu0 %v471, 32
        %v480 = vpop.permute.xlu0 %479
        %481 = vrot.lane.b32.xlu0 %v476, 32
        %v482 = vpop.permute.xlu0 %481
        %v483 = vrot.slane %v337, 6
        %v484 = vrot.slane %v447, 6
        %v485 = vsel %vm413, %v483, %v484
        %v486 = vrot.slane %v459, 6
        %v487 = vsel %vm413, %v484, %v486
        %488 = vrot.lane.b32.xlu0 %v483, 36
        %v489 = vpop.permute.xlu0 %488
        %490 = vrot.lane.b32.xlu0 %v485, 36
        %v491 = vpop.permute.xlu0 %490
        %492 = vrot.lane.b32.xlu0 %v487, 36
        %v493 = vpop.permute.xlu0 %492
        %494 = vrot.lane.b32.xlu0 %v337, 40
        %v495 = vpop.permute.xlu0 %494
        %496 = vrot.lane.b32.xlu0 %v447, 40
        %v497 = vpop.permute.xlu0 %496
        %498 = vrot.lane.b32.xlu0 %v459, 40
        %v499 = vpop.permute.xlu0 %498
        %v500 = vrot.slane %v467, 1
        %v501 = vsel %vm339, %v354, %v500
        %v502 = vor.u32 %v464, %v500
        %v503 = vrot.slane %v473, 1
        %v504 = vsel %vm339, %v502, %v503
        %v505 = vshrl.u32 %v459, 16
        %v507 = vor.u32 %v505, %v503
        %508 = vrot.lane.b32.xlu0 %v501, 44
        %v509 = vpop.permute.xlu0 %508
        %510 = vrot.lane.b32.xlu0 %v504, 44
        %v511 = vpop.permute.xlu0 %510
        %512 = vrot.lane.b32.xlu0 %v507, 44
        %v513 = vpop.permute.xlu0 %512
        %v514 = vpack.c.b16 %v458, %v382
        %v515 = vrot.slane %v514, 5
        %v516 = vsel %vm371, %v373, %v515
        %517 = vrot.lane.b32.xlu0 %v373, 48
        %v518 = vpop.permute.xlu0 %517
        %519 = vrot.lane.b32.xlu0 %v516, 48
        %v520 = vpop.permute.xlu0 %519
        %521 = vrot.lane.b32.xlu0 %v515, 48
        %v522 = vpop.permute.xlu0 %521
        %v524 = vunpack.c.l.b16 %v307
        %v525 = vpack.c.b16 %v524, %v524
        %v527 = vshrl.u32 %v514, 16
        %v529 = vrot.slane %v527, 5
        %v530 = vshll.u32 %v514, 16
        %v532 = vrot.slane %v530, 6
        %v533 = vor.u32 %v529, %v532
        %v534 = vsel %vm384, %v400, %v533
        %v536 = vshll.u32 %v525, 16
        %v538 = vrot.slane %v536, 6
        %v539 = vsel %vm384, %v533, %v538
        %540 = vrot.lane.b32.xlu0 %v400, 52
        %v541 = vpop.permute.xlu0 %540
        %542 = vrot.lane.b32.xlu0 %v534, 52
        %v543 = vpop.permute.xlu0 %542
        %544 = vrot.lane.b32.xlu0 %v539, 52
        %v545 = vpop.permute.xlu0 %544
        %v546 = vrot.slane %v514, 6
        %v547 = vsel %vm413, %v415, %v546
        %v548 = vrot.slane %v525, 6
        %v549 = vsel %vm413, %v546, %v548
        %550 = vrot.lane.b32.xlu0 %v415, 56
        %v551 = vpop.permute.xlu0 %550
        %552 = vrot.lane.b32.xlu0 %v547, 56
        %v553 = vpop.permute.xlu0 %552
        %554 = vrot.lane.b32.xlu0 %v549, 56
        %v555 = vpop.permute.xlu0 %554
        %556 = vrot.lane.b32.xlu0 %v370, 60
        %v557 = vpop.permute.xlu0 %556
        %558 = vrot.lane.b32.xlu0 %v514, 60
        %v559 = vpop.permute.xlu0 %558
        %560 = vrot.lane.b32.xlu0 %v525, 60
        %v561 = vpop.permute.xlu0 %560
        %vm562 = vcmask 31744
        %v564 = vsel %vm562, %v336, %v364
        %v566 = vsel %vm562, %v337, %v366
        %v568 = vsel %vm562, %v338, %v368
        %vm569 = vcmask 64512
        %v571 = vsel %vm569, %v564, %v376
        %v573 = vsel %vm569, %v566, %v378
        %v575 = vsel %vm569, %v568, %v380
        %vm576 = vcmask 97280
        %v578 = vsel %vm576, %v571, %v408
        %v580 = vsel %vm576, %v573, %v410
        %v582 = vsel %vm576, %v575, %v412
        %vm583 = vcmask 130048
        %v585 = vsel %vm583, %v578, %v420
        %v587 = vsel %vm583, %v580, %v422
        %v589 = vsel %vm583, %v582, %v424
        %vm590 = vcmask 162816
        %v592 = vsel %vm590, %v585, %v426
        %v594 = vsel %vm590, %v587, %v428
        %v596 = vsel %vm590, %v589, %v430
        %vm597 = vcmask 195584
        %v599 = vsel %vm597, %v592, %v442
        %v601 = vsel %vm597, %v594, %v444
        %v603 = vsel %vm597, %v596, %v446
        %vm604 = vcmask 228352
        %v606 = vsel %vm604, %v599, %v452
        %v608 = vsel %vm604, %v601, %v454
        %v610 = vsel %vm604, %v603, %v456
        %vm611 = vcmask 261120
        %v613 = vsel %vm611, %v606, %v478
        %v615 = vsel %vm611, %v608, %v480
        %v617 = vsel %vm611, %v610, %v482
        %vm618 = vcmask 293888
        %v620 = vsel %vm618, %v613, %v489
        %v622 = vsel %vm618, %v615, %v491
        %v624 = vsel %vm618, %v617, %v493
        %vm625 = vcmask 326656
        %v627 = vsel %vm625, %v620, %v495
        %v629 = vsel %vm625, %v622, %v497
        %v631 = vsel %vm625, %v624, %v499
        %vm632 = vcmask 359424
        %v634 = vsel %vm632, %v627, %v509
        %v636 = vsel %vm632, %v629, %v511
        %v638 = vsel %vm632, %v631, %v513
        %vm639 = vcmask 392192
        %v641 = vsel %vm639, %v634, %v518
        %v643 = vsel %vm639, %v636, %v520
        %v645 = vsel %vm639, %v638, %v522
        %vm646 = vcmask 424960
        %v648 = vsel %vm646, %v641, %v541
        %v650 = vsel %vm646, %v643, %v543
        %v652 = vsel %vm646, %v645, %v545
        %vm653 = vcmask 457728
        %v655 = vsel %vm653, %v648, %v551
        %v657 = vsel %vm653, %v650, %v553
        %v659 = vsel %vm653, %v652, %v555
        %vm660 = vcmask 490496
        %v662 = vsel %vm660, %v655, %v557
        %v664 = vsel %vm660, %v657, %v559
        %v666 = vsel %vm660, %v659, %v561
        %v667 = vpack.c.b16 %v524, %v458
        %vm668 = vsmask.f32 3328
        %v669 = vrot.slane %v464, 4
        %v670 = vrot.slane %v467, 5
        %v671 = vor.u32 %v669, %v670
        %v673 = vshrl.u32 %v667, 16
        %v675 = vrot.slane %v673, 4
        %v676 = vshll.u32 %v667, 16
        %v678 = vrot.slane %v676, 5
        %v679 = vor.u32 %v675, %v678
        %v680 = vsel %vm668, %v671, %v679
        %681 = vrot.lane.b32.xlu0 %v671, 4
        %v682 = vpop.permute.xlu0 %681
        %683 = vrot.lane.b32.xlu0 %v680, 4
        %v684 = vpop.permute.xlu0 %683
        %685 = vrot.lane.b32.xlu0 %v679, 4
        %v686 = vpop.permute.xlu0 %685
        %v688 = vunpack.c.l.b16 %v308
        %v689 = vpack.c.b16 %v688, %v688
        %v690 = vrot.slane %v667, 5
        %v691 = vsel %vm371, %v449, %v690
        %v692 = vrot.slane %v689, 5
        %v693 = vsel %vm371, %v690, %v692
        %694 = vrot.lane.b32.xlu0 %v449, 8
        %v695 = vpop.permute.xlu0 %694
        %696 = vrot.lane.b32.xlu0 %v691, 8
        %v697 = vpop.permute.xlu0 %696
        %698 = vrot.lane.b32.xlu0 %v693, 8
        %v699 = vpop.permute.xlu0 %698
        %v700 = vrot.slane %v673, 5
        %v701 = vrot.slane %v676, 6
        %v702 = vor.u32 %v700, %v701
        %v703 = vsel %vm384, %v470, %v702
        %v705 = vshrl.u32 %v689, 16
        %v707 = vrot.slane %v705, 5
        %v708 = vshll.u32 %v689, 16
        %v710 = vrot.slane %v708, 6
        %v711 = vor.u32 %v707, %v710
        %v712 = vsel %vm384, %v702, %v711
        %713 = vrot.lane.b32.xlu0 %v470, 12
        %v714 = vpop.permute.xlu0 %713
        %715 = vrot.lane.b32.xlu0 %v703, 12
        %v716 = vpop.permute.xlu0 %715
        %717 = vrot.lane.b32.xlu0 %v712, 12
        %v718 = vpop.permute.xlu0 %717
        %vm719 = vsmask.f32 256
        %v720 = vrot.slane %v464, 7
        %v721 = vor.u32 %v720, %v467
        %v722 = vrot.slane %v673, 7
        %v723 = vor.u32 %v722, %v676
        %v724 = vsel %vm719, %v720, %v723
        %v725 = vrot.slane %v705, 7
        %v726 = vor.u32 %v725, %v708
        %v727 = vsel %vm719, %v722, %v726
        %728 = vrot.lane.b32.xlu0 %v721, 16
        %v729 = vpop.permute.xlu0 %728
        %730 = vrot.lane.b32.xlu0 %v724, 16
        %v731 = vpop.permute.xlu0 %730
        %732 = vrot.lane.b32.xlu0 %v727, 16
        %v733 = vpop.permute.xlu0 %732
        %734 = vrot.lane.b32.xlu0 %v447, 20
        %v735 = vpop.permute.xlu0 %734
        %736 = vrot.lane.b32.xlu0 %v667, 20
        %v737 = vpop.permute.xlu0 %736
        %738 = vrot.lane.b32.xlu0 %v689, 20
        %v739 = vpop.permute.xlu0 %738
        %v740 = vpack.c.b16 %v688, %v524
        %v741 = vrot.slane %v527, 4
        %v742 = vrot.slane %v530, 5
        %v743 = vor.u32 %v741, %v742
        %v745 = vshrl.u32 %v740, 16
        %v747 = vrot.slane %v745, 4
        %v748 = vshll.u32 %v740, 16
        %v750 = vrot.slane %v748, 5
        %v751 = vor.u32 %v747, %v750
        %v752 = vsel %vm668, %v743, %v751
        %753 = vrot.lane.b32.xlu0 %v743, 24
        %v754 = vpop.permute.xlu0 %753
        %755 = vrot.lane.b32.xlu0 %v752, 24
        %v756 = vpop.permute.xlu0 %755
        %757 = vrot.lane.b32.xlu0 %v751, 24
        %v758 = vpop.permute.xlu0 %757
        %v760 = vunpack.c.l.b16 %v309
        %v761 = vpack.c.b16 %v760, %v760
        %v762 = vrot.slane %v740, 5
        %v763 = vsel %vm371, %v515, %v762
        %v764 = vrot.slane %v761, 5
        %v765 = vsel %vm371, %v762, %v764
        %766 = vrot.lane.b32.xlu0 %v515, 28
        %v767 = vpop.permute.xlu0 %766
        %768 = vrot.lane.b32.xlu0 %v763, 28
        %v769 = vpop.permute.xlu0 %768
        %770 = vrot.lane.b32.xlu0 %v765, 28
        %v771 = vpop.permute.xlu0 %770
        %v772 = vrot.slane %v745, 5
        %v773 = vrot.slane %v748, 6
        %v774 = vor.u32 %v772, %v773
        %v775 = vsel %vm384, %v533, %v774
        %v777 = vshrl.u32 %v761, 16
        %v779 = vrot.slane %v777, 5
        %v780 = vshll.u32 %v761, 16
        %v782 = vrot.slane %v780, 6
        %v783 = vor.u32 %v779, %v782
        %v784 = vsel %vm384, %v774, %v783
        %785 = vrot.lane.b32.xlu0 %v533, 32
        %v786 = vpop.permute.xlu0 %785
        %787 = vrot.lane.b32.xlu0 %v775, 32
        %v788 = vpop.permute.xlu0 %787
        %789 = vrot.lane.b32.xlu0 %v784, 32
        %v790 = vpop.permute.xlu0 %789
        %v792 = vsel %vm562, %v370, %v682
        %v794 = vsel %vm562, %v514, %v684
        %v796 = vsel %vm562, %v525, %v686
        %v798 = vsel %vm569, %v792, %v695
        %v800 = vsel %vm569, %v794, %v697
        %v802 = vsel %vm569, %v796, %v699
        %v804 = vsel %vm576, %v798, %v714
        %v806 = vsel %vm576, %v800, %v716
        %v808 = vsel %vm576, %v802, %v718
        %v810 = vsel %vm583, %v804, %v729
        %v812 = vsel %vm583, %v806, %v731
        %v814 = vsel %vm583, %v808, %v733
        %v816 = vsel %vm590, %v810, %v735
        %v818 = vsel %vm590, %v812, %v737
        %v820 = vsel %vm590, %v814, %v739
        %v822 = vsel %vm597, %v816, %v754
        %v824 = vsel %vm597, %v818, %v756
        %v826 = vsel %vm597, %v820, %v758
        %v828 = vsel %vm604, %v822, %v767
        %v830 = vsel %vm604, %v824, %v769
        %v832 = vsel %vm604, %v826, %v771
        %v834 = vsel %vm611, %v828, %v786
        %v836 = vsel %vm611, %v830, %v788
        %v838 = vsel %vm611, %v832, %v790
        %v839 = vshrl.u32 %v834, 16
        %v841 = vshll.u32 %v834, 16
        %v843 = vrot.slane %v841, 1
        %v844 = vor.u32 %v839, %v843
        %v845 = vshll.u32 %v836, 16
        %v847 = vrot.slane %v845, 1
        %v848 = vsel %vm339, %v844, %v847
        %v849 = vshrl.u32 %v836, 16
        %v851 = vor.u32 %v849, %v847
        %v852 = vshll.u32 %v838, 16
        %v854 = vrot.slane %v852, 1
        %v855 = vsel %vm339, %v851, %v854
        %v856 = vshrl.u32 %v838, 16
        %v858 = vor.u32 %v856, %v854
        %859 = vrot.lane.b32.xlu0 %v848, 64
        %v860 = vpop.permute.xlu0 %859
        %861 = vrot.lane.b32.xlu0 %v855, 64
        %v862 = vpop.permute.xlu0 %861
        %863 = vrot.lane.b32.xlu0 %v858, 64
        %v864 = vpop.permute.xlu0 %863
        %vm865 = vcmask 523264
        %v867 = vsel %vm865, %v662, %v860
        %v869 = vsel %vm865, %v664, %v862
        %v871 = vsel %vm865, %v666, %v864
        %vm875 = vcmask 1044480
        %v876 = vrot.slane %v867, 3
        %v877 = vrot.slane %v869, 3
        %v878 = vsel %vm875, %v876, %v877
        %v879 = vrot.slane %v871, 3
        %v880 = vsel %vm875, %v877, %v879
        %v894 = vunpack.c.l.b16 %v313
        %v895 = vunpack.c.l.b16 %v314
        %v896 = vunpack.c.l.b16 %v315
        %v897 = vunpack.c.l.b16 %v316
        %v898 = vunpack.c.l.b16 %v317
        %v899 = vunpack.c.l.b16 %v318
        %v900 = vunpack.c.l.b16 %v319
        %v901 = vunpack.c.l.b16 %v320
        %v902 = vunpack.c.l.b16 %v321
        %v903 = vunpack.c.l.b16 %v322
        %v904 = vunpack.c.l.b16 %v323
        %v905 = vunpack.c.l.b16 %v324
        %v906 = vunpack.c.l.b16 %v325
        %v907 = vpack.c.b16 %v895, %v894
        %v908 = vpack.c.b16 %v897, %v896
        %v909 = vpack.c.b16 %v899, %v898
        %v910 = vpack.c.b16 %v901, %v900
        %v911 = vpack.c.b16 %v903, %v902
        %v912 = vpack.c.b16 %v905, %v904
        %v913 = vpack.c.b16 %v906, %v906
        %vm920 = vcmask 818176
        %v922 = vsel %vm920, %v878, 0
        %v925 = vsel %vm920, %v880, 0
        %vm927 = vcmask 1041408
        %v929 = vsel %vm927, %v913, 0
        %931 = vmatpush.bf16.msra.mxu0 0
        %932 = vmatpush.bf16.msra.mxu0 %v929
        %933 = vmatpush.bf16.msra.mxu0 %v912
        %934 = vmatpush.bf16.msra.mxu0 %v911
        %935 = vmatpush.bf16.msra.mxu0 %v910
        %936 = vmatpush.bf16.msra.mxu0 %v909
        %937 = vmatpush.bf16.msra.mxu0 %v908
        %938 = vmatpush.bf16.msra.mxu0 %v907
        %939 = vmatmul.bf16.gmra.mxu0 %v922
        %v940 = vpop.f32.mrf.mxu0
        %v941 = vadd.f32 0.0, %v940
        %v942 = vpop.f32.mrf.mxu0
        %v943 = vadd.f32 0.0, %v942
        %944 = vmatmul.bf16.gmra.mxu0 %v925
        %v945 = vpop.f32.mrf.mxu0
        %v946 = vadd.f32 0.0, %v945
        %v947 = vpop.f32.mrf.mxu0
        %v948 = vadd.f32 0.0, %v947
        %949 = vdwg.mxu0
        %v950 = vld [vmem:[#allocation2] sm:$0xff]
        %v951 = vld [vmem:[#allocation2 + $0x8] sm:$0xff]
        %v952 = vld [vmem:[#allocation2 + $0x10] sm:$0xff]
        %v953 = vld [vmem:[#allocation2 + $0x18] sm:$0xff]
        %v954 = vadd.f32 %v950, %v941
        %v955 = vadd.f32 %v951, %v943
        %v956 = vadd.f32 %v952, %v946
        %v957 = vadd.f32 %v953, %v948
        %958 = vst [vmem:[#allocation2] sm:$0xff] %v954
        %959 = vst [vmem:[#allocation2 + $0x8] sm:$0xff] %v955
        %960 = vst [vmem:[#allocation2 + $0x10] sm:$0xff] %v956
        %961 = vst [vmem:[#allocation2 + $0x18] sm:$0xff] %v957
      $region44: #{upsample_forward.5} parent=35 // pred_fallthru
        _
      %p962 = scmp.eq.s32.totalorder %s22, 4
      // Predicated region
      $region45: #{upsample_forward.5} parent=35 // pred_check
        %p963 = pneg %p962
      $region46: #{upsample_forward.5} parent=35 // pred_check_branch
        %965 = sbr.rel (%p963) target = $region48
      $region47: #{upsample_forward.5} parent=35 // pred_region
        %v966 = vld [vmem:[#allocation2] sm:$0xff]
        %v967 = vld [vmem:[#allocation2 + $0x8] sm:$0xff]
        %v968 = vld [vmem:[#allocation2 + $0x10] sm:$0xff]
        %v969 = vld [vmem:[#allocation2 + $0x18] sm:$0xff]
        %v970 = vld [vmem:[%s2] sm:$0x1]
        %v972 = vperm.slane %v970, 0
        %v974 = vadd.f32 %v966, %v972
        %v975 = vadd.f32 %v967, %v972
        %v976 = vadd.f32 %v968, %v972
        %v977 = vadd.f32 %v969, %v972
        %v978 = vmax.f32 %v974, 0.0
        %v979 = vmax.f32 %v975, 0.0
        %v980 = vmax.f32 %v976, 0.0
        %v981 = vmax.f32 %v977, 0.0
        %v982 = vld [vmem:[%s3] sm:$0xff]
        %v983 = vld [vmem:[%s3 + $0x8] sm:$0xff]
        %v984 = vld [vmem:[%s3 + $0x10] sm:$0xff]
        %v985 = vld [vmem:[%s3 + $0x18] sm:$0xff]
        %987 = vset.pattern.permute.xlu0 0
        %988 = vperm.xlu0 %987, %v982
        %v989 = vpop.permute.xlu0 %988
        %992 = vset.pattern.permute.xlu0 0
        %993 = vperm.xlu0 %992, %v983
        %v994 = vpop.permute.xlu0 %993
        %997 = vset.pattern.permute.xlu0 0
        %998 = vperm.xlu0 %997, %v984
        %v999 = vpop.permute.xlu0 %998
        %1002 = vset.pattern.permute.xlu0 0
        %1003 = vperm.xlu0 %1002, %v985
        %v1004 = vpop.permute.xlu0 %1003
        %v1006 = vmul.f32 %v978, %v989
        %v1007 = vmul.f32 %v979, %v994
        %v1008 = vmul.f32 %v980, %v999
        %v1009 = vmul.f32 %v981, %v1004
        %1010 = vst [vmem:[%s282] sm:$0xf] 0
        %1011 = vst [vmem:[%s282 + $0x4] sm:$0xf] 0
        %1012 = vst [vmem:[%s282 + $0x8] sm:$0xf] 0
        %1013 = vst [vmem:[%s282 + $0xc] sm:$0xf] 0
        %1014 = vst [vmem:[%s282 + $0x10] sm:$0xf] 0
        %1015 = vst [vmem:[%s282 + $0x14] sm:$0xf] 0
        %1016 = vst [vmem:[%s282 + $0x18] sm:$0xf] 0
        %1017 = vst [vmem:[%s282 + $0x1c] sm:$0xf] 0
        %1018 = vst [vmem:[%s282 + $0x20] sm:$0xf] 0
        %1019 = vst [vmem:[%s282 + $0x24] sm:$0xf] 0
        %1020 = vst [vmem:[%s282 + $0x28] sm:$0xf] 0
        %1021 = vst [vmem:[%s282 + $0x2c] sm:$0xf] 0
        %v1022 = vpack.c.bf16 %v1006, %v1006
        %v1023 = vpack.c.bf16 %v1007, %v1007
        %v1024 = vpack.c.bf16 %v1008, %v1008
        %v1025 = vpack.c.bf16 %v1009, %v1009
        %1026 = vst [vmem:[%s282 + $0x10] sm:$0xf] %v1022
        %1027 = vst [vmem:[%s282 + $0x14] sm:$0xf] %v1023
        %1028 = vst [vmem:[%s282 + $0x18] sm:$0xf] %v1024
        %1029 = vst [vmem:[%s282 + $0x1c] sm:$0xf] %v1025
      $region48: #{upsample_forward.5} parent=35 // pred_fallthru
        _
      %p1030 = scmp.lt.s32.totalorder %s20, 1
      %s1031 = scalar_select %p1030, %s20, 1
      %p1032 = scmp.lt.s32.totalorder %s21, 3
      %s1033 = scalar_select %p1032, %s21, 3
      %s1034 = smul.addr %s1033, 12
      %s1035 = smul.addr %s1031, 48
      %s1036 = sadd.s32 %s1034, %s1035
      %s1037 = smul.addr %s1036, 4
      %s1038 = scalar_lea.vmem %s4, %s1037
      // Predicated region
      $region49: #{upsample_forward.5} parent=35 // pred_check
        %p1039 = pneg %p157
      $region50: #{upsample_forward.5} parent=35 // pred_check_branch
        %1041 = sbr.rel (%p1039) target = $region52
      $region51: #{upsample_forward.5} parent=35 // pred_region
        _
      $region52: #{upsample_forward.5} parent=35 // pred_fallthru
        _
    $region36: #{upsample_forward.5} parent=5 // pred_fallthru
      _
    %p1042 = scmp.le.s32.totalorder 2, %s10
    // Predicated region
    $region53: #{upsample_forward.5} parent=5 // pred_check
      %p1043 = pneg %p1042
    $region54: #{upsample_forward.5} parent=5 // pred_check_branch
      %1045 = sbr.rel (%p1043) target = $region56
    $region55: #{upsample_forward.5} parent=5 // pred_region
      %s1046 = ssub.s32 %s10, 2
      // Predicated region
      $region57: #{upsample_forward.5} parent=55 // pred_check
        %p1047 = pneg %p163
      $region58: #{upsample_forward.5} parent=55 // pred_check_branch
        %1049 = sbr.rel (%p1047) target = $region60
      $region59: #{upsample_forward.5} parent=55 // pred_region
        %p1050 = scmp.lt.s32.totalorder %s23, 1
        %s1051 = scalar_select %p1050, %s23, 1
        %p1052 = scmp.lt.s32.totalorder %s24, 3
        %s1053 = scalar_select %p1052, %s24, 3
        %s1054 = smul.addr %s1053, 12
        %s1055 = smul.addr %s1051, 48
        %s1056 = sadd.s32 %s1054, %s1055
        %s1057 = smul.addr %s1056, 4
        %s1058 = scalar_lea.vmem %s4, %s1057
      $region60: #{upsample_forward.5} parent=55 // pred_fallthru
        _
    $region56: #{upsample_forward.5} parent=5 // pred_fallthru
      _
  $region6: #{upsample_forward.5} parent=0 // loop_footer
    %s14 = sadd.s32 1, %s10
  $region7: #{upsample_forward.5} parent=0 // loop_footer_branch
    %9 = sbr.rel target = $region3
  $region8: #{upsample_forward.5} parent=0 // loop_exit
    _

// kernel: upsample_forward.4
$region0: #{upsample_forward.4}
  #allocation0 [shape = 'u32[]', space=smem, size = 0x4, offset = 0x4, fixed_abs, tag = 'smem constant byte address 0x4 - core index']
  #allocation1 [shape = 'u32[72,128]{1,0:T(1,128)}', space=vmem, size = 0x9000, scoped, tag = 'internal scratch']
  #allocation2 [shape = 'f32[32,128]{1,0:T(8,128)}', space=vmem, size = 0x4000, scoped, tag = 'scratch operand']
  %s0 = inlined_call_operand.vmem [shape: bf16[2,4,96,4], index: 0, kind: input, shape index: {}]
  %s1 = inlined_call_operand.vmem [shape: bf16[5,100,128], index: 1, kind: input, shape index: {}]
  %s2 = inlined_call_operand.vmem [shape: f32[1,128], index: 2, kind: input, shape index: {}]
  %s3 = inlined_call_operand.vmem [shape: f32[32,1], index: 3, kind: input, shape index: {}]
  %s4 = inlined_call_operand.vmem [shape: bf16[2,4,96,128], index: 4, kind: output, shape index: {}]
  %s5 = sld [smem:[#allocation0]]
  $region61: #{upsample_forward.4} parent=0
    _
  %s7 = ssub.s32 1, %s5
  %s8 = scalar_select 0, %s7, %s5
  loop: start=0, step=1, limit=42
  $region2: #{upsample_forward.4} parent=0 // loop_pre_header
    _
  $region3: #{upsample_forward.4} parent=0 // loop_header
    %s10 = sphi 0, %s14
    %p11 = scmp.ge.s32.totalorder %s10, 42
    %s17 = sphi 0, %s36
    %s18 = sphi 0, %s32
    %s19 = sphi 0, %s28
    %s20 = sphi 0, %s17
    %s21 = sphi 0, %s18
    %s22 = sphi 0, %s19
    %s23 = sphi 0, %s20
    %s24 = sphi 0, %s21
    %s25 = sphi 0, %s22
    %s53 = sphi 0, %s55
    %s56 = sphi 0, %s53
    %s57 = sphi 0, %s56
    %s73 = sphi 0, %s57
    %s77 = sphi 0, %s77
    %s79 = sphi 0, %s77
    %s80 = sphi 0, %s79
    %s94 = sphi 0, %s80
    %s98 = sphi 0, %s98
    %s100 = sphi 0, %s98
    %s101 = sphi 0, %s100
    %s115 = sphi 0, %s101
    %s119 = sphi 0, %s119
    %s121 = sphi 0, %s119
    %s122 = sphi 0, %s121
    %s136 = sphi 0, %s122
    %s144 = sphi 0, %s146
    %s147 = sphi 0, %s144
    %s148 = sphi 0, %s147
    %s164 = sphi 0, %s148
  $region4: #{upsample_forward.4} parent=0 // loop_header_branch
    %13 = sbr.rel (%p11) target = $region8
  $region5: #{upsample_forward.4} parent=0 // loop_body
    %s15 = ssub.s32 %s10, 1
    %s16 = ssub.s32 %s10, 2
    %s26 = sadd.s32 1, %s19
    %p27 = scmp.ge.s32.totalorder %s26, 5
    %s28 = scalar_select %p27, 0, %s26
    %s29 = sadd.s32 1, %s18
    %s30 = scalar_select %p27, %s29, %s18
    %p31 = scmp.ge.s32.totalorder %s30, 4
    %s32 = scalar_select %p31, 0, %s30
    %s33 = sadd.s32 1, %s17
    %s34 = scalar_select %p31, %s33, %s17
    %p35 = scmp.ge.s32.totalorder %s34, 2
    %s36 = scalar_select %p35, 0, %s34
    %s37 = sadd.s32 %s18, %s19
    %s38 = ssub.s32 %s37, 2
    %p39 = scmp.gt.s32.totalorder %s38, 0
    %s40 = scalar_select %p39, %s38, 0
    %p41 = scmp.lt.s32.totalorder %s40, 3
    %s42 = scalar_select %p41, %s40, 3
    %s43 = sadd.s32 %s32, %s28
    %s44 = ssub.s32 %s43, 2
    %p45 = scmp.gt.s32.totalorder %s44, 0
    %s46 = scalar_select %p45, %s44, 0
    %p47 = scmp.lt.s32.totalorder %s46, 3
    %s48 = scalar_select %p47, %s46, 3
    %s49 = ssub.s32 %s17, %s36
    %s50 = ssub.s32 %s42, %s48
    %s51 = sor.u32 %s49, %s50
    %p52 = scmp.eq.s32.totalorder %s51, 0
    %s54 = sadd.s32 %s53, 1
    %s55 = scalar_select %p52, %s53, %s54
    %p58 = pneg %p52
    %p59 = scmp.eq.s32.totalorder %s10, 39
    %p60 = por %p58, %p59
    %p61 = scmp.ne.s32.totalorder %s53, %s56
    %p62 = scmp.eq.s32.totalorder %s10, 0
    %p63 = por %p61, %p62
    %p64 = scmp.ne.s32.totalorder %s53, %s56
    %p65 = scmp.eq.s32.totalorder %s15, 39
    %p66 = por %p64, %p65
    %p67 = scmp.ne.s32.totalorder %s56, %s57
    %p68 = scmp.eq.s32.totalorder %s15, 0
    %p69 = por %p67, %p68
    %p70 = scmp.ne.s32.totalorder %s56, %s57
    %p71 = scmp.eq.s32.totalorder %s16, 39
    %p72 = por %p70, %p71
    %p74 = scmp.ne.s32.totalorder %s57, %s73
    %p75 = scmp.eq.s32.totalorder %s16, 0
    %p76 = por %p74, %p75
    %s78 = sadd.s32 %s77, 1
    %p81 = scmp.eq.s32.totalorder %s10, 39
    %p82 = scmp.ne.s32.totalorder %s77, %s79
    %p83 = scmp.eq.s32.totalorder %s10, 0
    %p84 = por %p82, %p83
    %p85 = scmp.ne.s32.totalorder %s77, %s79
    %p86 = scmp.eq.s32.totalorder %s15, 39
    %p87 = por %p85, %p86
    %p88 = scmp.ne.s32.totalorder %s79, %s80
    %p89 = scmp.eq.s32.totalorder %s15, 0
    %p90 = por %p88, %p89
    %p91 = scmp.ne.s32.totalorder %s79, %s80
    %p92 = scmp.eq.s32.totalorder %s16, 39
    %p93 = por %p91, %p92
    %p95 = scmp.ne.s32.totalorder %s80, %s94
    %p96 = scmp.eq.s32.totalorder %s16, 0
    %p97 = por %p95, %p96
    %s99 = sadd.s32 %s98, 1
    %p102 = scmp.eq.s32.totalorder %s10, 39
    %p103 = scmp.ne.s32.totalorder %s98, %s100
    %p104 = scmp.eq.s32.totalorder %s10, 0
    %p105 = por %p103, %p104
    %p106 = scmp.ne.s32.totalorder %s98, %s100
    %p107 = scmp.eq.s32.totalorder %s15, 39
    %p108 = por %p106, %p107
    %p109 = scmp.ne.s32.totalorder %s100, %s101
    %p110 = scmp.eq.s32.totalorder %s15, 0
    %p111 = por %p109, %p110
    %p112 = scmp.ne.s32.totalorder %s100, %s101
    %p113 = scmp.eq.s32.totalorder %s16, 39
    %p114 = por %p112, %p113
    %p116 = scmp.ne.s32.totalorder %s101, %s115
    %p117 = scmp.eq.s32.totalorder %s16, 0
    %p118 = por %p116, %p117
    %s120 = sadd.s32 %s119, 1
    %p123 = scmp.eq.s32.totalorder %s10, 39
    %p124 = scmp.ne.s32.totalorder %s119, %s121
    %p125 = scmp.eq.s32.totalorder %s10, 0
    %p126 = por %p124, %p125
    %p127 = scmp.ne.s32.totalorder %s119, %s121
    %p128 = scmp.eq.s32.totalorder %s15, 39
    %p129 = por %p127, %p128
    %p130 = scmp.ne.s32.totalorder %s121, %s122
    %p131 = scmp.eq.s32.totalorder %s15, 0
    %p132 = por %p130, %p131
    %p133 = scmp.ne.s32.totalorder %s121, %s122
    %p134 = scmp.eq.s32.totalorder %s16, 39
    %p135 = por %p133, %p134
    %p137 = scmp.ne.s32.totalorder %s122, %s136
    %p138 = scmp.eq.s32.totalorder %s16, 0
    %p139 = por %p137, %p138
    %s140 = ssub.s32 %s17, %s36
    %s141 = ssub.s32 %s18, %s32
    %s142 = sor.u32 %s140, %s141
    %p143 = scmp.eq.s32.totalorder %s142, 0
    %s145 = sadd.s32 %s144, 1
    %s146 = scalar_select %p143, %s144, %s145
    %p149 = pneg %p143
    %p150 = scmp.eq.s32.totalorder %s10, 39
    %p151 = por %p149, %p150
    %p152 = scmp.ne.s32.totalorder %s144, %s147
    %p153 = scmp.eq.s32.totalorder %s10, 0
    %p154 = por %p152, %p153
    %p155 = scmp.ne.s32.totalorder %s144, %s147
    %p156 = scmp.eq.s32.totalorder %s15, 39
    %p157 = por %p155, %p156
    %p158 = scmp.ne.s32.totalorder %s147, %s148
    %p159 = scmp.eq.s32.totalorder %s15, 0
    %p160 = por %p158, %p159
    %p161 = scmp.ne.s32.totalorder %s147, %s148
    %p162 = scmp.eq.s32.totalorder %s16, 39
    %p163 = por %p161, %p162
    %p165 = scmp.ne.s32.totalorder %s148, %s164
    %p166 = scmp.eq.s32.totalorder %s16, 0
    %p167 = por %p165, %p166
    %p168 = scmp.le.s32.totalorder 1, %s10
    %p169 = scmp.lt.s32.totalorder %s10, 41
    %p170 = pnand %p168, %p169
    %p171 = pneg %p170
    // Predicated region
    $region9: #{upsample_forward.4} parent=5 // pred_check
      _
    $region10: #{upsample_forward.4} parent=5 // pred_check_branch
      %173 = sbr.rel (%p170) target = $region12
    $region11: #{upsample_forward.4} parent=5 // pred_region
      %s174 = ssub.s32 %s10, 1
      // Predicated region
      $region13: #{upsample_forward.4} parent=11 // pred_check
        %p175 = pneg %p90
      $region14: #{upsample_forward.4} parent=11 // pred_check_branch
        %177 = sbr.rel (%p175) target = $region16
      $region15: #{upsample_forward.4} parent=11 // pred_region
        _
      $region16: #{upsample_forward.4} parent=11 // pred_fallthru
        _
      // Predicated region
      $region17: #{upsample_forward.4} parent=11 // pred_check
        %p178 = pneg %p111
      $region18: #{upsample_forward.4} parent=11 // pred_check_branch
        %180 = sbr.rel (%p178) target = $region20
      $region19: #{upsample_forward.4} parent=11 // pred_region
        _
      $region20: #{upsample_forward.4} parent=11 // pred_fallthru
        _
      // Predicated region
      $region21: #{upsample_forward.4} parent=11 // pred_check
        %p181 = pneg %p132
      $region22: #{upsample_forward.4} parent=11 // pred_check_branch
        %183 = sbr.rel (%p181) target = $region24
      $region23: #{upsample_forward.4} parent=11 // pred_region
        _
      $region24: #{upsample_forward.4} parent=11 // pred_fallthru
        _
    $region12: #{upsample_forward.4} parent=5 // pred_fallthru
      _
    %p184 = scmp.lt.s32.totalorder %s10, 40
    // Predicated region
    $region25: #{upsample_forward.4} parent=5 // pred_check
      %p185 = pneg %p184
    $region26: #{upsample_forward.4} parent=5 // pred_check_branch
      %187 = sbr.rel (%p185) target = $region28
    $region27: #{upsample_forward.4} parent=5 // pred_region
      // Predicated region
      $region29: #{upsample_forward.4} parent=27 // pred_check
        %p188 = pneg %p63
      $region30: #{upsample_forward.4} parent=27 // pred_check_branch
        %190 = sbr.rel (%p188) target = $region32
      $region31: #{upsample_forward.4} parent=27 // pred_region
        %s191 = sadd.s32 %s18, %s19
        %s192 = ssub.s32 %s191, 2
        %p193 = scmp.gt.s32.totalorder %s192, 0
        %s194 = scalar_select %p193, %s192, 0
        %p195 = scmp.lt.s32.totalorder %s194, 3
        %s196 = scalar_select %p195, %s194, 3
        %p197 = scmp.lt.s32.totalorder %s17, 1
        %s198 = scalar_select %p197, %s17, 1
        %p199 = scmp.lt.s32.totalorder %s196, 3
        %s200 = scalar_select %p199, %s196, 3
        %s201 = smul.addr %s200, 12
        %s202 = smul.addr %s198, 48
        %s203 = sadd.s32 %s201, %s202
        %s204 = smul.addr %s203, 4
        %s205 = scalar_lea.vmem %s0, %s204
        %s206 = sadd.s32 %s18, %s19
        %s207 = ssub.s32 %s206, 2
        %p208 = scmp.gt.s32.totalorder %s207, 0
        %s209 = scalar_select %p208, %s207, 0
        %p210 = scmp.lt.s32.totalorder %s209, 3
        %s211 = scalar_select %p210, %s209, 3
      $region32: #{upsample_forward.4} parent=27 // pred_fallthru
        _
    $region28: #{upsample_forward.4} parent=5 // pred_fallthru
      _
    %p212 = scmp.le.s32.totalorder 1, %s10
    %p213 = scmp.lt.s32.totalorder %s10, 41
    %p214 = pnand %p212, %p213
    %p215 = pneg %p214
    // Predicated region
    $region33: #{upsample_forward.4} parent=5 // pred_check
      _
    $region34: #{upsample_forward.4} parent=5 // pred_check_branch
      %217 = sbr.rel (%p214) target = $region36
    $region35: #{upsample_forward.4} parent=5 // pred_region
      %s218 = ssub.s32 %s10, 1
      %s219 = sadd.s32 %s21, %s22
      %s220 = ssub.s32 %s219, 2
      %p221 = scmp.gt.s32.totalorder %s220, 0
      %s222 = scalar_select %p221, %s220, 0
      %p223 = scmp.lt.s32.totalorder %s222, 3
      %s224 = scalar_select %p223, %s222, 3
      %p225 = scmp.lt.s32.totalorder %s20, 1
      %s226 = scalar_select %p225, %s20, 1
      %p227 = scmp.lt.s32.totalorder %s224, 3
      %s228 = scalar_select %p227, %s224, 3
      %s229 = smul.addr %s228, 12
      %s230 = smul.addr %s226, 48
      %s231 = sadd.s32 %s229, %s230
      %s232 = smul.addr %s231, 4
      %s233 = scalar_lea.vmem %s0, %s232
      %p234 = pneg %p69
      %p235 = pneg %p66
      %p236 = pneg %p90
      %p237 = pneg %p87
      %p238 = pneg %p111
      %p239 = pneg %p108
      %p240 = pneg %p132
      %p241 = pneg %p129
      %p242 = pneg %p160
      %p243 = pneg %p157
      %p244 = scmp.lt.s32.totalorder %s20, 1
      %s245 = scalar_select %p244, %s20, 1
      %p246 = scmp.lt.s32.totalorder %s21, 3
      %s247 = scalar_select %p246, %s21, 3
      %s248 = smul.addr %s247, 12
      %s249 = smul.addr %s245, 48
      %s250 = sadd.s32 %s248, %s249
      %s251 = smul.addr %s250, 4
      %s252 = scalar_lea.vmem %s4, %s251
      %s253 = sadd.s32 %s21, %s22
      %s254 = ssub.s32 %s253, 2
      %p255 = scmp.gt.s32.totalorder %s254, 0
      %s256 = scalar_select %p255, %s254, 0
      %p257 = scmp.lt.s32.totalorder %s256, 3
      %s258 = scalar_select %p257, %s256, 3
      %p259 = scmp.lt.s32.totalorder %s20, 1
      %s260 = scalar_select %p259, %s20, 1
      %p261 = scmp.lt.s32.totalorder %s258, 3
      %s262 = scalar_select %p261, %s258, 3
      %s263 = smul.addr %s262, 12
      %s264 = smul.addr %s260, 48
      %s265 = sadd.s32 %s263, %s264
      %s266 = smul.addr %s265, 4
      %s267 = scalar_lea.vmem %s0, %s266
      %s268 = sadd.s32 %s21, %s22
      %s269 = ssub.s32 %s268, 2
      %p270 = scmp.gt.s32.totalorder %s269, 0
      %s271 = scalar_select %p270, %s269, 0
      %p272 = scmp.lt.s32.totalorder %s271, 3
      %s273 = scalar_select %p272, %s271, 3
      %p274 = scmp.lt.s32.totalorder %s20, 1
      %s275 = scalar_select %p274, %s20, 1
      %p276 = scmp.lt.s32.totalorder %s21, 3
      %s277 = scalar_select %p276, %s21, 3
      %s278 = smul.addr %s277, 12
      %s279 = smul.addr %s275, 48
      %s280 = sadd.s32 %s278, %s279
      %s281 = smul.addr %s280, 4
      %s282 = scalar_lea.vmem %s4, %s281
      %p284 = scmp.eq.s32.totalorder %s22, 0
      // Predicated region
      $region37: #{upsample_forward.4} parent=35 // pred_check
        %p285 = pneg %p284
      $region38: #{upsample_forward.4} parent=35 // pred_check_branch
        %287 = sbr.rel (%p285) target = $region40
      $region39: #{upsample_forward.4} parent=35 // pred_region
        %288 = vst [vmem:[#allocation2] sm:$0xff] 0.0
        %289 = vst [vmem:[#allocation2 + $0x8] sm:$0xff] 0.0
        %290 = vst [vmem:[#allocation2 + $0x10] sm:$0xff] 0.0
        %291 = vst [vmem:[#allocation2 + $0x18] sm:$0xff] 0.0
      $region40: #{upsample_forward.4} parent=35 // pred_fallthru
        _
      %s292 = sadd.s32 %s21, %s22
      %s293 = ssub.s32 %s292, 2
      %p294 = scmp.ge.s32.totalorder %s293, 0
      %p295 = scmp.lt.s32.totalorder %s293, 4
      %p296 = pnand %p294, %p295
      %p297 = pneg %p296
      // Predicated region
      $region41: #{upsample_forward.4} parent=35 // pred_check
        _
      $region42: #{upsample_forward.4} parent=35 // pred_check_branch
        %299 = sbr.rel (%p296) target = $region44
      $region43: #{upsample_forward.4} parent=35 // pred_region
        %v300 = vld [vmem:[%s267 + $0x4] sm:$0xf]
        %v301 = vld [vmem:[%s267 + $0x8] sm:$0xf]
        %v302 = vld [vmem:[%s267 + $0xc] sm:$0xf]
        %v303 = vld [vmem:[%s267 + $0x10] sm:$0xf]
        %v304 = vld [vmem:[%s267 + $0x14] sm:$0xf]
        %v305 = vld [vmem:[%s267 + $0x18] sm:$0xf]
        %v306 = vld [vmem:[%s267 + $0x1c] sm:$0xf]
        %v307 = vld [vmem:[%s267 + $0x20] sm:$0xf]
        %v308 = vld [vmem:[%s267 + $0x24] sm:$0xf]
        %v309 = vld [vmem:[%s267 + $0x28] sm:$0xf]
        %s310 = smul.u32 %s22, 13
        %s311 = smul.addr %s310, 4
        %s312 = scalar_lea.vmem %s1, %s311
        %v313 = vld [vmem:[%s312] sm:$0xf]
        %v314 = vld [vmem:[%s312 + $0x4] sm:$0xf]
        %v315 = vld [vmem:[%s312 + $0x8] sm:$0xf]
        %v316 = vld [vmem:[%s312 + $0xc] sm:$0xf]
        %v317 = vld [vmem:[%s312 + $0x10] sm:$0xf]
        %v318 = vld [vmem:[%s312 + $0x14] sm:$0xf]
        %v319 = vld [vmem:[%s312 + $0x18] sm:$0xf]
        %v320 = vld [vmem:[%s312 + $0x1c] sm:$0xf]
        %v321 = vld [vmem:[%s312 + $0x20] sm:$0xf]
        %v322 = vld [vmem:[%s312 + $0x24] sm:$0xf]
        %v323 = vld [vmem:[%s312 + $0x28] sm:$0xf]
        %v324 = vld [vmem:[%s312 + $0x2c] sm:$0xf]
        %v325 = vld [vmem:[%s312 + $0x30] sm:$0x3]
        %v331 = vunpack.c.l.b16 %v300
        %v332 = vunpack.c.l.b16 %v301
        %v333 = vunpack.c.l.b16 %v302
        %v334 = vunpack.c.l.b16 %v303
        %v335 = vunpack.c.l.b16 %v304
        %v336 = vpack.c.b16 %v332, %v331
        %v337 = vpack.c.b16 %v334, %v333
        %v338 = vpack.c.b16 %v335, %v335
        %vm339 = vsmask.f32 7424
        %v341 = vshrl.u32 %v336, 16
        %v343 = vshll.u32 %v336, 16
        %v345 = vrot.slane %v343, 1
        %v346 = vor.u32 %v341, %v345
        %v348 = vshll.u32 %v337, 16
        %v350 = vrot.slane %v348, 1
        %v351 = vsel %vm339, %v346, %v350
        %v352 = vshrl.u32 %v337, 16
        %v354 = vor.u32 %v352, %v350
        %v356 = vshll.u32 %v338, 16
        %v358 = vrot.slane %v356, 1
        %v359 = vsel %vm339, %v354, %v358
        %v360 = vshrl.u32 %v338, 16
        %v362 = vor.u32 %v360, %v358
        %363 = vrot.lane.b32.xlu0 %v351, 4
        %v364 = vpop.permute.xlu0 %363
        %365 = vrot.lane.b32.xlu0 %v359, 4
        %v366 = vpop.permute.xlu0 %365
        %367 = vrot.lane.b32.xlu0 %v362, 4
        %v368 = vpop.permute.xlu0 %367
        %v369 = vpack.c.b16 %v333, %v332
        %v370 = vpack.c.b16 %v335, %v334
        %vm371 = vcmask 1042432
        %v372 = vrot.slane %v369, 5
        %v373 = vrot.slane %v370, 5
        %v374 = vsel %vm371, %v372, %v373
        %375 = vrot.lane.b32.xlu0 %v372, 8
        %v376 = vpop.permute.xlu0 %375
        %377 = vrot.lane.b32.xlu0 %v374, 8
        %v378 = vpop.permute.xlu0 %377
        %379 = vrot.lane.b32.xlu0 %v373, 8
        %v380 = vpop.permute.xlu0 %379
        %v382 = vunpack.c.l.b16 %v305
        %v383 = vpack.c.b16 %v382, %v382
        %vm384 = vsmask.f32 2304
        %v386 = vshrl.u32 %v369, 16
        %v388 = vrot.slane %v386, 5
        %v389 = vshll.u32 %v369, 16
        %v391 = vrot.slane %v389, 6
        %v392 = vor.u32 %v388, %v391
        %v394 = vshrl.u32 %v370, 16
        %v396 = vrot.slane %v394, 5
        %v397 = vshll.u32 %v370, 16
        %v399 = vrot.slane %v397, 6
        %v400 = vor.u32 %v396, %v399
        %v401 = vsel %vm384, %v392, %v400
        %v403 = vshll.u32 %v383, 16
        %v405 = vrot.slane %v403, 6
        %v406 = vsel %vm384, %v400, %v405
        %407 = vrot.lane.b32.xlu0 %v392, 12
        %v408 = vpop.permute.xlu0 %407
        %409 = vrot.lane.b32.xlu0 %v401, 12
        %v410 = vpop.permute.xlu0 %409
        %411 = vrot.lane.b32.xlu0 %v406, 12
        %v412 = vpop.permute.xlu0 %411
        %vm413 = vcmask 1041408
        %v414 = vrot.slane %v369, 6
        %v415 = vrot.slane %v370, 6
        %v416 = vsel %vm413, %v414, %v415
        %v417 = vrot.slane %v383, 6
        %v418 = vsel %vm413, %v415, %v417
        %419 = vrot.lane.b32.xlu0 %v414, 16
        %v420 = vpop.permute.xlu0 %419
        %421 = vrot.lane.b32.xlu0 %v416, 16
        %v422 = vpop.permute.xlu0 %421
        %423 = vrot.lane.b32.xlu0 %v418, 16
        %v424 = vpop.permute.xlu0 %423
        %425 = vrot.lane.b32.xlu0 %v369, 20
        %v426 = vpop.permute.xlu0 %425
        %427 = vrot.lane.b32.xlu0 %v370, 20
        %v428 = vpop.permute.xlu0 %427
        %429 = vrot.lane.b32.xlu0 %v383, 20
        %v430 = vpop.permute.xlu0 %429
        %v431 = vrot.slane %v389, 1
        %v432 = vor.u32 %v386, %v431
        %v433 = vrot.slane %v397, 1
        %v434 = vsel %vm339, %v432, %v433
        %v435 = vor.u32 %v394, %v433
        %v436 = vrot.slane %v403, 1
        %v437 = vsel %vm339, %v435, %v436
        %v438 = vshrl.u32 %v383, 16
        %v440 = vor.u32 %v438, %v436
        %441 = vrot.lane.b32.xlu0 %v434, 24
        %v442 = vpop.permute.xlu0 %441
        %443 = vrot.lane.b32.xlu0 %v437, 24
        %v444 = vpop.permute.xlu0 %443
        %445 = vrot.lane.b32.xlu0 %v440, 24
        %v446 = vpop.permute.xlu0 %445
        %v447 = vpack.c.b16 %v382, %v335
        %v448 = vrot.slane %v337, 5
        %v449 = vrot.slane %v447, 5
        %v450 = vsel %vm371, %v448, %v449
        %451 = vrot.lane.b32.xlu0 %v448, 28
        %v452 = vpop.permute.xlu0 %451
        %453 = vrot.lane.b32.xlu0 %v450, 28
        %v454 = vpop.permute.xlu0 %453
        %455 = vrot.lane.b32.xlu0 %v449, 28
        %v456 = vpop.permute.xlu0 %455
        %v458 = vunpack.c.l.b16 %v306
        %v459 = vpack.c.b16 %v458, %v458
        %v460 = vrot.slane %v352, 5
        %v461 = vrot.slane %v348, 6
        %v462 = vor.u32 %v460, %v461
        %v464 = vshrl.u32 %v447, 16
        %v466 = vrot.slane %v464, 5
        %v467 = vshll.u32 %v447, 16
        %v469 = vrot.slane %v467, 6
        %v470 = vor.u32 %v466, %v469
        %v471 = vsel %vm384, %v462, %v470
        %v473 = vshll.u32 %v459, 16
        %v475 = vrot.slane %v473, 6
        %v476 = vsel %vm384, %v470, %v475
        %477 = vrot.lane.b32.xlu0 %v462, 32
        %v478 = vpop.permute.xlu0 %477
        %479 = vrot.lane.b32.xlu0 %v471, 32
        %v480 = vpop.permute.xlu0 %479
        %481 = vrot.lane.b32.xlu0 %v476, 32
        %v482 = vpop.permute.xlu0 %481
        %v483 = vrot.slane %v337, 6
        %v484 = vrot.slane %v447, 6
        %v485 = vsel %vm413, %v483, %v484
        %v486 = vrot.slane %v459, 6
        %v487 = vsel %vm413, %v484, %v486
        %488 = vrot.lane.b32.xlu0 %v483, 36
        %v489 = vpop.permute.xlu0 %488
        %490 = vrot.lane.b32.xlu0 %v485, 36
        %v491 = vpop.permute.xlu0 %490
        %492 = vrot.lane.b32.xlu0 %v487, 36
        %v493 = vpop.permute.xlu0 %492
        %494 = vrot.lane.b32.xlu0 %v337, 40
        %v495 = vpop.permute.xlu0 %494
        %496 = vrot.lane.b32.xlu0 %v447, 40
        %v497 = vpop.permute.xlu0 %496
        %498 = vrot.lane.b32.xlu0 %v459, 40
        %v499 = vpop.permute.xlu0 %498
        %v500 = vrot.slane %v467, 1
        %v501 = vsel %vm339, %v354, %v500
        %v502 = vor.u32 %v464, %v500
        %v503 = vrot.slane %v473, 1
        %v504 = vsel %vm339, %v502, %v503
        %v505 = vshrl.u32 %v459, 16
        %v507 = vor.u32 %v505, %v503
        %508 = vrot.lane.b32.xlu0 %v501, 44
        %v509 = vpop.permute.xlu0 %508
        %510 = vrot.lane.b32.xlu0 %v504, 44
        %v511 = vpop.permute.xlu0 %510
        %512 = vrot.lane.b32.xlu0 %v507, 44
        %v513 = vpop.permute.xlu0 %512
        %v514 = vpack.c.b16 %v458, %v382
        %v515 = vrot.slane %v514, 5
        %v516 = vsel %vm371, %v373, %v515
        %517 = vrot.lane.b32.xlu0 %v373, 48
        %v518 = vpop.permute.xlu0 %517
        %519 = vrot.lane.b32.xlu0 %v516, 48
        %v520 = vpop.permute.xlu0 %519
        %521 = vrot.lane.b32.xlu0 %v515, 48
        %v522 = vpop.permute.xlu0 %521
        %v524 = vunpack.c.l.b16 %v307
        %v525 = vpack.c.b16 %v524, %v524
        %v527 = vshrl.u32 %v514, 16
        %v529 = vrot.slane %v527, 5
        %v530 = vshll.u32 %v514, 16
        %v532 = vrot.slane %v530, 6
        %v533 = vor.u32 %v529, %v532
        %v534 = vsel %vm384, %v400, %v533
        %v536 = vshll.u32 %v525, 16
        %v538 = vrot.slane %v536, 6
        %v539 = vsel %vm384, %v533, %v538
        %540 = vrot.lane.b32.xlu0 %v400, 52
        %v541 = vpop.permute.xlu0 %540
        %542 = vrot.lane.b32.xlu0 %v534, 52
        %v543 = vpop.permute.xlu0 %542
        %544 = vrot.lane.b32.xlu0 %v539, 52
        %v545 = vpop.permute.xlu0 %544
        %v546 = vrot.slane %v514, 6
        %v547 = vsel %vm413, %v415, %v546
        %v548 = vrot.slane %v525, 6
        %v549 = vsel %vm413, %v546, %v548
        %550 = vrot.lane.b32.xlu0 %v415, 56
        %v551 = vpop.permute.xlu0 %550
        %552 = vrot.lane.b32.xlu0 %v547, 56
        %v553 = vpop.permute.xlu0 %552
        %554 = vrot.lane.b32.xlu0 %v549, 56
        %v555 = vpop.permute.xlu0 %554
        %556 = vrot.lane.b32.xlu0 %v370, 60
        %v557 = vpop.permute.xlu0 %556
        %558 = vrot.lane.b32.xlu0 %v514, 60
        %v559 = vpop.permute.xlu0 %558
        %560 = vrot.lane.b32.xlu0 %v525, 60
        %v561 = vpop.permute.xlu0 %560
        %vm562 = vcmask 31744
        %v564 = vsel %vm562, %v336, %v364
        %v566 = vsel %vm562, %v337, %v366
        %v568 = vsel %vm562, %v338, %v368
        %vm569 = vcmask 64512
        %v571 = vsel %vm569, %v564, %v376
        %v573 = vsel %vm569, %v566, %v378
        %v575 = vsel %vm569, %v568, %v380
        %vm576 = vcmask 97280
        %v578 = vsel %vm576, %v571, %v408
        %v580 = vsel %vm576, %v573, %v410
        %v582 = vsel %vm576, %v575, %v412
        %vm583 = vcmask 130048
        %v585 = vsel %vm583, %v578, %v420
        %v587 = vsel %vm583, %v580, %v422
        %v589 = vsel %vm583, %v582, %v424
        %vm590 = vcmask 162816
        %v592 = vsel %vm590, %v585, %v426
        %v594 = vsel %vm590, %v587, %v428
        %v596 = vsel %vm590, %v589, %v430
        %vm597 = vcmask 195584
        %v599 = vsel %vm597, %v592, %v442
        %v601 = vsel %vm597, %v594, %v444
        %v603 = vsel %vm597, %v596, %v446
        %vm604 = vcmask 228352
        %v606 = vsel %vm604, %v599, %v452
        %v608 = vsel %vm604, %v601, %v454
        %v610 = vsel %vm604, %v603, %v456
        %vm611 = vcmask 261120
        %v613 = vsel %vm611, %v606, %v478
        %v615 = vsel %vm611, %v608, %v480
        %v617 = vsel %vm611, %v610, %v482
        %vm618 = vcmask 293888
        %v620 = vsel %vm618, %v613, %v489
        %v622 = vsel %vm618, %v615, %v491
        %v624 = vsel %vm618, %v617, %v493
        %vm625 = vcmask 326656
        %v627 = vsel %vm625, %v620, %v495
        %v629 = vsel %vm625, %v622, %v497
        %v631 = vsel %vm625, %v624, %v499
        %vm632 = vcmask 359424
        %v634 = vsel %vm632, %v627, %v509
        %v636 = vsel %vm632, %v629, %v511
        %v638 = vsel %vm632, %v631, %v513
        %vm639 = vcmask 392192
        %v641 = vsel %vm639, %v634, %v518
        %v643 = vsel %vm639, %v636, %v520
        %v645 = vsel %vm639, %v638, %v522
        %vm646 = vcmask 424960
        %v648 = vsel %vm646, %v641, %v541
        %v650 = vsel %vm646, %v643, %v543
        %v652 = vsel %vm646, %v645, %v545
        %vm653 = vcmask 457728
        %v655 = vsel %vm653, %v648, %v551
        %v657 = vsel %vm653, %v650, %v553
        %v659 = vsel %vm653, %v652, %v555
        %vm660 = vcmask 490496
        %v662 = vsel %vm660, %v655, %v557
        %v664 = vsel %vm660, %v657, %v559
        %v666 = vsel %vm660, %v659, %v561
        %v667 = vpack.c.b16 %v524, %v458
        %vm668 = vsmask.f32 3328
        %v669 = vrot.slane %v464, 4
        %v670 = vrot.slane %v467, 5
        %v671 = vor.u32 %v669, %v670
        %v673 = vshrl.u32 %v667, 16
        %v675 = vrot.slane %v673, 4
        %v676 = vshll.u32 %v667, 16
        %v678 = vrot.slane %v676, 5
        %v679 = vor.u32 %v675, %v678
        %v680 = vsel %vm668, %v671, %v679
        %681 = vrot.lane.b32.xlu0 %v671, 4
        %v682 = vpop.permute.xlu0 %681
        %683 = vrot.lane.b32.xlu0 %v680, 4
        %v684 = vpop.permute.xlu0 %683
        %685 = vrot.lane.b32.xlu0 %v679, 4
        %v686 = vpop.permute.xlu0 %685
        %v688 = vunpack.c.l.b16 %v308
        %v689 = vpack.c.b16 %v688, %v688
        %v690 = vrot.slane %v667, 5
        %v691 = vsel %vm371, %v449, %v690
        %v692 = vrot.slane %v689, 5
        %v693 = vsel %vm371, %v690, %v692
        %694 = vrot.lane.b32.xlu0 %v449, 8
        %v695 = vpop.permute.xlu0 %694
        %696 = vrot.lane.b32.xlu0 %v691, 8
        %v697 = vpop.permute.xlu0 %696
        %698 = vrot.lane.b32.xlu0 %v693, 8
        %v699 = vpop.permute.xlu0 %698
        %v700 = vrot.slane %v673, 5
        %v701 = vrot.slane %v676, 6
        %v702 = vor.u32 %v700, %v701
        %v703 = vsel %vm384, %v470, %v702
        %v705 = vshrl.u32 %v689, 16
        %v707 = vrot.slane %v705, 5
        %v708 = vshll.u32 %v689, 16
        %v710 = vrot.slane %v708, 6
        %v711 = vor.u32 %v707, %v710
        %v712 = vsel %vm384, %v702, %v711
        %713 = vrot.lane.b32.xlu0 %v470, 12
        %v714 = vpop.permute.xlu0 %713
        %715 = vrot.lane.b32.xlu0 %v703, 12
        %v716 = vpop.permute.xlu0 %715
        %717 = vrot.lane.b32.xlu0 %v712, 12
        %v718 = vpop.permute.xlu0 %717
        %vm719 = vsmask.f32 256
        %v720 = vrot.slane %v464, 7
        %v721 = vor.u32 %v720, %v467
        %v722 = vrot.slane %v673, 7
        %v723 = vor.u32 %v722, %v676
        %v724 = vsel %vm719, %v720, %v723
        %v725 = vrot.slane %v705, 7
        %v726 = vor.u32 %v725, %v708
        %v727 = vsel %vm719, %v722, %v726
        %728 = vrot.lane.b32.xlu0 %v721, 16
        %v729 = vpop.permute.xlu0 %728
        %730 = vrot.lane.b32.xlu0 %v724, 16
        %v731 = vpop.permute.xlu0 %730
        %732 = vrot.lane.b32.xlu0 %v727, 16
        %v733 = vpop.permute.xlu0 %732
        %734 = vrot.lane.b32.xlu0 %v447, 20
        %v735 = vpop.permute.xlu0 %734
        %736 = vrot.lane.b32.xlu0 %v667, 20
        %v737 = vpop.permute.xlu0 %736
        %738 = vrot.lane.b32.xlu0 %v689, 20
        %v739 = vpop.permute.xlu0 %738
        %v740 = vpack.c.b16 %v688, %v524
        %v741 = vrot.slane %v527, 4
        %v742 = vrot.slane %v530, 5
        %v743 = vor.u32 %v741, %v742
        %v745 = vshrl.u32 %v740, 16
        %v747 = vrot.slane %v745, 4
        %v748 = vshll.u32 %v740, 16
        %v750 = vrot.slane %v748, 5
        %v751 = vor.u32 %v747, %v750
        %v752 = vsel %vm668, %v743, %v751
        %753 = vrot.lane.b32.xlu0 %v743, 24
        %v754 = vpop.permute.xlu0 %753
        %755 = vrot.lane.b32.xlu0 %v752, 24
        %v756 = vpop.permute.xlu0 %755
        %757 = vrot.lane.b32.xlu0 %v751, 24
        %v758 = vpop.permute.xlu0 %757
        %v760 = vunpack.c.l.b16 %v309
        %v761 = vpack.c.b16 %v760, %v760
        %v762 = vrot.slane %v740, 5
        %v763 = vsel %vm371, %v515, %v762
        %v764 = vrot.slane %v761, 5
        %v765 = vsel %vm371, %v762, %v764
        %766 = vrot.lane.b32.xlu0 %v515, 28
        %v767 = vpop.permute.xlu0 %766
        %768 = vrot.lane.b32.xlu0 %v763, 28
        %v769 = vpop.permute.xlu0 %768
        %770 = vrot.lane.b32.xlu0 %v765, 28
        %v771 = vpop.permute.xlu0 %770
        %v772 = vrot.slane %v745, 5
        %v773 = vrot.slane %v748, 6
        %v774 = vor.u32 %v772, %v773
        %v775 = vsel %vm384, %v533, %v774
        %v777 = vshrl.u32 %v761, 16
        %v779 = vrot.slane %v777, 5
        %v780 = vshll.u32 %v761, 16
        %v782 = vrot.slane %v780, 6
        %v783 = vor.u32 %v779, %v782
        %v784 = vsel %vm384, %v774, %v783
        %785 = vrot.lane.b32.xlu0 %v533, 32
        %v786 = vpop.permute.xlu0 %785
        %787 = vrot.lane.b32.xlu0 %v775, 32
        %v788 = vpop.permute.xlu0 %787
        %789 = vrot.lane.b32.xlu0 %v784, 32
        %v790 = vpop.permute.xlu0 %789
        %v792 = vsel %vm562, %v370, %v682
        %v794 = vsel %vm562, %v514, %v684
        %v796 = vsel %vm562, %v525, %v686
        %v798 = vsel %vm569, %v792, %v695
        %v800 = vsel %vm569, %v794, %v697
        %v802 = vsel %vm569, %v796, %v699
        %v804 = vsel %vm576, %v798, %v714
        %v806 = vsel %vm576, %v800, %v716
        %v808 = vsel %vm576, %v802, %v718
        %v810 = vsel %vm583, %v804, %v729
        %v812 = vsel %vm583, %v806, %v731
        %v814 = vsel %vm583, %v808, %v733
        %v816 = vsel %vm590, %v810, %v735
        %v818 = vsel %vm590, %v812, %v737
        %v820 = vsel %vm590, %v814, %v739
        %v822 = vsel %vm597, %v816, %v754
        %v824 = vsel %vm597, %v818, %v756
        %v826 = vsel %vm597, %v820, %v758
        %v828 = vsel %vm604, %v822, %v767
        %v830 = vsel %vm604, %v824, %v769
        %v832 = vsel %vm604, %v826, %v771
        %v834 = vsel %vm611, %v828, %v786
        %v836 = vsel %vm611, %v830, %v788
        %v838 = vsel %vm611, %v832, %v790
        %v839 = vshrl.u32 %v834, 16
        %v841 = vshll.u32 %v834, 16
        %v843 = vrot.slane %v841, 1
        %v844 = vor.u32 %v839, %v843
        %v845 = vshll.u32 %v836, 16
        %v847 = vrot.slane %v845, 1
        %v848 = vsel %vm339, %v844, %v847
        %v849 = vshrl.u32 %v836, 16
        %v851 = vor.u32 %v849, %v847
        %v852 = vshll.u32 %v838, 16
        %v854 = vrot.slane %v852, 1
        %v855 = vsel %vm339, %v851, %v854
        %v856 = vshrl.u32 %v838, 16
        %v858 = vor.u32 %v856, %v854
        %859 = vrot.lane.b32.xlu0 %v848, 64
        %v860 = vpop.permute.xlu0 %859
        %861 = vrot.lane.b32.xlu0 %v855, 64
        %v862 = vpop.permute.xlu0 %861
        %863 = vrot.lane.b32.xlu0 %v858, 64
        %v864 = vpop.permute.xlu0 %863
        %vm865 = vcmask 523264
        %v867 = vsel %vm865, %v662, %v860
        %v869 = vsel %vm865, %v664, %v862
        %v871 = vsel %vm865, %v666, %v864
        %vm875 = vcmask 1044480
        %v876 = vrot.slane %v867, 3
        %v877 = vrot.slane %v869, 3
        %v878 = vsel %vm875, %v876, %v877
        %v879 = vrot.slane %v871, 3
        %v880 = vsel %vm875, %v877, %v879
        %v894 = vunpack.c.l.b16 %v313
        %v895 = vunpack.c.l.b16 %v314
        %v896 = vunpack.c.l.b16 %v315
        %v897 = vunpack.c.l.b16 %v316
        %v898 = vunpack.c.l.b16 %v317
        %v899 = vunpack.c.l.b16 %v318
        %v900 = vunpack.c.l.b16 %v319
        %v901 = vunpack.c.l.b16 %v320
        %v902 = vunpack.c.l.b16 %v321
        %v903 = vunpack.c.l.b16 %v322
        %v904 = vunpack.c.l.b16 %v323
        %v905 = vunpack.c.l.b16 %v324
        %v906 = vunpack.c.l.b16 %v325
        %v907 = vpack.c.b16 %v895, %v894
        %v908 = vpack.c.b16 %v897, %v896
        %v909 = vpack.c.b16 %v899, %v898
        %v910 = vpack.c.b16 %v901, %v900
        %v911 = vpack.c.b16 %v903, %v902
        %v912 = vpack.c.b16 %v905, %v904
        %v913 = vpack.c.b16 %v906, %v906
        %vm920 = vcmask 818176
        %v922 = vsel %vm920, %v878, 0
        %v925 = vsel %vm920, %v880, 0
        %vm927 = vcmask 1041408
        %v929 = vsel %vm927, %v913, 0
        %931 = vmatpush.bf16.msra.mxu0 0
        %932 = vmatpush.bf16.msra.mxu0 %v929
        %933 = vmatpush.bf16.msra.mxu0 %v912
        %934 = vmatpush.bf16.msra.mxu0 %v911
        %935 = vmatpush.bf16.msra.mxu0 %v910
        %936 = vmatpush.bf16.msra.mxu0 %v909
        %937 = vmatpush.bf16.msra.mxu0 %v908
        %938 = vmatpush.bf16.msra.mxu0 %v907
        %939 = vmatmul.bf16.gmra.mxu0 %v922
        %v940 = vpop.f32.mrf.mxu0
        %v941 = vadd.f32 0.0, %v940
        %v942 = vpop.f32.mrf.mxu0
        %v943 = vadd.f32 0.0, %v942
        %944 = vmatmul.bf16.gmra.mxu0 %v925
        %v945 = vpop.f32.mrf.mxu0
        %v946 = vadd.f32 0.0, %v945
        %v947 = vpop.f32.mrf.mxu0
        %v948 = vadd.f32 0.0, %v947
        %949 = vdwg.mxu0
        %v950 = vld [vmem:[#allocation2] sm:$0xff]
        %v951 = vld [vmem:[#allocation2 + $0x8] sm:$0xff]
        %v952 = vld [vmem:[#allocation2 + $0x10] sm:$0xff]
        %v953 = vld [vmem:[#allocation2 + $0x18] sm:$0xff]
        %v954 = vadd.f32 %v950, %v941
        %v955 = vadd.f32 %v951, %v943
        %v956 = vadd.f32 %v952, %v946
        %v957 = vadd.f32 %v953, %v948
        %958 = vst [vmem:[#allocation2] sm:$0xff] %v954
        %959 = vst [vmem:[#allocation2 + $0x8] sm:$0xff] %v955
        %960 = vst [vmem:[#allocation2 + $0x10] sm:$0xff] %v956
        %961 = vst [vmem:[#allocation2 + $0x18] sm:$0xff] %v957
      $region44: #{upsample_forward.4} parent=35 // pred_fallthru
        _
      %p962 = scmp.eq.s32.totalorder %s22, 4
      // Predicated region
      $region45: #{upsample_forward.4} parent=35 // pred_check
        %p963 = pneg %p962
      $region46: #{upsample_forward.4} parent=35 // pred_check_branch
        %965 = sbr.rel (%p963) target = $region48
      $region47: #{upsample_forward.4} parent=35 // pred_region
        %v966 = vld [vmem:[#allocation2] sm:$0xff]
        %v967 = vld [vmem:[#allocation2 + $0x8] sm:$0xff]
        %v968 = vld [vmem:[#allocation2 + $0x10] sm:$0xff]
        %v969 = vld [vmem:[#allocation2 + $0x18] sm:$0xff]
        %v970 = vld [vmem:[%s2] sm:$0x1]
        %v972 = vperm.slane %v970, 0
        %v974 = vadd.f32 %v966, %v972
        %v975 = vadd.f32 %v967, %v972
        %v976 = vadd.f32 %v968, %v972
        %v977 = vadd.f32 %v969, %v972
        %v978 = vmax.f32 %v974, 0.0
        %v979 = vmax.f32 %v975, 0.0
        %v980 = vmax.f32 %v976, 0.0
        %v981 = vmax.f32 %v977, 0.0
        %v982 = vld [vmem:[%s3] sm:$0xff]
        %v983 = vld [vmem:[%s3 + $0x8] sm:$0xff]
        %v984 = vld [vmem:[%s3 + $0x10] sm:$0xff]
        %v985 = vld [vmem:[%s3 + $0x18] sm:$0xff]
        %987 = vset.pattern.permute.xlu0 0
        %988 = vperm.xlu0 %987, %v982
        %v989 = vpop.permute.xlu0 %988
        %992 = vset.pattern.permute.xlu0 0
        %993 = vperm.xlu0 %992, %v983
        %v994 = vpop.permute.xlu0 %993
        %997 = vset.pattern.permute.xlu0 0
        %998 = vperm.xlu0 %997, %v984
        %v999 = vpop.permute.xlu0 %998
        %1002 = vset.pattern.permute.xlu0 0
        %1003 = vperm.xlu0 %1002, %v985
        %v1004 = vpop.permute.xlu0 %1003
        %v1006 = vmul.f32 %v978, %v989
        %v1007 = vmul.f32 %v979, %v994
        %v1008 = vmul.f32 %v980, %v999
        %v1009 = vmul.f32 %v981, %v1004
        %1010 = vst [vmem:[%s282] sm:$0xf] 0
        %1011 = vst [vmem:[%s282 + $0x4] sm:$0xf] 0
        %1012 = vst [vmem:[%s282 + $0x8] sm:$0xf] 0
        %1013 = vst [vmem:[%s282 + $0xc] sm:$0xf] 0
        %1014 = vst [vmem:[%s282 + $0x10] sm:$0xf] 0
        %1015 = vst [vmem:[%s282 + $0x14] sm:$0xf] 0
        %1016 = vst [vmem:[%s282 + $0x18] sm:$0xf] 0
        %1017 = vst [vmem:[%s282 + $0x1c] sm:$0xf] 0
        %1018 = vst [vmem:[%s282 + $0x20] sm:$0xf] 0
        %1019 = vst [vmem:[%s282 + $0x24] sm:$0xf] 0
        %1020 = vst [vmem:[%s282 + $0x28] sm:$0xf] 0
        %1021 = vst [vmem:[%s282 + $0x2c] sm:$0xf] 0
        %v1022 = vpack.c.bf16 %v1006, %v1006
        %v1023 = vpack.c.bf16 %v1007, %v1007
        %v1024 = vpack.c.bf16 %v1008, %v1008
        %v1025 = vpack.c.bf16 %v1009, %v1009
        %1026 = vst [vmem:[%s282 + $0x10] sm:$0xf] %v1022
        %1027 = vst [vmem:[%s282 + $0x14] sm:$0xf] %v1023
        %1028 = vst [vmem:[%s282 + $0x18] sm:$0xf] %v1024
        %1029 = vst [vmem:[%s282 + $0x1c] sm:$0xf] %v1025
      $region48: #{upsample_forward.4} parent=35 // pred_fallthru
        _
      %p1030 = scmp.lt.s32.totalorder %s20, 1
      %s1031 = scalar_select %p1030, %s20, 1
      %p1032 = scmp.lt.s32.totalorder %s21, 3
      %s1033 = scalar_select %p1032, %s21, 3
      %s1034 = smul.addr %s1033, 12
      %s1035 = smul.addr %s1031, 48
      %s1036 = sadd.s32 %s1034, %s1035
      %s1037 = smul.addr %s1036, 4
      %s1038 = scalar_lea.vmem %s4, %s1037
      // Predicated region
      $region49: #{upsample_forward.4} parent=35 // pred_check
        %p1039 = pneg %p157
      $region50: #{upsample_forward.4} parent=35 // pred_check_branch
        %1041 = sbr.rel (%p1039) target = $region52
      $region51: #{upsample_forward.4} parent=35 // pred_region
        _
      $region52: #{upsample_forward.4} parent=35 // pred_fallthru
        _
    $region36: #{upsample_forward.4} parent=5 // pred_fallthru
      _
    %p1042 = scmp.le.s32.totalorder 2, %s10
    // Predicated region
    $region53: #{upsample_forward.4} parent=5 // pred_check
      %p1043 = pneg %p1042
    $region54: #{upsample_forward.4} parent=5 // pred_check_branch
      %1045 = sbr.rel (%p1043) target = $region56
    $region55: #{upsample_forward.4} parent=5 // pred_region
      %s1046 = ssub.s32 %s10, 2
      // Predicated region
      $region57: #{upsample_forward.4} parent=55 // pred_check
        %p1047 = pneg %p163
      $region58: #{upsample_forward.4} parent=55 // pred_check_branch
        %1049 = sbr.rel (%p1047) target = $region60
      $region59: #{upsample_forward.4} parent=55 // pred_region
        %p1050 = scmp.lt.s32.totalorder %s23, 1
        %s1051 = scalar_select %p1050, %s23, 1
        %p1052 = scmp.lt.s32.totalorder %s24, 3
        %s1053 = scalar_select %p1052, %s24, 3
        %s1054 = smul.addr %s1053, 12
        %s1055 = smul.addr %s1051, 48
        %s1056 = sadd.s32 %s1054, %s1055
        %s1057 = smul.addr %s1056, 4
        %s1058 = scalar_lea.vmem %s4, %s1057
      $region60: #{upsample_forward.4} parent=55 // pred_fallthru
        _
    $region56: #{upsample_forward.4} parent=5 // pred_fallthru
      _
  $region6: #{upsample_forward.4} parent=0 // loop_footer
    %s14 = sadd.s32 1, %s10
  $region7: #{upsample_forward.4} parent=0 // loop_footer_branch
    %9 = sbr.rel target = $region3
  $region8: #{upsample_forward.4} parent=0 // loop_exit
    _

// kernel: upsample_forward.6
$region0: #{upsample_forward.6}
  #allocation0 [shape = 'u32[]', space=smem, size = 0x4, offset = 0x4, fixed_abs, tag = 'smem constant byte address 0x4 - core index']
  #allocation1 [shape = 'u32[72,128]{1,0:T(1,128)}', space=vmem, size = 0x9000, scoped, tag = 'internal scratch']
  #allocation2 [shape = 'f32[96,128]{1,0:T(8,128)}', space=vmem, size = 0xc000, scoped, tag = 'scratch operand']
  %s0 = inlined_call_operand.vmem [shape: bf16[2,8,160,8], index: 0, kind: input, shape index: {}]
  %s1 = inlined_call_operand.vmem [shape: bf16[5,200,128], index: 1, kind: input, shape index: {}]
  %s2 = inlined_call_operand.vmem [shape: f32[1,128], index: 2, kind: input, shape index: {}]
  %s3 = inlined_call_operand.vmem [shape: f32[96,1], index: 3, kind: input, shape index: {}]
  %s4 = inlined_call_operand.vmem [shape: bf16[2,8,160,128], index: 4, kind: output, shape index: {}]
  %s5 = sld [smem:[#allocation0]]
  $region61: #{upsample_forward.6} parent=0
    _
  %s7 = ssub.s32 1, %s5
  %s8 = scalar_select 0, %s7, %s5
  loop: start=0, step=1, limit=82
  $region2: #{upsample_forward.6} parent=0 // loop_pre_header
    _
  $region3: #{upsample_forward.6} parent=0 // loop_header
    %s10 = sphi 0, %s14
    %p11 = scmp.ge.s32.totalorder %s10, 82
    %s17 = sphi 0, %s36
    %s18 = sphi 0, %s32
    %s19 = sphi 0, %s28
    %s20 = sphi 0, %s17
    %s21 = sphi 0, %s18
    %s22 = sphi 0, %s19
    %s23 = sphi 0, %s20
    %s24 = sphi 0, %s21
    %s25 = sphi 0, %s22
    %s53 = sphi 0, %s55
    %s56 = sphi 0, %s53
    %s57 = sphi 0, %s56
    %s73 = sphi 0, %s57
    %s77 = sphi 0, %s77
    %s79 = sphi 0, %s77
    %s80 = sphi 0, %s79
    %s94 = sphi 0, %s80
    %s98 = sphi 0, %s98
    %s100 = sphi 0, %s98
    %s101 = sphi 0, %s100
    %s115 = sphi 0, %s101
    %s119 = sphi 0, %s119
    %s121 = sphi 0, %s119
    %s122 = sphi 0, %s121
    %s136 = sphi 0, %s122
    %s144 = sphi 0, %s146
    %s147 = sphi 0, %s144
    %s148 = sphi 0, %s147
    %s164 = sphi 0, %s148
  $region4: #{upsample_forward.6} parent=0 // loop_header_branch
    %13 = sbr.rel (%p11) target = $region8
  $region5: #{upsample_forward.6} parent=0 // loop_body
    %s15 = ssub.s32 %s10, 1
    %s16 = ssub.s32 %s10, 2
    %s26 = sadd.s32 1, %s19
    %p27 = scmp.ge.s32.totalorder %s26, 5
    %s28 = scalar_select %p27, 0, %s26
    %s29 = sadd.s32 1, %s18
    %s30 = scalar_select %p27, %s29, %s18
    %p31 = scmp.ge.s32.totalorder %s30, 8
    %s32 = scalar_select %p31, 0, %s30
    %s33 = sadd.s32 1, %s17
    %s34 = scalar_select %p31, %s33, %s17
    %p35 = scmp.ge.s32.totalorder %s34, 2
    %s36 = scalar_select %p35, 0, %s34
    %s37 = sadd.s32 %s18, %s19
    %s38 = ssub.s32 %s37, 2
    %p39 = scmp.gt.s32.totalorder %s38, 0
    %s40 = scalar_select %p39, %s38, 0
    %p41 = scmp.lt.s32.totalorder %s40, 7
    %s42 = scalar_select %p41, %s40, 7
    %s43 = sadd.s32 %s32, %s28
    %s44 = ssub.s32 %s43, 2
    %p45 = scmp.gt.s32.totalorder %s44, 0
    %s46 = scalar_select %p45, %s44, 0
    %p47 = scmp.lt.s32.totalorder %s46, 7
    %s48 = scalar_select %p47, %s46, 7
    %s49 = ssub.s32 %s17, %s36
    %s50 = ssub.s32 %s42, %s48
    %s51 = sor.u32 %s49, %s50
    %p52 = scmp.eq.s32.totalorder %s51, 0
    %s54 = sadd.s32 %s53, 1
    %s55 = scalar_select %p52, %s53, %s54
    %p58 = pneg %p52
    %p59 = scmp.eq.s32.totalorder %s10, 79
    %p60 = por %p58, %p59
    %p61 = scmp.ne.s32.totalorder %s53, %s56
    %p62 = scmp.eq.s32.totalorder %s10, 0
    %p63 = por %p61, %p62
    %p64 = scmp.ne.s32.totalorder %s53, %s56
    %p65 = scmp.eq.s32.totalorder %s15, 79
    %p66 = por %p64, %p65
    %p67 = scmp.ne.s32.totalorder %s56, %s57
    %p68 = scmp.eq.s32.totalorder %s15, 0
    %p69 = por %p67, %p68
    %p70 = scmp.ne.s32.totalorder %s56, %s57
    %p71 = scmp.eq.s32.totalorder %s16, 79
    %p72 = por %p70, %p71
    %p74 = scmp.ne.s32.totalorder %s57, %s73
    %p75 = scmp.eq.s32.totalorder %s16, 0
    %p76 = por %p74, %p75
    %s78 = sadd.s32 %s77, 1
    %p81 = scmp.eq.s32.totalorder %s10, 79
    %p82 = scmp.ne.s32.totalorder %s77, %s79
    %p83 = scmp.eq.s32.totalorder %s10, 0
    %p84 = por %p82, %p83
    %p85 = scmp.ne.s32.totalorder %s77, %s79
    %p86 = scmp.eq.s32.totalorder %s15, 79
    %p87 = por %p85, %p86
    %p88 = scmp.ne.s32.totalorder %s79, %s80
    %p89 = scmp.eq.s32.totalorder %s15, 0
    %p90 = por %p88, %p89
    %p91 = scmp.ne.s32.totalorder %s79, %s80
    %p92 = scmp.eq.s32.totalorder %s16, 79
    %p93 = por %p91, %p92
    %p95 = scmp.ne.s32.totalorder %s80, %s94
    %p96 = scmp.eq.s32.totalorder %s16, 0
    %p97 = por %p95, %p96
    %s99 = sadd.s32 %s98, 1
    %p102 = scmp.eq.s32.totalorder %s10, 79
    %p103 = scmp.ne.s32.totalorder %s98, %s100
    %p104 = scmp.eq.s32.totalorder %s10, 0
    %p105 = por %p103, %p104
    %p106 = scmp.ne.s32.totalorder %s98, %s100
    %p107 = scmp.eq.s32.totalorder %s15, 79
    %p108 = por %p106, %p107
    %p109 = scmp.ne.s32.totalorder %s100, %s101
    %p110 = scmp.eq.s32.totalorder %s15, 0
    %p111 = por %p109, %p110
    %p112 = scmp.ne.s32.totalorder %s100, %s101
    %p113 = scmp.eq.s32.totalorder %s16, 79
    %p114 = por %p112, %p113
    %p116 = scmp.ne.s32.totalorder %s101, %s115
    %p117 = scmp.eq.s32.totalorder %s16, 0
    %p118 = por %p116, %p117
    %s120 = sadd.s32 %s119, 1
    %p123 = scmp.eq.s32.totalorder %s10, 79
    %p124 = scmp.ne.s32.totalorder %s119, %s121
    %p125 = scmp.eq.s32.totalorder %s10, 0
    %p126 = por %p124, %p125
    %p127 = scmp.ne.s32.totalorder %s119, %s121
    %p128 = scmp.eq.s32.totalorder %s15, 79
    %p129 = por %p127, %p128
    %p130 = scmp.ne.s32.totalorder %s121, %s122
    %p131 = scmp.eq.s32.totalorder %s15, 0
    %p132 = por %p130, %p131
    %p133 = scmp.ne.s32.totalorder %s121, %s122
    %p134 = scmp.eq.s32.totalorder %s16, 79
    %p135 = por %p133, %p134
    %p137 = scmp.ne.s32.totalorder %s122, %s136
    %p138 = scmp.eq.s32.totalorder %s16, 0
    %p139 = por %p137, %p138
    %s140 = ssub.s32 %s17, %s36
    %s141 = ssub.s32 %s18, %s32
    %s142 = sor.u32 %s140, %s141
    %p143 = scmp.eq.s32.totalorder %s142, 0
    %s145 = sadd.s32 %s144, 1
    %s146 = scalar_select %p143, %s144, %s145
    %p149 = pneg %p143
    %p150 = scmp.eq.s32.totalorder %s10, 79
    %p151 = por %p149, %p150
    %p152 = scmp.ne.s32.totalorder %s144, %s147
    %p153 = scmp.eq.s32.totalorder %s10, 0
    %p154 = por %p152, %p153
    %p155 = scmp.ne.s32.totalorder %s144, %s147
    %p156 = scmp.eq.s32.totalorder %s15, 79
    %p157 = por %p155, %p156
    %p158 = scmp.ne.s32.totalorder %s147, %s148
    %p159 = scmp.eq.s32.totalorder %s15, 0
    %p160 = por %p158, %p159
    %p161 = scmp.ne.s32.totalorder %s147, %s148
    %p162 = scmp.eq.s32.totalorder %s16, 79
    %p163 = por %p161, %p162
    %p165 = scmp.ne.s32.totalorder %s148, %s164
    %p166 = scmp.eq.s32.totalorder %s16, 0
    %p167 = por %p165, %p166
    %p168 = scmp.le.s32.totalorder 1, %s10
    %p169 = scmp.lt.s32.totalorder %s10, 81
    %p170 = pnand %p168, %p169
    %p171 = pneg %p170
    // Predicated region
    $region9: #{upsample_forward.6} parent=5 // pred_check
      _
    $region10: #{upsample_forward.6} parent=5 // pred_check_branch
      %173 = sbr.rel (%p170) target = $region12
    $region11: #{upsample_forward.6} parent=5 // pred_region
      %s174 = ssub.s32 %s10, 1
      // Predicated region
      $region13: #{upsample_forward.6} parent=11 // pred_check
        %p175 = pneg %p90
      $region14: #{upsample_forward.6} parent=11 // pred_check_branch
        %177 = sbr.rel (%p175) target = $region16
      $region15: #{upsample_forward.6} parent=11 // pred_region
        _
      $region16: #{upsample_forward.6} parent=11 // pred_fallthru
        _
      // Predicated region
      $region17: #{upsample_forward.6} parent=11 // pred_check
        %p178 = pneg %p111
      $region18: #{upsample_forward.6} parent=11 // pred_check_branch
        %180 = sbr.rel (%p178) target = $region20
      $region19: #{upsample_forward.6} parent=11 // pred_region
        _
      $region20: #{upsample_forward.6} parent=11 // pred_fallthru
        _
      // Predicated region
      $region21: #{upsample_forward.6} parent=11 // pred_check
        %p181 = pneg %p132
      $region22: #{upsample_forward.6} parent=11 // pred_check_branch
        %183 = sbr.rel (%p181) target = $region24
      $region23: #{upsample_forward.6} parent=11 // pred_region
        _
      $region24: #{upsample_forward.6} parent=11 // pred_fallthru
        _
    $region12: #{upsample_forward.6} parent=5 // pred_fallthru
      _
    %p184 = scmp.lt.s32.totalorder %s10, 80
    // Predicated region
    $region25: #{upsample_forward.6} parent=5 // pred_check
      %p185 = pneg %p184
    $region26: #{upsample_forward.6} parent=5 // pred_check_branch
      %187 = sbr.rel (%p185) target = $region28
    $region27: #{upsample_forward.6} parent=5 // pred_region
      // Predicated region
      $region29: #{upsample_forward.6} parent=27 // pred_check
        %p188 = pneg %p63
      $region30: #{upsample_forward.6} parent=27 // pred_check_branch
        %190 = sbr.rel (%p188) target = $region32
      $region31: #{upsample_forward.6} parent=27 // pred_region
        %s191 = sadd.s32 %s18, %s19
        %s192 = ssub.s32 %s191, 2
        %p193 = scmp.gt.s32.totalorder %s192, 0
        %s194 = scalar_select %p193, %s192, 0
        %p195 = scmp.lt.s32.totalorder %s194, 7
        %s196 = scalar_select %p195, %s194, 7
        %p197 = scmp.lt.s32.totalorder %s17, 1
        %s198 = scalar_select %p197, %s17, 1
        %p199 = scmp.lt.s32.totalorder %s196, 7
        %s200 = scalar_select %p199, %s196, 7
        %s201 = smul.addr %s200, 20
        %s202 = smul.addr %s198, 160
        %s203 = sadd.s32 %s201, %s202
        %s204 = smul.addr %s203, 4
        %s205 = scalar_lea.vmem %s0, %s204
        %s206 = sadd.s32 %s18, %s19
        %s207 = ssub.s32 %s206, 2
        %p208 = scmp.gt.s32.totalorder %s207, 0
        %s209 = scalar_select %p208, %s207, 0
        %p210 = scmp.lt.s32.totalorder %s209, 7
        %s211 = scalar_select %p210, %s209, 7
      $region32: #{upsample_forward.6} parent=27 // pred_fallthru
        _
    $region28: #{upsample_forward.6} parent=5 // pred_fallthru
      _
    %p212 = scmp.le.s32.totalorder 1, %s10
    %p213 = scmp.lt.s32.totalorder %s10, 81
    %p214 = pnand %p212, %p213
    %p215 = pneg %p214
    // Predicated region
    $region33: #{upsample_forward.6} parent=5 // pred_check
      _
    $region34: #{upsample_forward.6} parent=5 // pred_check_branch
      %217 = sbr.rel (%p214) target = $region36
    $region35: #{upsample_forward.6} parent=5 // pred_region
      %s218 = ssub.s32 %s10, 1
      %s219 = sadd.s32 %s21, %s22
      %s220 = ssub.s32 %s219, 2
      %p221 = scmp.gt.s32.totalorder %s220, 0
      %s222 = scalar_select %p221, %s220, 0
      %p223 = scmp.lt.s32.totalorder %s222, 7
      %s224 = scalar_select %p223, %s222, 7
      %p225 = scmp.lt.s32.totalorder %s20, 1
      %s226 = scalar_select %p225, %s20, 1
      %p227 = scmp.lt.s32.totalorder %s224, 7
      %s228 = scalar_select %p227, %s224, 7
      %s229 = smul.addr %s228, 20
      %s230 = smul.addr %s226, 160
      %s231 = sadd.s32 %s229, %s230
      %s232 = smul.addr %s231, 4
      %s233 = scalar_lea.vmem %s0, %s232
      %p234 = pneg %p69
      %p235 = pneg %p66
      %p236 = pneg %p90
      %p237 = pneg %p87
      %p238 = pneg %p111
      %p239 = pneg %p108
      %p240 = pneg %p132
      %p241 = pneg %p129
      %p242 = pneg %p160
      %p243 = pneg %p157
      %p244 = scmp.lt.s32.totalorder %s20, 1
      %s245 = scalar_select %p244, %s20, 1
      %p246 = scmp.lt.s32.totalorder %s21, 7
      %s247 = scalar_select %p246, %s21, 7
      %s248 = smul.addr %s247, 20
      %s249 = smul.addr %s245, 160
      %s250 = sadd.s32 %s248, %s249
      %s251 = smul.addr %s250, 4
      %s252 = scalar_lea.vmem %s4, %s251
      %s253 = sadd.s32 %s21, %s22
      %s254 = ssub.s32 %s253, 2
      %p255 = scmp.gt.s32.totalorder %s254, 0
      %s256 = scalar_select %p255, %s254, 0
      %p257 = scmp.lt.s32.totalorder %s256, 7
      %s258 = scalar_select %p257, %s256, 7
      %p259 = scmp.lt.s32.totalorder %s20, 1
      %s260 = scalar_select %p259, %s20, 1
      %p261 = scmp.lt.s32.totalorder %s258, 7
      %s262 = scalar_select %p261, %s258, 7
      %s263 = smul.addr %s262, 20
      %s264 = smul.addr %s260, 160
      %s265 = sadd.s32 %s263, %s264
      %s266 = smul.addr %s265, 4
      %s267 = scalar_lea.vmem %s0, %s266
      %s268 = sadd.s32 %s21, %s22
      %s269 = ssub.s32 %s268, 2
      %p270 = scmp.gt.s32.totalorder %s269, 0
      %s271 = scalar_select %p270, %s269, 0
      %p272 = scmp.lt.s32.totalorder %s271, 7
      %s273 = scalar_select %p272, %s271, 7
      %p274 = scmp.lt.s32.totalorder %s20, 1
      %s275 = scalar_select %p274, %s20, 1
      %p276 = scmp.lt.s32.totalorder %s21, 7
      %s277 = scalar_select %p276, %s21, 7
      %s278 = smul.addr %s277, 20
      %s279 = smul.addr %s275, 160
      %s280 = sadd.s32 %s278, %s279
      %s281 = smul.addr %s280, 4
      %s282 = scalar_lea.vmem %s4, %s281
      %p284 = scmp.eq.s32.totalorder %s22, 0
      // Predicated region
      $region37: #{upsample_forward.6} parent=35 // pred_check
        %p285 = pneg %p284
      $region38: #{upsample_forward.6} parent=35 // pred_check_branch
        %287 = sbr.rel (%p285) target = $region40
      $region39: #{upsample_forward.6} parent=35 // pred_region
        %288 = vst [vmem:[#allocation2] sm:$0xff] 0.0
        %289 = vst [vmem:[#allocation2 + $0x8] sm:$0xff] 0.0
        %290 = vst [vmem:[#allocation2 + $0x10] sm:$0xff] 0.0
        %291 = vst [vmem:[#allocation2 + $0x18] sm:$0xff] 0.0
        %292 = vst [vmem:[#allocation2 + $0x20] sm:$0xff] 0.0
        %293 = vst [vmem:[#allocation2 + $0x28] sm:$0xff] 0.0
        %294 = vst [vmem:[#allocation2 + $0x30] sm:$0xff] 0.0
        %295 = vst [vmem:[#allocation2 + $0x38] sm:$0xff] 0.0
        %296 = vst [vmem:[#allocation2 + $0x40] sm:$0xff] 0.0
        %297 = vst [vmem:[#allocation2 + $0x48] sm:$0xff] 0.0
        %298 = vst [vmem:[#allocation2 + $0x50] sm:$0xff] 0.0
        %299 = vst [vmem:[#allocation2 + $0x58] sm:$0xff] 0.0
      $region40: #{upsample_forward.6} parent=35 // pred_fallthru
        _
      %s300 = sadd.s32 %s21, %s22
      %s301 = ssub.s32 %s300, 2
      %p302 = scmp.ge.s32.totalorder %s301, 0
      %p303 = scmp.lt.s32.totalorder %s301, 8
      %p304 = pnand %p302, %p303
      %p305 = pneg %p304
      // Predicated region
      $region41: #{upsample_forward.6} parent=35 // pred_check
        _
      $region42: #{upsample_forward.6} parent=35 // pred_check_branch
        %307 = sbr.rel (%p304) target = $region44
      $region43: #{upsample_forward.6} parent=35 // pred_region
        %v308 = vld [vmem:[%s267] sm:$0xf]
        %v309 = vld [vmem:[%s267 + $0x4] sm:$0xf]
        %v310 = vld [vmem:[%s267 + $0x8] sm:$0xf]
        %v311 = vld [vmem:[%s267 + $0xc] sm:$0xf]
        %v312 = vld [vmem:[%s267 + $0x10] sm:$0xf]
        %v313 = vld [vmem:[%s267 + $0x14] sm:$0xf]
        %v314 = vld [vmem:[%s267 + $0x18] sm:$0xf]
        %v315 = vld [vmem:[%s267 + $0x1c] sm:$0xf]
        %v316 = vld [vmem:[%s267 + $0x20] sm:$0xf]
        %v317 = vld [vmem:[%s267 + $0x24] sm:$0xf]
        %v318 = vld [vmem:[%s267 + $0x28] sm:$0xf]
        %v319 = vld [vmem:[%s267 + $0x2c] sm:$0xf]
        %v320 = vld [vmem:[%s267 + $0x30] sm:$0xf]
        %v321 = vld [vmem:[%s267 + $0x34] sm:$0xf]
        %v322 = vld [vmem:[%s267 + $0x38] sm:$0xf]
        %v323 = vld [vmem:[%s267 + $0x3c] sm:$0xf]
        %v324 = vld [vmem:[%s267 + $0x40] sm:$0xf]
        %v325 = vld [vmem:[%s267 + $0x44] sm:$0xf]
        %v326 = vld [vmem:[%s267 + $0x48] sm:$0xf]
        %v327 = vld [vmem:[%s267 + $0x4c] sm:$0xf]
        %s328 = smul.u32 %s22, 25
        %s329 = smul.addr %s328, 4
        %s330 = scalar_lea.vmem %s1, %s329
        %v331 = vld [vmem:[%s330] sm:$0xf]
        %v332 = vld [vmem:[%s330 + $0x4] sm:$0xf]
        %v333 = vld [vmem:[%s330 + $0x8] sm:$0xf]
        %v334 = vld [vmem:[%s330 + $0xc] sm:$0xf]
        %v335 = vld [vmem:[%s330 + $0x10] sm:$0xf]
        %v336 = vld [vmem:[%s330 + $0x14] sm:$0xf]
        %v337 = vld [vmem:[%s330 + $0x18] sm:$0xf]
        %v338 = vld [vmem:[%s330 + $0x1c] sm:$0xf]
        %v339 = vld [vmem:[%s330 + $0x20] sm:$0xf]
        %v340 = vld [vmem:[%s330 + $0x24] sm:$0xf]
        %v341 = vld [vmem:[%s330 + $0x28] sm:$0xf]
        %v342 = vld [vmem:[%s330 + $0x2c] sm:$0xf]
        %v343 = vld [vmem:[%s330 + $0x30] sm:$0xf]
        %v344 = vld [vmem:[%s330 + $0x34] sm:$0xf]
        %v345 = vld [vmem:[%s330 + $0x38] sm:$0xf]
        %v346 = vld [vmem:[%s330 + $0x3c] sm:$0xf]
        %v347 = vld [vmem:[%s330 + $0x40] sm:$0xf]
        %v348 = vld [vmem:[%s330 + $0x44] sm:$0xf]
        %v349 = vld [vmem:[%s330 + $0x48] sm:$0xf]
        %v350 = vld [vmem:[%s330 + $0x4c] sm:$0xf]
        %v351 = vld [vmem:[%s330 + $0x50] sm:$0xf]
        %v352 = vld [vmem:[%s330 + $0x54] sm:$0xf]
        %v353 = vld [vmem:[%s330 + $0x58] sm:$0xf]
        %v354 = vld [vmem:[%s330 + $0x5c] sm:$0xf]
        %v355 = vld [vmem:[%s330 + $0x60] sm:$0xf]
        %v369 = vunpack.c.l.b16 %v308
        %v370 = vunpack.c.l.b16 %v309
        %v371 = vunpack.c.l.b16 %v310
        %v372 = vunpack.c.l.b16 %v311
        %v373 = vunpack.c.l.b16 %v312
        %v374 = vunpack.c.l.b16 %v313
        %v375 = vunpack.c.l.b16 %v314
        %v376 = vunpack.c.l.b16 %v315
        %v377 = vunpack.c.l.b16 %v316
        %v378 = vunpack.c.l.b16 %v317
        %v379 = vunpack.c.l.b16 %v318
        %v380 = vunpack.c.l.b16 %v319
        %v381 = vunpack.c.l.b16 %v320
        %v382 = vpack.c.b16 %v370, %v369
        %v383 = vpack.c.b16 %v372, %v371
        %v384 = vpack.c.b16 %v374, %v373
        %v385 = vpack.c.b16 %v376, %v375
        %v386 = vpack.c.b16 %v378, %v377
        %v387 = vpack.c.b16 %v380, %v379
        %v388 = vpack.c.b16 %v381, %v381
        %vm389 = vsmask.f32 7424
        %v391 = vshrl.u32 %v382, 16
        %v393 = vshll.u32 %v382, 16
        %v395 = vrot.slane %v393, 1
        %v396 = vor.u32 %v391, %v395
        %v398 = vshll.u32 %v383, 16
        %v400 = vrot.slane %v398, 1
        %v401 = vsel %vm389, %v396, %v400
        %v402 = vshrl.u32 %v383, 16
        %v404 = vor.u32 %v402, %v400
        %v406 = vshll.u32 %v384, 16
        %v408 = vrot.slane %v406, 1
        %v409 = vsel %vm389, %v404, %v408
        %v410 = vshrl.u32 %v384, 16
        %v412 = vor.u32 %v410, %v408
        %v414 = vshll.u32 %v385, 16
        %v416 = vrot.slane %v414, 1
        %v417 = vsel %vm389, %v412, %v416
        %v418 = vshrl.u32 %v385, 16
        %v420 = vor.u32 %v418, %v416
        %v422 = vshll.u32 %v386, 16
        %v424 = vrot.slane %v422, 1
        %v425 = vsel %vm389, %v420, %v424
        %v426 = vshrl.u32 %v386, 16
        %v428 = vor.u32 %v426, %v424
        %v430 = vshll.u32 %v387, 16
        %v432 = vrot.slane %v430, 1
        %v433 = vsel %vm389, %v428, %v432
        %v434 = vshrl.u32 %v387, 16
        %v436 = vor.u32 %v434, %v432
        %v438 = vshll.u32 %v388, 16
        %v440 = vrot.slane %v438, 1
        %v441 = vsel %vm389, %v436, %v440
        %v442 = vshrl.u32 %v388, 16
        %v444 = vor.u32 %v442, %v440
        %445 = vrot.lane.b32.xlu0 %v401, 8
        %v446 = vpop.permute.xlu0 %445
        %447 = vrot.lane.b32.xlu0 %v409, 8
        %v448 = vpop.permute.xlu0 %447
        %449 = vrot.lane.b32.xlu0 %v417, 8
        %v450 = vpop.permute.xlu0 %449
        %451 = vrot.lane.b32.xlu0 %v425, 8
        %v452 = vpop.permute.xlu0 %451
        %453 = vrot.lane.b32.xlu0 %v433, 8
        %v454 = vpop.permute.xlu0 %453
        %455 = vrot.lane.b32.xlu0 %v441, 8
        %v456 = vpop.permute.xlu0 %455
        %457 = vrot.lane.b32.xlu0 %v444, 8
        %v458 = vpop.permute.xlu0 %457
        %v459 = vpack.c.b16 %v371, %v370
        %v460 = vpack.c.b16 %v373, %v372
        %v461 = vpack.c.b16 %v375, %v374
        %v462 = vpack.c.b16 %v377, %v376
        %v463 = vpack.c.b16 %v379, %v378
        %v464 = vpack.c.b16 %v381, %v380
        %vm465 = vcmask 1042432
        %v466 = vrot.slane %v459, 5
        %v467 = vrot.slane %v460, 5
        %v468 = vsel %vm465, %v466, %v467
        %v469 = vrot.slane %v461, 5
        %v470 = vsel %vm465, %v467, %v469
        %v471 = vrot.slane %v462, 5
        %v472 = vsel %vm465, %v469, %v471
        %v473 = vrot.slane %v463, 5
        %v474 = vsel %vm465, %v471, %v473
        %v475 = vrot.slane %v464, 5
        %v476 = vsel %vm465, %v473, %v475
        %477 = vrot.lane.b32.xlu0 %v466, 16
        %v478 = vpop.permute.xlu0 %477
        %479 = vrot.lane.b32.xlu0 %v468, 16
        %v480 = vpop.permute.xlu0 %479
        %481 = vrot.lane.b32.xlu0 %v470, 16
        %v482 = vpop.permute.xlu0 %481
        %483 = vrot.lane.b32.xlu0 %v472, 16
        %v484 = vpop.permute.xlu0 %483
        %485 = vrot.lane.b32.xlu0 %v474, 16
        %v486 = vpop.permute.xlu0 %485
        %487 = vrot.lane.b32.xlu0 %v476, 16
        %v488 = vpop.permute.xlu0 %487
        %489 = vrot.lane.b32.xlu0 %v475, 16
        %v490 = vpop.permute.xlu0 %489
        %v492 = vunpack.c.l.b16 %v321
        %v493 = vpack.c.b16 %v492, %v492
        %vm494 = vsmask.f32 2304
        %v496 = vshrl.u32 %v459, 16
        %v498 = vrot.slane %v496, 5
        %v499 = vshll.u32 %v459, 16
        %v501 = vrot.slane %v499, 6
        %v502 = vor.u32 %v498, %v501
        %v504 = vshrl.u32 %v460, 16
        %v506 = vrot.slane %v504, 5
        %v507 = vshll.u32 %v460, 16
        %v509 = vrot.slane %v507, 6
        %v510 = vor.u32 %v506, %v509
        %v511 = vsel %vm494, %v502, %v510
        %v513 = vshrl.u32 %v461, 16
        %v515 = vrot.slane %v513, 5
        %v516 = vshll.u32 %v461, 16
        %v518 = vrot.slane %v516, 6
        %v519 = vor.u32 %v515, %v518
        %v520 = vsel %vm494, %v510, %v519
        %v522 = vshrl.u32 %v462, 16
        %v524 = vrot.slane %v522, 5
        %v525 = vshll.u32 %v462, 16
        %v527 = vrot.slane %v525, 6
        %v528 = vor.u32 %v524, %v527
        %v529 = vsel %vm494, %v519, %v528
        %v531 = vshrl.u32 %v463, 16
        %v533 = vrot.slane %v531, 5
        %v534 = vshll.u32 %v463, 16
        %v536 = vrot.slane %v534, 6
        %v537 = vor.u32 %v533, %v536
        %v538 = vsel %vm494, %v528, %v537
        %v540 = vshrl.u32 %v464, 16
        %v542 = vrot.slane %v540, 5
        %v543 = vshll.u32 %v464, 16
        %v545 = vrot.slane %v543, 6
        %v546 = vor.u32 %v542, %v545
        %v547 = vsel %vm494, %v537, %v546
        %v549 = vshll.u32 %v493, 16
        %v551 = vrot.slane %v549, 6
        %v552 = vsel %vm494, %v546, %v551
        %553 = vrot.lane.b32.xlu0 %v502, 24
        %v554 = vpop.permute.xlu0 %553
        %555 = vrot.lane.b32.xlu0 %v511, 24
        %v556 = vpop.permute.xlu0 %555
        %557 = vrot.lane.b32.xlu0 %v520, 24
        %v558 = vpop.permute.xlu0 %557
        %559 = vrot.lane.b32.xlu0 %v529, 24
        %v560 = vpop.permute.xlu0 %559
        %561 = vrot.lane.b32.xlu0 %v538, 24
        %v562 = vpop.permute.xlu0 %561
        %563 = vrot.lane.b32.xlu0 %v547, 24
        %v564 = vpop.permute.xlu0 %563
        %565 = vrot.lane.b32.xlu0 %v552, 24
        %v566 = vpop.permute.xlu0 %565
        %vm567 = vcmask 1041408
        %v568 = vrot.slane %v459, 6
        %v569 = vrot.slane %v460, 6
        %v570 = vsel %vm567, %v568, %v569
        %v571 = vrot.slane %v461, 6
        %v572 = vsel %vm567, %v569, %v571
        %v573 = vrot.slane %v462, 6
        %v574 = vsel %vm567, %v571, %v573
        %v575 = vrot.slane %v463, 6
        %v576 = vsel %vm567, %v573, %v575
        %v577 = vrot.slane %v464, 6
        %v578 = vsel %vm567, %v575, %v577
        %v579 = vrot.slane %v493, 6
        %v580 = vsel %vm567, %v577, %v579
        %581 = vrot.lane.b32.xlu0 %v568, 32
        %v582 = vpop.permute.xlu0 %581
        %583 = vrot.lane.b32.xlu0 %v570, 32
        %v584 = vpop.permute.xlu0 %583
        %585 = vrot.lane.b32.xlu0 %v572, 32
        %v586 = vpop.permute.xlu0 %585
        %587 = vrot.lane.b32.xlu0 %v574, 32
        %v588 = vpop.permute.xlu0 %587
        %589 = vrot.lane.b32.xlu0 %v576, 32
        %v590 = vpop.permute.xlu0 %589
        %591 = vrot.lane.b32.xlu0 %v578, 32
        %v592 = vpop.permute.xlu0 %591
        %593 = vrot.lane.b32.xlu0 %v580, 32
        %v594 = vpop.permute.xlu0 %593
        %v596 = vunpack.c.l.b16 %v322
        %v597 = vpack.c.b16 %v492, %v381
        %v598 = vpack.c.b16 %v596, %v596
        %v599 = vrot.slane %v383, 6
        %v600 = vrot.slane %v384, 6
        %v601 = vsel %vm567, %v599, %v600
        %v602 = vrot.slane %v385, 6
        %v603 = vsel %vm567, %v600, %v602
        %v604 = vrot.slane %v386, 6
        %v605 = vsel %vm567, %v602, %v604
        %v606 = vrot.slane %v387, 6
        %v607 = vsel %vm567, %v604, %v606
        %v608 = vrot.slane %v597, 6
        %v609 = vsel %vm567, %v606, %v608
        %v610 = vrot.slane %v598, 6
        %v611 = vsel %vm567, %v608, %v610
        %612 = vrot.lane.b32.xlu0 %v599, 40
        %v613 = vpop.permute.xlu0 %612
        %614 = vrot.lane.b32.xlu0 %v601, 40
        %v615 = vpop.permute.xlu0 %614
        %616 = vrot.lane.b32.xlu0 %v603, 40
        %v617 = vpop.permute.xlu0 %616
        %618 = vrot.lane.b32.xlu0 %v605, 40
        %v619 = vpop.permute.xlu0 %618
        %620 = vrot.lane.b32.xlu0 %v607, 40
        %v621 = vpop.permute.xlu0 %620
        %622 = vrot.lane.b32.xlu0 %v609, 40
        %v623 = vpop.permute.xlu0 %622
        %624 = vrot.lane.b32.xlu0 %v611, 40
        %v625 = vpop.permute.xlu0 %624
        %vm626 = vsmask.f32 1280
        %v627 = vrot.slane %v402, 6
        %v628 = vrot.slane %v398, 7
        %v629 = vor.u32 %v627, %v628
        %v630 = vrot.slane %v410, 6
        %v631 = vrot.slane %v406, 7
        %v632 = vor.u32 %v630, %v631
        %v633 = vsel %vm626, %v629, %v632
        %v634 = vrot.slane %v418, 6
        %v635 = vrot.slane %v414, 7
        %v636 = vor.u32 %v634, %v635
        %v637 = vsel %vm626, %v632, %v636
        %v638 = vrot.slane %v426, 6
        %v639 = vrot.slane %v422, 7
        %v640 = vor.u32 %v638, %v639
        %v641 = vsel %vm626, %v636, %v640
        %v642 = vrot.slane %v434, 6
        %v643 = vrot.slane %v430, 7
        %v644 = vor.u32 %v642, %v643
        %v645 = vsel %vm626, %v640, %v644
        %v647 = vshrl.u32 %v597, 16
        %v649 = vrot.slane %v647, 6
        %v650 = vshll.u32 %v597, 16
        %v652 = vrot.slane %v650, 7
        %v653 = vor.u32 %v649, %v652
        %v654 = vsel %vm626, %v644, %v653
        %v656 = vshrl.u32 %v598, 16
        %v658 = vrot.slane %v656, 6
        %v659 = vshll.u32 %v598, 16
        %v661 = vrot.slane %v659, 7
        %v662 = vor.u32 %v658, %v661
        %v663 = vsel %vm626, %v653, %v662
        %664 = vrot.lane.b32.xlu0 %v629, 48
        %v665 = vpop.permute.xlu0 %664
        %666 = vrot.lane.b32.xlu0 %v633, 48
        %v667 = vpop.permute.xlu0 %666
        %668 = vrot.lane.b32.xlu0 %v637, 48
        %v669 = vpop.permute.xlu0 %668
        %670 = vrot.lane.b32.xlu0 %v641, 48
        %v671 = vpop.permute.xlu0 %670
        %672 = vrot.lane.b32.xlu0 %v645, 48
        %v673 = vpop.permute.xlu0 %672
        %674 = vrot.lane.b32.xlu0 %v654, 48
        %v675 = vpop.permute.xlu0 %674
        %676 = vrot.lane.b32.xlu0 %v663, 48
        %v677 = vpop.permute.xlu0 %676
        %vm678 = vcmask 1040384
        %v679 = vrot.slane %v383, 7
        %v680 = vrot.slane %v384, 7
        %v681 = vsel %vm678, %v679, %v680
        %v682 = vrot.slane %v385, 7
        %v683 = vsel %vm678, %v680, %v682
        %v684 = vrot.slane %v386, 7
        %v685 = vsel %vm678, %v682, %v684
        %v686 = vrot.slane %v387, 7
        %v687 = vsel %vm678, %v684, %v686
        %v688 = vrot.slane %v597, 7
        %v689 = vsel %vm678, %v686, %v688
        %v690 = vrot.slane %v598, 7
        %v691 = vsel %vm678, %v688, %v690
        %692 = vrot.lane.b32.xlu0 %v679, 56
        %v693 = vpop.permute.xlu0 %692
        %694 = vrot.lane.b32.xlu0 %v681, 56
        %v695 = vpop.permute.xlu0 %694
        %696 = vrot.lane.b32.xlu0 %v683, 56
        %v697 = vpop.permute.xlu0 %696
        %698 = vrot.lane.b32.xlu0 %v685, 56
        %v699 = vpop.permute.xlu0 %698
        %700 = vrot.lane.b32.xlu0 %v687, 56
        %v701 = vpop.permute.xlu0 %700
        %702 = vrot.lane.b32.xlu0 %v689, 56
        %v703 = vpop.permute.xlu0 %702
        %704 = vrot.lane.b32.xlu0 %v691, 56
        %v705 = vpop.permute.xlu0 %704
        %vm706 = vsmask.f32 256
        %v707 = vrot.slane %v402, 7
        %v708 = vor.u32 %v707, %v398
        %v709 = vrot.slane %v410, 7
        %v710 = vor.u32 %v709, %v406
        %v711 = vsel %vm706, %v707, %v710
        %v712 = vrot.slane %v418, 7
        %v713 = vor.u32 %v712, %v414
        %v714 = vsel %vm706, %v709, %v713
        %v715 = vrot.slane %v426, 7
        %v716 = vor.u32 %v715, %v422
        %v717 = vsel %vm706, %v712, %v716
        %v718 = vrot.slane %v434, 7
        %v719 = vor.u32 %v718, %v430
        %v720 = vsel %vm706, %v715, %v719
        %v721 = vrot.slane %v647, 7
        %v722 = vor.u32 %v721, %v650
        %v723 = vsel %vm706, %v718, %v722
        %v724 = vrot.slane %v656, 7
        %v725 = vor.u32 %v724, %v659
        %v726 = vsel %vm706, %v721, %v725
        %727 = vrot.lane.b32.xlu0 %v708, 64
        %v728 = vpop.permute.xlu0 %727
        %729 = vrot.lane.b32.xlu0 %v711, 64
        %v730 = vpop.permute.xlu0 %729
        %731 = vrot.lane.b32.xlu0 %v714, 64
        %v732 = vpop.permute.xlu0 %731
        %733 = vrot.lane.b32.xlu0 %v717, 64
        %v734 = vpop.permute.xlu0 %733
        %735 = vrot.lane.b32.xlu0 %v720, 64
        %v736 = vpop.permute.xlu0 %735
        %737 = vrot.lane.b32.xlu0 %v723, 64
        %v738 = vpop.permute.xlu0 %737
        %739 = vrot.lane.b32.xlu0 %v726, 64
        %v740 = vpop.permute.xlu0 %739
        %741 = vrot.lane.b32.xlu0 %v383, 72
        %v742 = vpop.permute.xlu0 %741
        %743 = vrot.lane.b32.xlu0 %v384, 72
        %v744 = vpop.permute.xlu0 %743
        %745 = vrot.lane.b32.xlu0 %v385, 72
        %v746 = vpop.permute.xlu0 %745
        %747 = vrot.lane.b32.xlu0 %v386, 72
        %v748 = vpop.permute.xlu0 %747
        %749 = vrot.lane.b32.xlu0 %v387, 72
        %v750 = vpop.permute.xlu0 %749
        %751 = vrot.lane.b32.xlu0 %v597, 72
        %v752 = vpop.permute.xlu0 %751
        %753 = vrot.lane.b32.xlu0 %v598, 72
        %v754 = vpop.permute.xlu0 %753
        %v756 = vunpack.c.l.b16 %v323
        %v757 = vpack.c.b16 %v596, %v492
        %v758 = vpack.c.b16 %v756, %v756
        %759 = vrot.lane.b32.xlu0 %v460, 80
        %v760 = vpop.permute.xlu0 %759
        %761 = vrot.lane.b32.xlu0 %v461, 80
        %v762 = vpop.permute.xlu0 %761
        %763 = vrot.lane.b32.xlu0 %v462, 80
        %v764 = vpop.permute.xlu0 %763
        %765 = vrot.lane.b32.xlu0 %v463, 80
        %v766 = vpop.permute.xlu0 %765
        %767 = vrot.lane.b32.xlu0 %v464, 80
        %v768 = vpop.permute.xlu0 %767
        %769 = vrot.lane.b32.xlu0 %v757, 80
        %v770 = vpop.permute.xlu0 %769
        %771 = vrot.lane.b32.xlu0 %v758, 80
        %v772 = vpop.permute.xlu0 %771
        %v773 = vrot.slane %v507, 1
        %v774 = vor.u32 %v504, %v773
        %v775 = vrot.slane %v516, 1
        %v776 = vsel %vm389, %v774, %v775
        %v777 = vor.u32 %v513, %v775
        %v778 = vrot.slane %v525, 1
        %v779 = vsel %vm389, %v777, %v778
        %v780 = vor.u32 %v522, %v778
        %v781 = vrot.slane %v534, 1
        %v782 = vsel %vm389, %v780, %v781
        %v783 = vor.u32 %v531, %v781
        %v784 = vrot.slane %v543, 1
        %v785 = vsel %vm389, %v783, %v784
        %v786 = vor.u32 %v540, %v784
        %v788 = vshll.u32 %v757, 16
        %v790 = vrot.slane %v788, 1
        %v791 = vsel %vm389, %v786, %v790
        %v792 = vshrl.u32 %v757, 16
        %v794 = vor.u32 %v792, %v790
        %v796 = vshll.u32 %v758, 16
        %v798 = vrot.slane %v796, 1
        %v799 = vsel %vm389, %v794, %v798
        %v800 = vshrl.u32 %v758, 16
        %v802 = vor.u32 %v800, %v798
        %803 = vrot.lane.b32.xlu0 %v776, 88
        %v804 = vpop.permute.xlu0 %803
        %805 = vrot.lane.b32.xlu0 %v779, 88
        %v806 = vpop.permute.xlu0 %805
        %807 = vrot.lane.b32.xlu0 %v782, 88
        %v808 = vpop.permute.xlu0 %807
        %809 = vrot.lane.b32.xlu0 %v785, 88
        %v810 = vpop.permute.xlu0 %809
        %811 = vrot.lane.b32.xlu0 %v791, 88
        %v812 = vpop.permute.xlu0 %811
        %813 = vrot.lane.b32.xlu0 %v799, 88
        %v814 = vpop.permute.xlu0 %813
        %815 = vrot.lane.b32.xlu0 %v802, 88
        %v816 = vpop.permute.xlu0 %815
        %v817 = vpack.c.b16 %v756, %v596
        %v818 = vrot.slane %v384, 5
        %v819 = vrot.slane %v385, 5
        %v820 = vsel %vm465, %v818, %v819
        %v821 = vrot.slane %v386, 5
        %v822 = vsel %vm465, %v819, %v821
        %v823 = vrot.slane %v387, 5
        %v824 = vsel %vm465, %v821, %v823
        %v825 = vrot.slane %v597, 5
        %v826 = vsel %vm465, %v823, %v825
        %v827 = vrot.slane %v817, 5
        %v828 = vsel %vm465, %v825, %v827
        %829 = vrot.lane.b32.xlu0 %v818, 96
        %v830 = vpop.permute.xlu0 %829
        %831 = vrot.lane.b32.xlu0 %v820, 96
        %v832 = vpop.permute.xlu0 %831
        %833 = vrot.lane.b32.xlu0 %v822, 96
        %v834 = vpop.permute.xlu0 %833
        %835 = vrot.lane.b32.xlu0 %v824, 96
        %v836 = vpop.permute.xlu0 %835
        %837 = vrot.lane.b32.xlu0 %v826, 96
        %v838 = vpop.permute.xlu0 %837
        %839 = vrot.lane.b32.xlu0 %v828, 96
        %v840 = vpop.permute.xlu0 %839
        %841 = vrot.lane.b32.xlu0 %v827, 96
        %v842 = vpop.permute.xlu0 %841
        %v844 = vunpack.c.l.b16 %v324
        %v845 = vpack.c.b16 %v844, %v844
        %v846 = vrot.slane %v410, 5
        %v847 = vrot.slane %v406, 6
        %v848 = vor.u32 %v846, %v847
        %v849 = vrot.slane %v418, 5
        %v850 = vrot.slane %v414, 6
        %v851 = vor.u32 %v849, %v850
        %v852 = vsel %vm494, %v848, %v851
        %v853 = vrot.slane %v426, 5
        %v854 = vrot.slane %v422, 6
        %v855 = vor.u32 %v853, %v854
        %v856 = vsel %vm494, %v851, %v855
        %v857 = vrot.slane %v434, 5
        %v858 = vrot.slane %v430, 6
        %v859 = vor.u32 %v857, %v858
        %v860 = vsel %vm494, %v855, %v859
        %v861 = vrot.slane %v647, 5
        %v862 = vrot.slane %v650, 6
        %v863 = vor.u32 %v861, %v862
        %v864 = vsel %vm494, %v859, %v863
        %v866 = vshrl.u32 %v817, 16
        %v868 = vrot.slane %v866, 5
        %v869 = vshll.u32 %v817, 16
        %v871 = vrot.slane %v869, 6
        %v872 = vor.u32 %v868, %v871
        %v873 = vsel %vm494, %v863, %v872
        %v875 = vshll.u32 %v845, 16
        %v877 = vrot.slane %v875, 6
        %v878 = vsel %vm494, %v872, %v877
        %879 = vrot.lane.b32.xlu0 %v848, 104
        %v880 = vpop.permute.xlu0 %879
        %881 = vrot.lane.b32.xlu0 %v852, 104
        %v882 = vpop.permute.xlu0 %881
        %883 = vrot.lane.b32.xlu0 %v856, 104
        %v884 = vpop.permute.xlu0 %883
        %885 = vrot.lane.b32.xlu0 %v860, 104
        %v886 = vpop.permute.xlu0 %885
        %887 = vrot.lane.b32.xlu0 %v864, 104
        %v888 = vpop.permute.xlu0 %887
        %889 = vrot.lane.b32.xlu0 %v873, 104
        %v890 = vpop.permute.xlu0 %889
        %891 = vrot.lane.b32.xlu0 %v878, 104
        %v892 = vpop.permute.xlu0 %891
        %v893 = vrot.slane %v817, 6
        %v894 = vsel %vm567, %v608, %v893
        %v895 = vrot.slane %v845, 6
        %v896 = vsel %vm567, %v893, %v895
        %897 = vrot.lane.b32.xlu0 %v600, 112
        %v898 = vpop.permute.xlu0 %897
        %899 = vrot.lane.b32.xlu0 %v603, 112
        %v900 = vpop.permute.xlu0 %899
        %901 = vrot.lane.b32.xlu0 %v605, 112
        %v902 = vpop.permute.xlu0 %901
        %903 = vrot.lane.b32.xlu0 %v607, 112
        %v904 = vpop.permute.xlu0 %903
        %905 = vrot.lane.b32.xlu0 %v609, 112
        %v906 = vpop.permute.xlu0 %905
        %907 = vrot.lane.b32.xlu0 %v894, 112
        %v908 = vpop.permute.xlu0 %907
        %909 = vrot.lane.b32.xlu0 %v896, 112
        %v910 = vpop.permute.xlu0 %909
        %v912 = vunpack.c.l.b16 %v325
        %v913 = vpack.c.b16 %v844, %v756
        %v914 = vpack.c.b16 %v912, %v912
        %v915 = vrot.slane %v757, 6
        %v916 = vsel %vm567, %v577, %v915
        %v917 = vrot.slane %v913, 6
        %v918 = vsel %vm567, %v915, %v917
        %v919 = vrot.slane %v914, 6
        %v920 = vsel %vm567, %v917, %v919
        %921 = vrot.lane.b32.xlu0 %v571, 120
        %v922 = vpop.permute.xlu0 %921
        %923 = vrot.lane.b32.xlu0 %v574, 120
        %v924 = vpop.permute.xlu0 %923
        %925 = vrot.lane.b32.xlu0 %v576, 120
        %v926 = vpop.permute.xlu0 %925
        %927 = vrot.lane.b32.xlu0 %v578, 120
        %v928 = vpop.permute.xlu0 %927
        %929 = vrot.lane.b32.xlu0 %v916, 120
        %v930 = vpop.permute.xlu0 %929
        %931 = vrot.lane.b32.xlu0 %v918, 120
        %v932 = vpop.permute.xlu0 %931
        %933 = vrot.lane.b32.xlu0 %v920, 120
        %v934 = vpop.permute.xlu0 %933
        %vm935 = vcmask 64512
        %v937 = vsel %vm935, %v382, %v446
        %v939 = vsel %vm935, %v383, %v448
        %v941 = vsel %vm935, %v384, %v450
        %v943 = vsel %vm935, %v385, %v452
        %v945 = vsel %vm935, %v386, %v454
        %v947 = vsel %vm935, %v387, %v456
        %v949 = vsel %vm935, %v388, %v458
        %vm950 = vcmask 130048
        %v952 = vsel %vm950, %v937, %v478
        %v954 = vsel %vm950, %v939, %v480
        %v956 = vsel %vm950, %v941, %v482
        %v958 = vsel %vm950, %v943, %v484
        %v960 = vsel %vm950, %v945, %v486
        %v962 = vsel %vm950, %v947, %v488
        %v964 = vsel %vm950, %v949, %v490
        %vm965 = vcmask 195584
        %v967 = vsel %vm965, %v952, %v554
        %v969 = vsel %vm965, %v954, %v556
        %v971 = vsel %vm965, %v956, %v558
        %v973 = vsel %vm965, %v958, %v560
        %v975 = vsel %vm965, %v960, %v562
        %v977 = vsel %vm965, %v962, %v564
        %v979 = vsel %vm965, %v964, %v566
        %vm980 = vcmask 261120
        %v982 = vsel %vm980, %v967, %v582
        %v984 = vsel %vm980, %v969, %v584
        %v986 = vsel %vm980, %v971, %v586
        %v988 = vsel %vm980, %v973, %v588
        %v990 = vsel %vm980, %v975, %v590
        %v992 = vsel %vm980, %v977, %v592
        %v994 = vsel %vm980, %v979, %v594
        %vm995 = vcmask 326656
        %v997 = vsel %vm995, %v982, %v613
        %v999 = vsel %vm995, %v984, %v615
        %v1001 = vsel %vm995, %v986, %v617
        %v1003 = vsel %vm995, %v988, %v619
        %v1005 = vsel %vm995, %v990, %v621
        %v1007 = vsel %vm995, %v992, %v623
        %v1009 = vsel %vm995, %v994, %v625
        %vm1010 = vcmask 392192
        %v1012 = vsel %vm1010, %v997, %v665
        %v1014 = vsel %vm1010, %v999, %v667
        %v1016 = vsel %vm1010, %v1001, %v669
        %v1018 = vsel %vm1010, %v1003, %v671
        %v1020 = vsel %vm1010, %v1005, %v673
        %v1022 = vsel %vm1010, %v1007, %v675
        %v1024 = vsel %vm1010, %v1009, %v677
        %vm1025 = vcmask 457728
        %v1027 = vsel %vm1025, %v1012, %v693
        %v1029 = vsel %vm1025, %v1014, %v695
        %v1031 = vsel %vm1025, %v1016, %v697
        %v1033 = vsel %vm1025, %v1018, %v699
        %v1035 = vsel %vm1025, %v1020, %v701
        %v1037 = vsel %vm1025, %v1022, %v703
        %v1039 = vsel %vm1025, %v1024, %v705
        %vm1040 = vcmask 523264
        %v1042 = vsel %vm1040, %v1027, %v728
        %v1044 = vsel %vm1040, %v1029, %v730
        %v1046 = vsel %vm1040, %v1031, %v732
        %v1048 = vsel %vm1040, %v1033, %v734
        %v1050 = vsel %vm1040, %v1035, %v736
        %v1052 = vsel %vm1040, %v1037, %v738
        %v1054 = vsel %vm1040, %v1039, %v740
        %vm1055 = vcmask 588800
        %v1057 = vsel %vm1055, %v1042, %v742
        %v1059 = vsel %vm1055, %v1044, %v744
        %v1061 = vsel %vm1055, %v1046, %v746
        %v1063 = vsel %vm1055, %v1048, %v748
        %v1065 = vsel %vm1055, %v1050, %v750
        %v1067 = vsel %vm1055, %v1052, %v752
        %v1069 = vsel %vm1055, %v1054, %v754
        %vm1070 = vcmask 654336
        %v1072 = vsel %vm1070, %v1057, %v760
        %v1074 = vsel %vm1070, %v1059, %v762
        %v1076 = vsel %vm1070, %v1061, %v764
        %v1078 = vsel %vm1070, %v1063, %v766
        %v1080 = vsel %vm1070, %v1065, %v768
        %v1082 = vsel %vm1070, %v1067, %v770
        %v1084 = vsel %vm1070, %v1069, %v772
        %vm1085 = vcmask 719872
        %v1087 = vsel %vm1085, %v1072, %v804
        %v1089 = vsel %vm1085, %v1074, %v806
        %v1091 = vsel %vm1085, %v1076, %v808
        %v1093 = vsel %vm1085, %v1078, %v810
        %v1095 = vsel %vm1085, %v1080, %v812
        %v1097 = vsel %vm1085, %v1082, %v814
        %v1099 = vsel %vm1085, %v1084, %v816
        %vm1100 = vcmask 785408
        %v1102 = vsel %vm1100, %v1087, %v830
        %v1104 = vsel %vm1100, %v1089, %v832
        %v1106 = vsel %vm1100, %v1091, %v834
        %v1108 = vsel %vm1100, %v1093, %v836
        %v1110 = vsel %vm1100, %v1095, %v838
        %v1112 = vsel %vm1100, %v1097, %v840
        %v1114 = vsel %vm1100, %v1099, %v842
        %vm1115 = vcmask 850944
        %v1117 = vsel %vm1115, %v1102, %v880
        %v1119 = vsel %vm1115, %v1104, %v882
        %v1121 = vsel %vm1115, %v1106, %v884
        %v1123 = vsel %vm1115, %v1108, %v886
        %v1125 = vsel %vm1115, %v1110, %v888
        %v1127 = vsel %vm1115, %v1112, %v890
        %v1129 = vsel %vm1115, %v1114, %v892
        %vm1130 = vcmask 916480
        %v1132 = vsel %vm1130, %v1117, %v898
        %v1134 = vsel %vm1130, %v1119, %v900
        %v1136 = vsel %vm1130, %v1121, %v902
        %v1138 = vsel %vm1130, %v1123, %v904
        %v1140 = vsel %vm1130, %v1125, %v906
        %v1142 = vsel %vm1130, %v1127, %v908
        %v1144 = vsel %vm1130, %v1129, %v910
        %vm1145 = vcmask 982016
        %v1147 = vsel %vm1145, %v1132, %v922
        %v1149 = vsel %vm1145, %v1134, %v924
        %v1151 = vsel %vm1145, %v1136, %v926
        %v1153 = vsel %vm1145, %v1138, %v928
        %v1155 = vsel %vm1145, %v1140, %v930
        %v1157 = vsel %vm1145, %v1142, %v932
        %v1159 = vsel %vm1145, %v1144, %v934
        %v1161 = vshll.u32 %v913, 16
        %v1163 = vrot.slane %v1161, 1
        %v1164 = vsel %vm389, %v794, %v1163
        %v1165 = vshrl.u32 %v913, 16
        %v1167 = vor.u32 %v1165, %v1163
        %v1169 = vshll.u32 %v914, 16
        %v1171 = vrot.slane %v1169, 1
        %v1172 = vsel %vm389, %v1167, %v1171
        %v1173 = vshrl.u32 %v914, 16
        %v1175 = vor.u32 %v1173, %v1171
        %1176 = vrot.lane.b32.xlu0 %v779, 8
        %v1177 = vpop.permute.xlu0 %1176
        %1178 = vrot.lane.b32.xlu0 %v782, 8
        %v1179 = vpop.permute.xlu0 %1178
        %1180 = vrot.lane.b32.xlu0 %v785, 8
        %v1181 = vpop.permute.xlu0 %1180
        %1182 = vrot.lane.b32.xlu0 %v791, 8
        %v1183 = vpop.permute.xlu0 %1182
        %1184 = vrot.lane.b32.xlu0 %v1164, 8
        %v1185 = vpop.permute.xlu0 %1184
        %1186 = vrot.lane.b32.xlu0 %v1172, 8
        %v1187 = vpop.permute.xlu0 %1186
        %1188 = vrot.lane.b32.xlu0 %v1175, 8
        %v1189 = vpop.permute.xlu0 %1188
        %vm1190 = vcmask 1046528
        %v1191 = vrot.slane %v461, 1
        %v1192 = vrot.slane %v462, 1
        %v1193 = vsel %vm1190, %v1191, %v1192
        %v1194 = vrot.slane %v463, 1
        %v1195 = vsel %vm1190, %v1192, %v1194
        %v1196 = vrot.slane %v464, 1
        %v1197 = vsel %vm1190, %v1194, %v1196
        %v1198 = vrot.slane %v757, 1
        %v1199 = vsel %vm1190, %v1196, %v1198
        %v1200 = vrot.slane %v913, 1
        %v1201 = vsel %vm1190, %v1198, %v1200
        %v1202 = vrot.slane %v914, 1
        %v1203 = vsel %vm1190, %v1200, %v1202
        %1204 = vrot.lane.b32.xlu0 %v1193, 16
        %v1205 = vpop.permute.xlu0 %1204
        %1206 = vrot.lane.b32.xlu0 %v1195, 16
        %v1207 = vpop.permute.xlu0 %1206
        %1208 = vrot.lane.b32.xlu0 %v1197, 16
        %v1209 = vpop.permute.xlu0 %1208
        %1210 = vrot.lane.b32.xlu0 %v1199, 16
        %v1211 = vpop.permute.xlu0 %1210
        %1212 = vrot.lane.b32.xlu0 %v1201, 16
        %v1213 = vpop.permute.xlu0 %1212
        %1214 = vrot.lane.b32.xlu0 %v1203, 16
        %v1215 = vpop.permute.xlu0 %1214
        %1216 = vrot.lane.b32.xlu0 %v1202, 16
        %v1217 = vpop.permute.xlu0 %1216
        %vm1218 = vsmask.f32 6400
        %v1219 = vrot.slane %v513, 1
        %v1220 = vrot.slane %v516, 2
        %v1221 = vor.u32 %v1219, %v1220
        %v1222 = vrot.slane %v522, 1
        %v1223 = vrot.slane %v525, 2
        %v1224 = vor.u32 %v1222, %v1223
        %v1225 = vsel %vm1218, %v1221, %v1224
        %v1226 = vrot.slane %v531, 1
        %v1227 = vrot.slane %v534, 2
        %v1228 = vor.u32 %v1226, %v1227
        %v1229 = vsel %vm1218, %v1224, %v1228
        %v1230 = vrot.slane %v540, 1
        %v1231 = vrot.slane %v543, 2
        %v1232 = vor.u32 %v1230, %v1231
        %v1233 = vsel %vm1218, %v1228, %v1232
        %v1234 = vrot.slane %v792, 1
        %v1235 = vrot.slane %v788, 2
        %v1236 = vor.u32 %v1234, %v1235
        %v1237 = vsel %vm1218, %v1232, %v1236
        %v1238 = vrot.slane %v1165, 1
        %v1239 = vrot.slane %v1161, 2
        %v1240 = vor.u32 %v1238, %v1239
        %v1241 = vsel %vm1218, %v1236, %v1240
        %v1242 = vrot.slane %v1173, 1
        %v1243 = vrot.slane %v1169, 2
        %v1244 = vor.u32 %v1242, %v1243
        %v1245 = vsel %vm1218, %v1240, %v1244
        %1246 = vrot.lane.b32.xlu0 %v1225, 24
        %v1247 = vpop.permute.xlu0 %1246
        %1248 = vrot.lane.b32.xlu0 %v1229, 24
        %v1249 = vpop.permute.xlu0 %1248
        %1250 = vrot.lane.b32.xlu0 %v1233, 24
        %v1251 = vpop.permute.xlu0 %1250
        %1252 = vrot.lane.b32.xlu0 %v1237, 24
        %v1253 = vpop.permute.xlu0 %1252
        %1254 = vrot.lane.b32.xlu0 %v1241, 24
        %v1255 = vpop.permute.xlu0 %1254
        %1256 = vrot.lane.b32.xlu0 %v1245, 24
        %v1257 = vpop.permute.xlu0 %1256
        %1258 = vrot.lane.b32.xlu0 %v1244, 24
        %v1259 = vpop.permute.xlu0 %1258
        %v1261 = vunpack.c.l.b16 %v326
        %v1262 = vpack.c.b16 %v912, %v844
        %v1263 = vpack.c.b16 %v1261, %v1261
        %v1264 = vrot.slane %v418, 1
        %v1265 = vrot.slane %v414, 2
        %v1266 = vor.u32 %v1264, %v1265
        %v1267 = vrot.slane %v426, 1
        %v1268 = vrot.slane %v422, 2
        %v1269 = vor.u32 %v1267, %v1268
        %v1270 = vsel %vm1218, %v1266, %v1269
        %v1271 = vrot.slane %v434, 1
        %v1272 = vrot.slane %v430, 2
        %v1273 = vor.u32 %v1271, %v1272
        %v1274 = vsel %vm1218, %v1269, %v1273
        %v1275 = vrot.slane %v647, 1
        %v1276 = vrot.slane %v650, 2
        %v1277 = vor.u32 %v1275, %v1276
        %v1278 = vsel %vm1218, %v1273, %v1277
        %v1279 = vrot.slane %v866, 1
        %v1280 = vrot.slane %v869, 2
        %v1281 = vor.u32 %v1279, %v1280
        %v1282 = vsel %vm1218, %v1277, %v1281
        %v1284 = vshrl.u32 %v1262, 16
        %v1286 = vrot.slane %v1284, 1
        %v1287 = vshll.u32 %v1262, 16
        %v1289 = vrot.slane %v1287, 2
        %v1290 = vor.u32 %v1286, %v1289
        %v1291 = vsel %vm1218, %v1281, %v1290
        %v1293 = vshrl.u32 %v1263, 16
        %v1295 = vrot.slane %v1293, 1
        %v1296 = vshll.u32 %v1263, 16
        %v1298 = vrot.slane %v1296, 2
        %v1299 = vor.u32 %v1295, %v1298
        %v1300 = vsel %vm1218, %v1290, %v1299
        %1301 = vrot.lane.b32.xlu0 %v1270, 32
        %v1302 = vpop.permute.xlu0 %1301
        %1303 = vrot.lane.b32.xlu0 %v1274, 32
        %v1304 = vpop.permute.xlu0 %1303
        %1305 = vrot.lane.b32.xlu0 %v1278, 32
        %v1306 = vpop.permute.xlu0 %1305
        %1307 = vrot.lane.b32.xlu0 %v1282, 32
        %v1308 = vpop.permute.xlu0 %1307
        %1309 = vrot.lane.b32.xlu0 %v1291, 32
        %v1310 = vpop.permute.xlu0 %1309
        %1311 = vrot.lane.b32.xlu0 %v1300, 32
        %v1312 = vpop.permute.xlu0 %1311
        %1313 = vrot.lane.b32.xlu0 %v1299, 32
        %v1314 = vpop.permute.xlu0 %1313
        %vm1315 = vcmask 1045504
        %v1316 = vrot.slane %v385, 2
        %v1317 = vrot.slane %v386, 2
        %v1318 = vsel %vm1315, %v1316, %v1317
        %v1319 = vrot.slane %v387, 2
        %v1320 = vsel %vm1315, %v1317, %v1319
        %v1321 = vrot.slane %v597, 2
        %v1322 = vsel %vm1315, %v1319, %v1321
        %v1323 = vrot.slane %v817, 2
        %v1324 = vsel %vm1315, %v1321, %v1323
        %v1325 = vrot.slane %v1262, 2
        %v1326 = vsel %vm1315, %v1323, %v1325
        %v1327 = vrot.slane %v1263, 2
        %v1328 = vsel %vm1315, %v1325, %v1327
        %1329 = vrot.lane.b32.xlu0 %v1318, 40
        %v1330 = vpop.permute.xlu0 %1329
        %1331 = vrot.lane.b32.xlu0 %v1320, 40
        %v1332 = vpop.permute.xlu0 %1331
        %1333 = vrot.lane.b32.xlu0 %v1322, 40
        %v1334 = vpop.permute.xlu0 %1333
        %1335 = vrot.lane.b32.xlu0 %v1324, 40
        %v1336 = vpop.permute.xlu0 %1335
        %1337 = vrot.lane.b32.xlu0 %v1326, 40
        %v1338 = vpop.permute.xlu0 %1337
        %1339 = vrot.lane.b32.xlu0 %v1328, 40
        %v1340 = vpop.permute.xlu0 %1339
        %1341 = vrot.lane.b32.xlu0 %v1327, 40
        %v1342 = vpop.permute.xlu0 %1341
        %v1343 = vpack.c.b16 %v1261, %v912
        %v1344 = vrot.slane %v522, 6
        %v1345 = vrot.slane %v525, 7
        %v1346 = vor.u32 %v1344, %v1345
        %v1347 = vrot.slane %v531, 6
        %v1348 = vrot.slane %v534, 7
        %v1349 = vor.u32 %v1347, %v1348
        %v1350 = vsel %vm626, %v1346, %v1349
        %v1351 = vrot.slane %v540, 6
        %v1352 = vrot.slane %v543, 7
        %v1353 = vor.u32 %v1351, %v1352
        %v1354 = vsel %vm626, %v1349, %v1353
        %v1355 = vrot.slane %v792, 6
        %v1356 = vrot.slane %v788, 7
        %v1357 = vor.u32 %v1355, %v1356
        %v1358 = vsel %vm626, %v1353, %v1357
        %v1359 = vrot.slane %v1165, 6
        %v1360 = vrot.slane %v1161, 7
        %v1361 = vor.u32 %v1359, %v1360
        %v1362 = vsel %vm626, %v1357, %v1361
        %v1364 = vshrl.u32 %v1343, 16
        %v1366 = vrot.slane %v1364, 6
        %v1367 = vshll.u32 %v1343, 16
        %v1369 = vrot.slane %v1367, 7
        %v1370 = vor.u32 %v1366, %v1369
        %v1371 = vsel %vm626, %v1361, %v1370
        %1372 = vrot.lane.b32.xlu0 %v1346, 48
        %v1373 = vpop.permute.xlu0 %1372
        %1374 = vrot.lane.b32.xlu0 %v1350, 48
        %v1375 = vpop.permute.xlu0 %1374
        %1376 = vrot.lane.b32.xlu0 %v1354, 48
        %v1377 = vpop.permute.xlu0 %1376
        %1378 = vrot.lane.b32.xlu0 %v1358, 48
        %v1379 = vpop.permute.xlu0 %1378
        %1380 = vrot.lane.b32.xlu0 %v1362, 48
        %v1381 = vpop.permute.xlu0 %1380
        %1382 = vrot.lane.b32.xlu0 %v1371, 48
        %v1383 = vpop.permute.xlu0 %1382
        %1384 = vrot.lane.b32.xlu0 %v1370, 48
        %v1385 = vpop.permute.xlu0 %1384
        %v1387 = vunpack.c.l.b16 %v327
        %v1388 = vpack.c.b16 %v1387, %v1387
        %v1389 = vrot.slane %v462, 7
        %v1390 = vrot.slane %v463, 7
        %v1391 = vsel %vm678, %v1389, %v1390
        %v1392 = vrot.slane %v464, 7
        %v1393 = vsel %vm678, %v1390, %v1392
        %v1394 = vrot.slane %v757, 7
        %v1395 = vsel %vm678, %v1392, %v1394
        %v1396 = vrot.slane %v913, 7
        %v1397 = vsel %vm678, %v1394, %v1396
        %v1398 = vrot.slane %v1343, 7
        %v1399 = vsel %vm678, %v1396, %v1398
        %v1400 = vrot.slane %v1388, 7
        %v1401 = vsel %vm678, %v1398, %v1400
        %1402 = vrot.lane.b32.xlu0 %v1389, 56
        %v1403 = vpop.permute.xlu0 %1402
        %1404 = vrot.lane.b32.xlu0 %v1391, 56
        %v1405 = vpop.permute.xlu0 %1404
        %1406 = vrot.lane.b32.xlu0 %v1393, 56
        %v1407 = vpop.permute.xlu0 %1406
        %1408 = vrot.lane.b32.xlu0 %v1395, 56
        %v1409 = vpop.permute.xlu0 %1408
        %1410 = vrot.lane.b32.xlu0 %v1397, 56
        %v1411 = vpop.permute.xlu0 %1410
        %1412 = vrot.lane.b32.xlu0 %v1399, 56
        %v1413 = vpop.permute.xlu0 %1412
        %1414 = vrot.lane.b32.xlu0 %v1401, 56
        %v1415 = vpop.permute.xlu0 %1414
        %v1416 = vrot.slane %v522, 7
        %v1417 = vor.u32 %v1416, %v525
        %v1418 = vrot.slane %v531, 7
        %v1419 = vor.u32 %v1418, %v534
        %v1420 = vsel %vm706, %v1416, %v1419
        %v1421 = vrot.slane %v540, 7
        %v1422 = vor.u32 %v1421, %v543
        %v1423 = vsel %vm706, %v1418, %v1422
        %v1424 = vrot.slane %v792, 7
        %v1425 = vor.u32 %v1424, %v788
        %v1426 = vsel %vm706, %v1421, %v1425
        %v1427 = vrot.slane %v1165, 7
        %v1428 = vor.u32 %v1427, %v1161
        %v1429 = vsel %vm706, %v1424, %v1428
        %v1430 = vrot.slane %v1364, 7
        %v1431 = vor.u32 %v1430, %v1367
        %v1432 = vsel %vm706, %v1427, %v1431
        %v1434 = vshrl.u32 %v1388, 16
        %v1436 = vrot.slane %v1434, 7
        %v1437 = vshll.u32 %v1388, 16
        %v1439 = vor.u32 %v1436, %v1437
        %v1440 = vsel %vm706, %v1430, %v1439
        %1441 = vrot.lane.b32.xlu0 %v1417, 64
        %v1442 = vpop.permute.xlu0 %1441
        %1443 = vrot.lane.b32.xlu0 %v1420, 64
        %v1444 = vpop.permute.xlu0 %1443
        %1445 = vrot.lane.b32.xlu0 %v1423, 64
        %v1446 = vpop.permute.xlu0 %1445
        %1447 = vrot.lane.b32.xlu0 %v1426, 64
        %v1448 = vpop.permute.xlu0 %1447
        %1449 = vrot.lane.b32.xlu0 %v1429, 64
        %v1450 = vpop.permute.xlu0 %1449
        %1451 = vrot.lane.b32.xlu0 %v1432, 64
        %v1452 = vpop.permute.xlu0 %1451
        %1453 = vrot.lane.b32.xlu0 %v1440, 64
        %v1454 = vpop.permute.xlu0 %1453
        %v1456 = vsel %vm935, %v461, %v1177
        %v1458 = vsel %vm935, %v462, %v1179
        %v1460 = vsel %vm935, %v463, %v1181
        %v1462 = vsel %vm935, %v464, %v1183
        %v1464 = vsel %vm935, %v757, %v1185
        %v1466 = vsel %vm935, %v913, %v1187
        %v1468 = vsel %vm935, %v914, %v1189
        %v1470 = vsel %vm950, %v1456, %v1205
        %v1472 = vsel %vm950, %v1458, %v1207
        %v1474 = vsel %vm950, %v1460, %v1209
        %v1476 = vsel %vm950, %v1462, %v1211
        %v1478 = vsel %vm950, %v1464, %v1213
        %v1480 = vsel %vm950, %v1466, %v1215
        %v1482 = vsel %vm950, %v1468, %v1217
        %v1484 = vsel %vm965, %v1470, %v1247
        %v1486 = vsel %vm965, %v1472, %v1249
        %v1488 = vsel %vm965, %v1474, %v1251
        %v1490 = vsel %vm965, %v1476, %v1253
        %v1492 = vsel %vm965, %v1478, %v1255
        %v1494 = vsel %vm965, %v1480, %v1257
        %v1496 = vsel %vm965, %v1482, %v1259
        %v1498 = vsel %vm980, %v1484, %v1302
        %v1500 = vsel %vm980, %v1486, %v1304
        %v1502 = vsel %vm980, %v1488, %v1306
        %v1504 = vsel %vm980, %v1490, %v1308
        %v1506 = vsel %vm980, %v1492, %v1310
        %v1508 = vsel %vm980, %v1494, %v1312
        %v1510 = vsel %vm980, %v1496, %v1314
        %v1512 = vsel %vm995, %v1498, %v1330
        %v1514 = vsel %vm995, %v1500, %v1332
        %v1516 = vsel %vm995, %v1502, %v1334
        %v1518 = vsel %vm995, %v1504, %v1336
        %v1520 = vsel %vm995, %v1506, %v1338
        %v1522 = vsel %vm995, %v1508, %v1340
        %v1524 = vsel %vm995, %v1510, %v1342
        %v1526 = vsel %vm1010, %v1512, %v1373
        %v1528 = vsel %vm1010, %v1514, %v1375
        %v1530 = vsel %vm1010, %v1516, %v1377
        %v1532 = vsel %vm1010, %v1518, %v1379
        %v1534 = vsel %vm1010, %v1520, %v1381
        %v1536 = vsel %vm1010, %v1522, %v1383
        %v1538 = vsel %vm1010, %v1524, %v1385
        %v1540 = vsel %vm1025, %v1526, %v1403
        %v1542 = vsel %vm1025, %v1528, %v1405
        %v1544 = vsel %vm1025, %v1530, %v1407
        %v1546 = vsel %vm1025, %v1532, %v1409
        %v1548 = vsel %vm1025, %v1534, %v1411
        %v1550 = vsel %vm1025, %v1536, %v1413
        %v1552 = vsel %vm1025, %v1538, %v1415
        %v1554 = vsel %vm1040, %v1540, %v1442
        %v1556 = vsel %vm1040, %v1542, %v1444
        %v1558 = vsel %vm1040, %v1544, %v1446
        %v1560 = vsel %vm1040, %v1546, %v1448
        %v1562 = vsel %vm1040, %v1548, %v1450
        %v1564 = vsel %vm1040, %v1550, %v1452
        %v1566 = vsel %vm1040, %v1552, %v1454
        %v1567 = vshrl.u32 %v1554, 16
        %v1569 = vrot.slane %v1567, 6
        %v1570 = vshll.u32 %v1554, 16
        %v1572 = vrot.slane %v1570, 7
        %v1573 = vor.u32 %v1569, %v1572
        %v1574 = vshrl.u32 %v1556, 16
        %v1576 = vrot.slane %v1574, 6
        %v1577 = vshll.u32 %v1556, 16
        %v1579 = vrot.slane %v1577, 7
        %v1580 = vor.u32 %v1576, %v1579
        %v1581 = vsel %vm626, %v1573, %v1580
        %v1582 = vshrl.u32 %v1558, 16
        %v1584 = vrot.slane %v1582, 6
        %v1585 = vshll.u32 %v1558, 16
        %v1587 = vrot.slane %v1585, 7
        %v1588 = vor.u32 %v1584, %v1587
        %v1589 = vsel %vm626, %v1580, %v1588
        %v1590 = vshrl.u32 %v1560, 16
        %v1592 = vrot.slane %v1590, 6
        %v1593 = vshll.u32 %v1560, 16
        %v1595 = vrot.slane %v1593, 7
        %v1596 = vor.u32 %v1592, %v1595
        %v1597 = vsel %vm626, %v1588, %v1596
        %v1598 = vshrl.u32 %v1562, 16
        %v1600 = vrot.slane %v1598, 6
        %v1601 = vshll.u32 %v1562, 16
        %v1603 = vrot.slane %v1601, 7
        %v1604 = vor.u32 %v1600, %v1603
        %v1605 = vsel %vm626, %v1596, %v1604
        %v1606 = vshrl.u32 %v1564, 16
        %v1608 = vrot.slane %v1606, 6
        %v1609 = vshll.u32 %v1564, 16
        %v1611 = vrot.slane %v1609, 7
        %v1612 = vor.u32 %v1608, %v1611
        %v1613 = vsel %vm626, %v1604, %v1612
        %v1614 = vshrl.u32 %v1566, 16
        %v1616 = vrot.slane %v1614, 6
        %v1617 = vshll.u32 %v1566, 16
        %v1619 = vrot.slane %v1617, 7
        %v1620 = vor.u32 %v1616, %v1619
        %v1621 = vsel %vm626, %v1612, %v1620
        %vm1629 = vcmask 1044480
        %v1630 = vrot.slane %v1147, 3
        %v1631 = vrot.slane %v1149, 3
        %v1632 = vsel %vm1629, %v1630, %v1631
        %v1633 = vrot.slane %v1573, 3
        %v1634 = vrot.slane %v1581, 3
        %v1635 = vsel %vm1629, %v1633, %v1634
        %v1636 = vrot.slane %v1151, 3
        %v1637 = vsel %vm1629, %v1631, %v1636
        %v1638 = vrot.slane %v1589, 3
        %v1639 = vsel %vm1629, %v1634, %v1638
        %v1640 = vrot.slane %v1153, 3
        %v1641 = vsel %vm1629, %v1636, %v1640
        %v1642 = vrot.slane %v1597, 3
        %v1643 = vsel %vm1629, %v1638, %v1642
        %v1644 = vrot.slane %v1155, 3
        %v1645 = vsel %vm1629, %v1640, %v1644
        %v1646 = vrot.slane %v1605, 3
        %v1647 = vsel %vm1629, %v1642, %v1646
        %v1648 = vrot.slane %v1157, 3
        %v1649 = vsel %vm1629, %v1644, %v1648
        %v1650 = vrot.slane %v1613, 3
        %v1651 = vsel %vm1629, %v1646, %v1650
        %v1652 = vrot.slane %v1159, 3
        %v1653 = vsel %vm1629, %v1648, %v1652
        %v1654 = vrot.slane %v1621, 3
        %v1655 = vsel %vm1629, %v1650, %v1654
        %v1687 = vunpack.c.l.b16 %v331
        %v1688 = vunpack.c.l.b16 %v332
        %v1689 = vunpack.c.l.b16 %v333
        %v1690 = vunpack.c.l.b16 %v334
        %v1691 = vunpack.c.l.b16 %v335
        %v1692 = vunpack.c.l.b16 %v336
        %v1693 = vunpack.c.l.b16 %v337
        %v1694 = vunpack.c.l.b16 %v338
        %v1695 = vunpack.c.l.b16 %v339
        %v1696 = vunpack.c.l.b16 %v340
        %v1697 = vunpack.c.l.b16 %v341
        %v1698 = vunpack.c.l.b16 %v342
        %v1699 = vunpack.c.l.b16 %v343
        %v1700 = vunpack.c.l.b16 %v344
        %v1701 = vunpack.c.l.b16 %v345
        %v1702 = vunpack.c.l.b16 %v346
        %v1703 = vunpack.c.l.b16 %v347
        %v1704 = vunpack.c.l.b16 %v348
        %v1705 = vunpack.c.l.b16 %v349
        %v1706 = vunpack.c.l.b16 %v350
        %v1707 = vunpack.c.l.b16 %v351
        %v1708 = vunpack.c.l.b16 %v352
        %v1709 = vunpack.c.l.b16 %v353
        %v1710 = vunpack.c.l.b16 %v354
        %v1711 = vunpack.c.l.b16 %v355
        %v1712 = vpack.c.b16 %v1688, %v1687
        %v1713 = vpack.c.b16 %v1690, %v1689
        %v1714 = vpack.c.b16 %v1692, %v1691
        %v1715 = vpack.c.b16 %v1694, %v1693
        %v1716 = vpack.c.b16 %v1696, %v1695
        %v1717 = vpack.c.b16 %v1698, %v1697
        %v1718 = vpack.c.b16 %v1700, %v1699
        %v1719 = vpack.c.b16 %v1702, %v1701
        %v1720 = vpack.c.b16 %v1704, %v1703
        %v1721 = vpack.c.b16 %v1706, %v1705
        %v1722 = vpack.c.b16 %v1708, %v1707
        %v1723 = vpack.c.b16 %v1710, %v1709
        %v1724 = vpack.c.b16 %v1711, %v1711
        %v1738 = vsel %vm1055, %v1635, 0
        %v1741 = vsel %vm1055, %v1639, 0
        %v1744 = vsel %vm1055, %v1643, 0
        %v1747 = vsel %vm1055, %v1647, 0
        %v1750 = vsel %vm1055, %v1651, 0
        %v1753 = vsel %vm1055, %v1655, 0
        %vm1755 = vcmask 1043456
        %v1757 = vsel %vm1755, %v1724, 0
        %1759 = vmatpush.bf16.msra.mxu0 %v1719
        %1760 = vmatpush.bf16.msra.mxu0 %v1718
        %1761 = vmatpush.bf16.msra.mxu0 %v1717
        %1762 = vmatpush.bf16.msra.mxu0 %v1716
        %1763 = vmatpush.bf16.msra.mxu0 %v1715
        %1764 = vmatpush.bf16.msra.mxu0 %v1714
        %1765 = vmatpush.bf16.msra.mxu0 %v1713
        %1766 = vmatpush.bf16.msra.mxu0 %v1712
        %1767 = vmatmul.bf16.gmra.mxu0 %v1632
        %v1768 = vpop.f32.mrf.mxu0
        %v1769 = vadd.f32 0.0, %v1768
        %v1770 = vpop.f32.mrf.mxu0
        %v1771 = vadd.f32 0.0, %v1770
        %1772 = vmatmul.bf16.gmra.mxu0 %v1637
        %v1773 = vpop.f32.mrf.mxu0
        %v1774 = vadd.f32 0.0, %v1773
        %v1775 = vpop.f32.mrf.mxu0
        %v1776 = vadd.f32 0.0, %v1775
        %1777 = vmatmul.bf16.gmra.mxu0 %v1641
        %v1778 = vpop.f32.mrf.mxu0
        %v1779 = vadd.f32 0.0, %v1778
        %v1780 = vpop.f32.mrf.mxu0
        %v1781 = vadd.f32 0.0, %v1780
        %1782 = vmatmul.bf16.gmra.mxu0 %v1645
        %v1783 = vpop.f32.mrf.mxu0
        %v1784 = vadd.f32 0.0, %v1783
        %v1785 = vpop.f32.mrf.mxu0
        %v1786 = vadd.f32 0.0, %v1785
        %1787 = vmatmul.bf16.gmra.mxu0 %v1649
        %v1788 = vpop.f32.mrf.mxu0
        %v1789 = vadd.f32 0.0, %v1788
        %v1790 = vpop.f32.mrf.mxu0
        %v1791 = vadd.f32 0.0, %v1790
        %1792 = vmatmul.bf16.gmra.mxu0 %v1653
        %v1793 = vpop.f32.mrf.mxu0
        %v1794 = vadd.f32 0.0, %v1793
        %v1795 = vpop.f32.mrf.mxu0
        %v1796 = vadd.f32 0.0, %v1795
        %1797 = vdwg.mxu0
        %1798 = vmatpush.bf16.msra.mxu0 0
        %1799 = vmatpush.bf16.msra.mxu0 0
        %1800 = vmatpush.bf16.msra.mxu0 0
        %1801 = vmatpush.bf16.msra.mxu0 %v1757
        %1802 = vmatpush.bf16.msra.mxu0 %v1723
        %1803 = vmatpush.bf16.msra.mxu0 %v1722
        %1804 = vmatpush.bf16.msra.mxu0 %v1721
        %1805 = vmatpush.bf16.msra.mxu0 %v1720
        %1806 = vmatmul.bf16.gmra.mxu0 %v1738
        %v1807 = vpop.f32.mrf.mxu0
        %v1808 = vadd.f32 %v1769, %v1807
        %v1809 = vpop.f32.mrf.mxu0
        %v1810 = vadd.f32 %v1771, %v1809
        %1811 = vmatmul.bf16.gmra.mxu0 %v1741
        %v1812 = vpop.f32.mrf.mxu0
        %v1813 = vadd.f32 %v1774, %v1812
        %v1814 = vpop.f32.mrf.mxu0
        %v1815 = vadd.f32 %v1776, %v1814
        %1816 = vmatmul.bf16.gmra.mxu0 %v1744
        %v1817 = vpop.f32.mrf.mxu0
        %v1818 = vadd.f32 %v1779, %v1817
        %v1819 = vpop.f32.mrf.mxu0
        %v1820 = vadd.f32 %v1781, %v1819
        %1821 = vmatmul.bf16.gmra.mxu0 %v1747
        %v1822 = vpop.f32.mrf.mxu0
        %v1823 = vadd.f32 %v1784, %v1822
        %v1824 = vpop.f32.mrf.mxu0
        %v1825 = vadd.f32 %v1786, %v1824
        %1826 = vmatmul.bf16.gmra.mxu0 %v1750
        %v1827 = vpop.f32.mrf.mxu0
        %v1828 = vadd.f32 %v1789, %v1827
        %v1829 = vpop.f32.mrf.mxu0
        %v1830 = vadd.f32 %v1791, %v1829
        %1831 = vmatmul.bf16.gmra.mxu0 %v1753
        %v1832 = vpop.f32.mrf.mxu0
        %v1833 = vadd.f32 %v1794, %v1832
        %v1834 = vpop.f32.mrf.mxu0
        %v1835 = vadd.f32 %v1796, %v1834
        %1836 = vdwg.mxu0
        %v1837 = vld [vmem:[#allocation2] sm:$0xff]
        %v1838 = vld [vmem:[#allocation2 + $0x8] sm:$0xff]
        %v1839 = vld [vmem:[#allocation2 + $0x10] sm:$0xff]
        %v1840 = vld [vmem:[#allocation2 + $0x18] sm:$0xff]
        %v1841 = vld [vmem:[#allocation2 + $0x20] sm:$0xff]
        %v1842 = vld [vmem:[#allocation2 + $0x28] sm:$0xff]
        %v1843 = vld [vmem:[#allocation2 + $0x30] sm:$0xff]
        %v1844 = vld [vmem:[#allocation2 + $0x38] sm:$0xff]
        %v1845 = vld [vmem:[#allocation2 + $0x40] sm:$0xff]
        %v1846 = vld [vmem:[#allocation2 + $0x48] sm:$0xff]
        %v1847 = vld [vmem:[#allocation2 + $0x50] sm:$0xff]
        %v1848 = vld [vmem:[#allocation2 + $0x58] sm:$0xff]
        %v1849 = vadd.f32 %v1837, %v1808
        %v1850 = vadd.f32 %v1838, %v1810
        %v1851 = vadd.f32 %v1839, %v1813
        %v1852 = vadd.f32 %v1840, %v1815
        %v1853 = vadd.f32 %v1841, %v1818
        %v1854 = vadd.f32 %v1842, %v1820
        %v1855 = vadd.f32 %v1843, %v1823
        %v1856 = vadd.f32 %v1844, %v1825
        %v1857 = vadd.f32 %v1845, %v1828
        %v1858 = vadd.f32 %v1846, %v1830
        %v1859 = vadd.f32 %v1847, %v1833
        %v1860 = vadd.f32 %v1848, %v1835
        %1861 = vst [vmem:[#allocation2] sm:$0xff] %v1849
        %1862 = vst [vmem:[#allocation2 + $0x8] sm:$0xff] %v1850
        %1863 = vst [vmem:[#allocation2 + $0x10] sm:$0xff] %v1851
        %1864 = vst [vmem:[#allocation2 + $0x18] sm:$0xff] %v1852
        %1865 = vst [vmem:[#allocation2 + $0x20] sm:$0xff] %v1853
        %1866 = vst [vmem:[#allocation2 + $0x28] sm:$0xff] %v1854
        %1867 = vst [vmem:[#allocation2 + $0x30] sm:$0xff] %v1855
        %1868 = vst [vmem:[#allocation2 + $0x38] sm:$0xff] %v1856
        %1869 = vst [vmem:[#allocation2 + $0x40] sm:$0xff] %v1857
        %1870 = vst [vmem:[#allocation2 + $0x48] sm:$0xff] %v1858
        %1871 = vst [vmem:[#allocation2 + $0x50] sm:$0xff] %v1859
        %1872 = vst [vmem:[#allocation2 + $0x58] sm:$0xff] %v1860
      $region44: #{upsample_forward.6} parent=35 // pred_fallthru
        _
      %p1873 = scmp.eq.s32.totalorder %s22, 4
      // Predicated region
      $region45: #{upsample_forward.6} parent=35 // pred_check
        %p1874 = pneg %p1873
      $region46: #{upsample_forward.6} parent=35 // pred_check_branch
        %1876 = sbr.rel (%p1874) target = $region48
      $region47: #{upsample_forward.6} parent=35 // pred_region
        %v1877 = vld [vmem:[#allocation2] sm:$0xff]
        %v1878 = vld [vmem:[#allocation2 + $0x8] sm:$0xff]
        %v1879 = vld [vmem:[#allocation2 + $0x10] sm:$0xff]
        %v1880 = vld [vmem:[#allocation2 + $0x18] sm:$0xff]
        %v1881 = vld [vmem:[#allocation2 + $0x20] sm:$0xff]
        %v1882 = vld [vmem:[#allocation2 + $0x28] sm:$0xff]
        %v1883 = vld [vmem:[#allocation2 + $0x30] sm:$0xff]
        %v1884 = vld [vmem:[#allocation2 + $0x38] sm:$0xff]
        %v1885 = vld [vmem:[#allocation2 + $0x40] sm:$0xff]
        %v1886 = vld [vmem:[#allocation2 + $0x48] sm:$0xff]
        %v1887 = vld [vmem:[#allocation2 + $0x50] sm:$0xff]
        %v1888 = vld [vmem:[#allocation2 + $0x58] sm:$0xff]
        %v1889 = vld [vmem:[%s2] sm:$0x1]
        %v1891 = vperm.slane %v1889, 0
        %v1893 = vadd.f32 %v1877, %v1891
        %v1894 = vadd.f32 %v1878, %v1891
        %v1895 = vadd.f32 %v1879, %v1891
        %v1896 = vadd.f32 %v1880, %v1891
        %v1897 = vadd.f32 %v1881, %v1891
        %v1898 = vadd.f32 %v1882, %v1891
        %v1899 = vadd.f32 %v1883, %v1891
        %v1900 = vadd.f32 %v1884, %v1891
        %v1901 = vadd.f32 %v1885, %v1891
        %v1902 = vadd.f32 %v1886, %v1891
        %v1903 = vadd.f32 %v1887, %v1891
        %v1904 = vadd.f32 %v1888, %v1891
        %v1905 = vmax.f32 %v1893, 0.0
        %v1906 = vmax.f32 %v1894, 0.0
        %v1907 = vmax.f32 %v1895, 0.0
        %v1908 = vmax.f32 %v1896, 0.0
        %v1909 = vmax.f32 %v1897, 0.0
        %v1910 = vmax.f32 %v1898, 0.0
        %v1911 = vmax.f32 %v1899, 0.0
        %v1912 = vmax.f32 %v1900, 0.0
        %v1913 = vmax.f32 %v1901, 0.0
        %v1914 = vmax.f32 %v1902, 0.0
        %v1915 = vmax.f32 %v1903, 0.0
        %v1916 = vmax.f32 %v1904, 0.0
        %v1917 = vld [vmem:[%s3] sm:$0xff]
        %v1918 = vld [vmem:[%s3 + $0x8] sm:$0xff]
        %v1919 = vld [vmem:[%s3 + $0x10] sm:$0xff]
        %v1920 = vld [vmem:[%s3 + $0x18] sm:$0xff]
        %v1921 = vld [vmem:[%s3 + $0x20] sm:$0xff]
        %v1922 = vld [vmem:[%s3 + $0x28] sm:$0xff]
        %v1923 = vld [vmem:[%s3 + $0x30] sm:$0xff]
        %v1924 = vld [vmem:[%s3 + $0x38] sm:$0xff]
        %v1925 = vld [vmem:[%s3 + $0x40] sm:$0xff]
        %v1926 = vld [vmem:[%s3 + $0x48] sm:$0xff]
        %v1927 = vld [vmem:[%s3 + $0x50] sm:$0xff]
        %v1928 = vld [vmem:[%s3 + $0x58] sm:$0xff]
        %1930 = vset.pattern.permute.xlu0 0
        %1931 = vperm.xlu0 %1930, %v1917
        %v1932 = vpop.permute.xlu0 %1931
        %1935 = vset.pattern.permute.xlu0 0
        %1936 = vperm.xlu0 %1935, %v1918
        %v1937 = vpop.permute.xlu0 %1936
        %1940 = vset.pattern.permute.xlu0 0
        %1941 = vperm.xlu0 %1940, %v1919
        %v1942 = vpop.permute.xlu0 %1941
        %1945 = vset.pattern.permute.xlu0 0
        %1946 = vperm.xlu0 %1945, %v1920
        %v1947 = vpop.permute.xlu0 %1946
        %1950 = vset.pattern.permute.xlu0 0
        %1951 = vperm.xlu0 %1950, %v1921
        %v1952 = vpop.permute.xlu0 %1951
        %1955 = vset.pattern.permute.xlu0 0
        %1956 = vperm.xlu0 %1955, %v1922
        %v1957 = vpop.permute.xlu0 %1956
        %1960 = vset.pattern.permute.xlu0 0
        %1961 = vperm.xlu0 %1960, %v1923
        %v1962 = vpop.permute.xlu0 %1961
        %1965 = vset.pattern.permute.xlu0 0
        %1966 = vperm.xlu0 %1965, %v1924
        %v1967 = vpop.permute.xlu0 %1966
        %1970 = vset.pattern.permute.xlu0 0
        %1971 = vperm.xlu0 %1970, %v1925
        %v1972 = vpop.permute.xlu0 %1971
        %1975 = vset.pattern.permute.xlu0 0
        %1976 = vperm.xlu0 %1975, %v1926
        %v1977 = vpop.permute.xlu0 %1976
        %1980 = vset.pattern.permute.xlu0 0
        %1981 = vperm.xlu0 %1980, %v1927
        %v1982 = vpop.permute.xlu0 %1981
        %1985 = vset.pattern.permute.xlu0 0
        %1986 = vperm.xlu0 %1985, %v1928
        %v1987 = vpop.permute.xlu0 %1986
        %v1989 = vmul.f32 %v1905, %v1932
        %v1990 = vmul.f32 %v1906, %v1937
        %v1991 = vmul.f32 %v1907, %v1942
        %v1992 = vmul.f32 %v1908, %v1947
        %v1993 = vmul.f32 %v1909, %v1952
        %v1994 = vmul.f32 %v1910, %v1957
        %v1995 = vmul.f32 %v1911, %v1962
        %v1996 = vmul.f32 %v1912, %v1967
        %v1997 = vmul.f32 %v1913, %v1972
        %v1998 = vmul.f32 %v1914, %v1977
        %v1999 = vmul.f32 %v1915, %v1982
        %v2000 = vmul.f32 %v1916, %v1987
        %2001 = vst [vmem:[%s282] sm:$0xf] 0
        %2002 = vst [vmem:[%s282 + $0x4] sm:$0xf] 0
        %2003 = vst [vmem:[%s282 + $0x8] sm:$0xf] 0
        %2004 = vst [vmem:[%s282 + $0xc] sm:$0xf] 0
        %2005 = vst [vmem:[%s282 + $0x10] sm:$0xf] 0
        %2006 = vst [vmem:[%s282 + $0x14] sm:$0xf] 0
        %2007 = vst [vmem:[%s282 + $0x18] sm:$0xf] 0
        %2008 = vst [vmem:[%s282 + $0x1c] sm:$0xf] 0
        %2009 = vst [vmem:[%s282 + $0x20] sm:$0xf] 0
        %2010 = vst [vmem:[%s282 + $0x24] sm:$0xf] 0
        %2011 = vst [vmem:[%s282 + $0x28] sm:$0xf] 0
        %2012 = vst [vmem:[%s282 + $0x2c] sm:$0xf] 0
        %2013 = vst [vmem:[%s282 + $0x30] sm:$0xf] 0
        %2014 = vst [vmem:[%s282 + $0x34] sm:$0xf] 0
        %2015 = vst [vmem:[%s282 + $0x38] sm:$0xf] 0
        %2016 = vst [vmem:[%s282 + $0x3c] sm:$0xf] 0
        %2017 = vst [vmem:[%s282 + $0x40] sm:$0xf] 0
        %2018 = vst [vmem:[%s282 + $0x44] sm:$0xf] 0
        %2019 = vst [vmem:[%s282 + $0x48] sm:$0xf] 0
        %2020 = vst [vmem:[%s282 + $0x4c] sm:$0xf] 0
        %v2021 = vpack.c.bf16 %v1989, %v1989
        %v2022 = vpack.c.bf16 %v1990, %v1990
        %v2023 = vpack.c.bf16 %v1991, %v1991
        %v2024 = vpack.c.bf16 %v1992, %v1992
        %v2025 = vpack.c.bf16 %v1993, %v1993
        %v2026 = vpack.c.bf16 %v1994, %v1994
        %v2027 = vpack.c.bf16 %v1995, %v1995
        %v2028 = vpack.c.bf16 %v1996, %v1996
        %v2029 = vpack.c.bf16 %v1997, %v1997
        %v2030 = vpack.c.bf16 %v1998, %v1998
        %v2031 = vpack.c.bf16 %v1999, %v1999
        %v2032 = vpack.c.bf16 %v2000, %v2000
        %2033 = vst [vmem:[%s282 + $0x10] sm:$0xf] %v2021
        %2034 = vst [vmem:[%s282 + $0x14] sm:$0xf] %v2022
        %2035 = vst [vmem:[%s282 + $0x18] sm:$0xf] %v2023
        %2036 = vst [vmem:[%s282 + $0x1c] sm:$0xf] %v2024
        %2037 = vst [vmem:[%s282 + $0x20] sm:$0xf] %v2025
        %2038 = vst [vmem:[%s282 + $0x24] sm:$0xf] %v2026
        %2039 = vst [vmem:[%s282 + $0x28] sm:$0xf] %v2027
        %2040 = vst [vmem:[%s282 + $0x2c] sm:$0xf] %v2028
        %2041 = vst [vmem:[%s282 + $0x30] sm:$0xf] %v2029
        %2042 = vst [vmem:[%s282 + $0x34] sm:$0xf] %v2030
        %2043 = vst [vmem:[%s282 + $0x38] sm:$0xf] %v2031
        %2044 = vst [vmem:[%s282 + $0x3c] sm:$0xf] %v2032
      $region48: #{upsample_forward.6} parent=35 // pred_fallthru
        _
      %p2045 = scmp.lt.s32.totalorder %s20, 1
      %s2046 = scalar_select %p2045, %s20, 1
      %p2047 = scmp.lt.s32.totalorder %s21, 7
      %s2048 = scalar_select %p2047, %s21, 7
      %s2049 = smul.addr %s2048, 20
      %s2050 = smul.addr %s2046, 160
      %s2051 = sadd.s32 %s2049, %s2050
      %s2052 = smul.addr %s2051, 4
      %s2053 = scalar_lea.vmem %s4, %s2052
      // Predicated region
      $region49: #{upsample_forward.6} parent=35 // pred_check
        %p2054 = pneg %p157
      $region50: #{upsample_forward.6} parent=35 // pred_check_branch
        %2056 = sbr.rel (%p2054) target = $region52
      $region51: #{upsample_forward.6} parent=35 // pred_region
        _
      $region52: #{upsample_forward.6} parent=35 // pred_fallthru
        _
    $region36: #{upsample_forward.6} parent=5 // pred_fallthru
      _
    %p2057 = scmp.le.s32.totalorder 2, %s10
    // Predicated region
    $region53: #{upsample_forward.6} parent=5 // pred_check
      %p2058 = pneg %p2057
    $region54: #{upsample_forward.6} parent=5 // pred_check_branch
      %2060 = sbr.rel (%p2058) target = $region56
    $region55: #{upsample_forward.6} parent=5 // pred_region
      %s2061 = ssub.s32 %s10, 2
      // Predicated region
      $region57: #{upsample_forward.6} parent=55 // pred_check
        %p2062 = pneg %p163
      $region58: #{upsample_forward.6} parent=55 // pred_check_branch
        %2064 = sbr.rel (%p2062) target = $region60
      $region59: #{upsample_forward.6} parent=55 // pred_region
        %p2065 = scmp.lt.s32.totalorder %s23, 1
        %s2066 = scalar_select %p2065, %s23, 1
        %p2067 = scmp.lt.s32.totalorder %s24, 7
        %s2068 = scalar_select %p2067, %s24, 7
        %s2069 = smul.addr %s2068, 20
        %s2070 = smul.addr %s2066, 160
        %s2071 = sadd.s32 %s2069, %s2070
        %s2072 = smul.addr %s2071, 4
        %s2073 = scalar_lea.vmem %s4, %s2072
      $region60: #{upsample_forward.6} parent=55 // pred_fallthru
        _
    $region56: #{upsample_forward.6} parent=5 // pred_fallthru
      _
  $region6: #{upsample_forward.6} parent=0 // loop_footer
    %s14 = sadd.s32 1, %s10
  $region7: #{upsample_forward.6} parent=0 // loop_footer_branch
    %9 = sbr.rel target = $region3
  $region8: #{upsample_forward.6} parent=0 // loop_exit
    _

// kernel: upsample_forward.7
$region0: #{upsample_forward.7}
  #allocation0 [shape = 'u32[]', space=smem, size = 0x4, offset = 0x4, fixed_abs, tag = 'smem constant byte address 0x4 - core index']
  #allocation1 [shape = 'u32[72,128]{1,0:T(1,128)}', space=vmem, size = 0x9000, scoped, tag = 'internal scratch']
  #allocation2 [shape = 'f32[96,128]{1,0:T(8,128)}', space=vmem, size = 0xc000, scoped, tag = 'scratch operand']
  %s0 = inlined_call_operand.vmem [shape: bf16[2,8,160,128], index: 0, kind: input, shape index: {}]
  %s1 = inlined_call_operand.vmem [shape: bf16[5,100,128], index: 1, kind: input, shape index: {}]
  %s2 = inlined_call_operand.vmem [shape: f32[1,128], index: 2, kind: input, shape index: {}]
  %s3 = inlined_call_operand.vmem [shape: f32[96,1], index: 3, kind: input, shape index: {}]
  %s4 = inlined_call_operand.vmem [shape: bf16[2,8,160,128], index: 4, kind: output, shape index: {}]
  %s5 = sld [smem:[#allocation0]]
  $region61: #{upsample_forward.7} parent=0
    _
  %s7 = ssub.s32 1, %s5
  %s8 = scalar_select 0, %s7, %s5
  loop: start=0, step=1, limit=82
  $region2: #{upsample_forward.7} parent=0 // loop_pre_header
    _
  $region3: #{upsample_forward.7} parent=0 // loop_header
    %s10 = sphi 0, %s14
    %p11 = scmp.ge.s32.totalorder %s10, 82
    %s17 = sphi 0, %s36
    %s18 = sphi 0, %s32
    %s19 = sphi 0, %s28
    %s20 = sphi 0, %s17
    %s21 = sphi 0, %s18
    %s22 = sphi 0, %s19
    %s23 = sphi 0, %s20
    %s24 = sphi 0, %s21
    %s25 = sphi 0, %s22
    %s53 = sphi 0, %s55
    %s56 = sphi 0, %s53
    %s57 = sphi 0, %s56
    %s73 = sphi 0, %s57
    %s77 = sphi 0, %s77
    %s79 = sphi 0, %s77
    %s80 = sphi 0, %s79
    %s94 = sphi 0, %s80
    %s98 = sphi 0, %s98
    %s100 = sphi 0, %s98
    %s101 = sphi 0, %s100
    %s115 = sphi 0, %s101
    %s119 = sphi 0, %s119
    %s121 = sphi 0, %s119
    %s122 = sphi 0, %s121
    %s136 = sphi 0, %s122
    %s144 = sphi 0, %s146
    %s147 = sphi 0, %s144
    %s148 = sphi 0, %s147
    %s164 = sphi 0, %s148
  $region4: #{upsample_forward.7} parent=0 // loop_header_branch
    %13 = sbr.rel (%p11) target = $region8
  $region5: #{upsample_forward.7} parent=0 // loop_body
    %s15 = ssub.s32 %s10, 1
    %s16 = ssub.s32 %s10, 2
    %s26 = sadd.s32 1, %s19
    %p27 = scmp.ge.s32.totalorder %s26, 5
    %s28 = scalar_select %p27, 0, %s26
    %s29 = sadd.s32 1, %s18
    %s30 = scalar_select %p27, %s29, %s18
    %p31 = scmp.ge.s32.totalorder %s30, 8
    %s32 = scalar_select %p31, 0, %s30
    %s33 = sadd.s32 1, %s17
    %s34 = scalar_select %p31, %s33, %s17
    %p35 = scmp.ge.s32.totalorder %s34, 2
    %s36 = scalar_select %p35, 0, %s34
    %s37 = sadd.s32 %s18, %s19
    %s38 = ssub.s32 %s37, 2
    %p39 = scmp.gt.s32.totalorder %s38, 0
    %s40 = scalar_select %p39, %s38, 0
    %p41 = scmp.lt.s32.totalorder %s40, 7
    %s42 = scalar_select %p41, %s40, 7
    %s43 = sadd.s32 %s32, %s28
    %s44 = ssub.s32 %s43, 2
    %p45 = scmp.gt.s32.totalorder %s44, 0
    %s46 = scalar_select %p45, %s44, 0
    %p47 = scmp.lt.s32.totalorder %s46, 7
    %s48 = scalar_select %p47, %s46, 7
    %s49 = ssub.s32 %s17, %s36
    %s50 = ssub.s32 %s42, %s48
    %s51 = sor.u32 %s49, %s50
    %p52 = scmp.eq.s32.totalorder %s51, 0
    %s54 = sadd.s32 %s53, 1
    %s55 = scalar_select %p52, %s53, %s54
    %p58 = pneg %p52
    %p59 = scmp.eq.s32.totalorder %s10, 79
    %p60 = por %p58, %p59
    %p61 = scmp.ne.s32.totalorder %s53, %s56
    %p62 = scmp.eq.s32.totalorder %s10, 0
    %p63 = por %p61, %p62
    %p64 = scmp.ne.s32.totalorder %s53, %s56
    %p65 = scmp.eq.s32.totalorder %s15, 79
    %p66 = por %p64, %p65
    %p67 = scmp.ne.s32.totalorder %s56, %s57
    %p68 = scmp.eq.s32.totalorder %s15, 0
    %p69 = por %p67, %p68
    %p70 = scmp.ne.s32.totalorder %s56, %s57
    %p71 = scmp.eq.s32.totalorder %s16, 79
    %p72 = por %p70, %p71
    %p74 = scmp.ne.s32.totalorder %s57, %s73
    %p75 = scmp.eq.s32.totalorder %s16, 0
    %p76 = por %p74, %p75
    %s78 = sadd.s32 %s77, 1
    %p81 = scmp.eq.s32.totalorder %s10, 79
    %p82 = scmp.ne.s32.totalorder %s77, %s79
    %p83 = scmp.eq.s32.totalorder %s10, 0
    %p84 = por %p82, %p83
    %p85 = scmp.ne.s32.totalorder %s77, %s79
    %p86 = scmp.eq.s32.totalorder %s15, 79
    %p87 = por %p85, %p86
    %p88 = scmp.ne.s32.totalorder %s79, %s80
    %p89 = scmp.eq.s32.totalorder %s15, 0
    %p90 = por %p88, %p89
    %p91 = scmp.ne.s32.totalorder %s79, %s80
    %p92 = scmp.eq.s32.totalorder %s16, 79
    %p93 = por %p91, %p92
    %p95 = scmp.ne.s32.totalorder %s80, %s94
    %p96 = scmp.eq.s32.totalorder %s16, 0
    %p97 = por %p95, %p96
    %s99 = sadd.s32 %s98, 1
    %p102 = scmp.eq.s32.totalorder %s10, 79
    %p103 = scmp.ne.s32.totalorder %s98, %s100
    %p104 = scmp.eq.s32.totalorder %s10, 0
    %p105 = por %p103, %p104
    %p106 = scmp.ne.s32.totalorder %s98, %s100
    %p107 = scmp.eq.s32.totalorder %s15, 79
    %p108 = por %p106, %p107
    %p109 = scmp.ne.s32.totalorder %s100, %s101
    %p110 = scmp.eq.s32.totalorder %s15, 0
    %p111 = por %p109, %p110
    %p112 = scmp.ne.s32.totalorder %s100, %s101
    %p113 = scmp.eq.s32.totalorder %s16, 79
    %p114 = por %p112, %p113
    %p116 = scmp.ne.s32.totalorder %s101, %s115
    %p117 = scmp.eq.s32.totalorder %s16, 0
    %p118 = por %p116, %p117
    %s120 = sadd.s32 %s119, 1
    %p123 = scmp.eq.s32.totalorder %s10, 79
    %p124 = scmp.ne.s32.totalorder %s119, %s121
    %p125 = scmp.eq.s32.totalorder %s10, 0
    %p126 = por %p124, %p125
    %p127 = scmp.ne.s32.totalorder %s119, %s121
    %p128 = scmp.eq.s32.totalorder %s15, 79
    %p129 = por %p127, %p128
    %p130 = scmp.ne.s32.totalorder %s121, %s122
    %p131 = scmp.eq.s32.totalorder %s15, 0
    %p132 = por %p130, %p131
    %p133 = scmp.ne.s32.totalorder %s121, %s122
    %p134 = scmp.eq.s32.totalorder %s16, 79
    %p135 = por %p133, %p134
    %p137 = scmp.ne.s32.totalorder %s122, %s136
    %p138 = scmp.eq.s32.totalorder %s16, 0
    %p139 = por %p137, %p138
    %s140 = ssub.s32 %s17, %s36
    %s141 = ssub.s32 %s18, %s32
    %s142 = sor.u32 %s140, %s141
    %p143 = scmp.eq.s32.totalorder %s142, 0
    %s145 = sadd.s32 %s144, 1
    %s146 = scalar_select %p143, %s144, %s145
    %p149 = pneg %p143
    %p150 = scmp.eq.s32.totalorder %s10, 79
    %p151 = por %p149, %p150
    %p152 = scmp.ne.s32.totalorder %s144, %s147
    %p153 = scmp.eq.s32.totalorder %s10, 0
    %p154 = por %p152, %p153
    %p155 = scmp.ne.s32.totalorder %s144, %s147
    %p156 = scmp.eq.s32.totalorder %s15, 79
    %p157 = por %p155, %p156
    %p158 = scmp.ne.s32.totalorder %s147, %s148
    %p159 = scmp.eq.s32.totalorder %s15, 0
    %p160 = por %p158, %p159
    %p161 = scmp.ne.s32.totalorder %s147, %s148
    %p162 = scmp.eq.s32.totalorder %s16, 79
    %p163 = por %p161, %p162
    %p165 = scmp.ne.s32.totalorder %s148, %s164
    %p166 = scmp.eq.s32.totalorder %s16, 0
    %p167 = por %p165, %p166
    %p168 = scmp.le.s32.totalorder 1, %s10
    %p169 = scmp.lt.s32.totalorder %s10, 81
    %p170 = pnand %p168, %p169
    %p171 = pneg %p170
    // Predicated region
    $region9: #{upsample_forward.7} parent=5 // pred_check
      _
    $region10: #{upsample_forward.7} parent=5 // pred_check_branch
      %173 = sbr.rel (%p170) target = $region12
    $region11: #{upsample_forward.7} parent=5 // pred_region
      %s174 = ssub.s32 %s10, 1
      // Predicated region
      $region13: #{upsample_forward.7} parent=11 // pred_check
        %p175 = pneg %p90
      $region14: #{upsample_forward.7} parent=11 // pred_check_branch
        %177 = sbr.rel (%p175) target = $region16
      $region15: #{upsample_forward.7} parent=11 // pred_region
        _
      $region16: #{upsample_forward.7} parent=11 // pred_fallthru
        _
      // Predicated region
      $region17: #{upsample_forward.7} parent=11 // pred_check
        %p178 = pneg %p111
      $region18: #{upsample_forward.7} parent=11 // pred_check_branch
        %180 = sbr.rel (%p178) target = $region20
      $region19: #{upsample_forward.7} parent=11 // pred_region
        _
      $region20: #{upsample_forward.7} parent=11 // pred_fallthru
        _
      // Predicated region
      $region21: #{upsample_forward.7} parent=11 // pred_check
        %p181 = pneg %p132
      $region22: #{upsample_forward.7} parent=11 // pred_check_branch
        %183 = sbr.rel (%p181) target = $region24
      $region23: #{upsample_forward.7} parent=11 // pred_region
        _
      $region24: #{upsample_forward.7} parent=11 // pred_fallthru
        _
    $region12: #{upsample_forward.7} parent=5 // pred_fallthru
      _
    %p184 = scmp.lt.s32.totalorder %s10, 80
    // Predicated region
    $region25: #{upsample_forward.7} parent=5 // pred_check
      %p185 = pneg %p184
    $region26: #{upsample_forward.7} parent=5 // pred_check_branch
      %187 = sbr.rel (%p185) target = $region28
    $region27: #{upsample_forward.7} parent=5 // pred_region
      // Predicated region
      $region29: #{upsample_forward.7} parent=27 // pred_check
        %p188 = pneg %p63
      $region30: #{upsample_forward.7} parent=27 // pred_check_branch
        %190 = sbr.rel (%p188) target = $region32
      $region31: #{upsample_forward.7} parent=27 // pred_region
        %s191 = sadd.s32 %s18, %s19
        %s192 = ssub.s32 %s191, 2
        %p193 = scmp.gt.s32.totalorder %s192, 0
        %s194 = scalar_select %p193, %s192, 0
        %p195 = scmp.lt.s32.totalorder %s194, 7
        %s196 = scalar_select %p195, %s194, 7
        %p197 = scmp.lt.s32.totalorder %s17, 1
        %s198 = scalar_select %p197, %s17, 1
        %p199 = scmp.lt.s32.totalorder %s196, 7
        %s200 = scalar_select %p199, %s196, 7
        %s201 = smul.addr %s200, 20
        %s202 = smul.addr %s198, 160
        %s203 = sadd.s32 %s201, %s202
        %s204 = smul.addr %s203, 4
        %s205 = scalar_lea.vmem %s0, %s204
        %s206 = sadd.s32 %s18, %s19
        %s207 = ssub.s32 %s206, 2
        %p208 = scmp.gt.s32.totalorder %s207, 0
        %s209 = scalar_select %p208, %s207, 0
        %p210 = scmp.lt.s32.totalorder %s209, 7
        %s211 = scalar_select %p210, %s209, 7
      $region32: #{upsample_forward.7} parent=27 // pred_fallthru
        _
    $region28: #{upsample_forward.7} parent=5 // pred_fallthru
      _
    %p212 = scmp.le.s32.totalorder 1, %s10
    %p213 = scmp.lt.s32.totalorder %s10, 81
    %p214 = pnand %p212, %p213
    %p215 = pneg %p214
    // Predicated region
    $region33: #{upsample_forward.7} parent=5 // pred_check
      _
    $region34: #{upsample_forward.7} parent=5 // pred_check_branch
      %217 = sbr.rel (%p214) target = $region36
    $region35: #{upsample_forward.7} parent=5 // pred_region
      %s218 = ssub.s32 %s10, 1
      %s219 = sadd.s32 %s21, %s22
      %s220 = ssub.s32 %s219, 2
      %p221 = scmp.gt.s32.totalorder %s220, 0
      %s222 = scalar_select %p221, %s220, 0
      %p223 = scmp.lt.s32.totalorder %s222, 7
      %s224 = scalar_select %p223, %s222, 7
      %p225 = scmp.lt.s32.totalorder %s20, 1
      %s226 = scalar_select %p225, %s20, 1
      %p227 = scmp.lt.s32.totalorder %s224, 7
      %s228 = scalar_select %p227, %s224, 7
      %s229 = smul.addr %s228, 20
      %s230 = smul.addr %s226, 160
      %s231 = sadd.s32 %s229, %s230
      %s232 = smul.addr %s231, 4
      %s233 = scalar_lea.vmem %s0, %s232
      %p234 = pneg %p69
      %p235 = pneg %p66
      %p236 = pneg %p90
      %p237 = pneg %p87
      %p238 = pneg %p111
      %p239 = pneg %p108
      %p240 = pneg %p132
      %p241 = pneg %p129
      %p242 = pneg %p160
      %p243 = pneg %p157
      %p244 = scmp.lt.s32.totalorder %s20, 1
      %s245 = scalar_select %p244, %s20, 1
      %p246 = scmp.lt.s32.totalorder %s21, 7
      %s247 = scalar_select %p246, %s21, 7
      %s248 = smul.addr %s247, 20
      %s249 = smul.addr %s245, 160
      %s250 = sadd.s32 %s248, %s249
      %s251 = smul.addr %s250, 4
      %s252 = scalar_lea.vmem %s4, %s251
      %s253 = sadd.s32 %s21, %s22
      %s254 = ssub.s32 %s253, 2
      %p255 = scmp.gt.s32.totalorder %s254, 0
      %s256 = scalar_select %p255, %s254, 0
      %p257 = scmp.lt.s32.totalorder %s256, 7
      %s258 = scalar_select %p257, %s256, 7
      %p259 = scmp.lt.s32.totalorder %s20, 1
      %s260 = scalar_select %p259, %s20, 1
      %p261 = scmp.lt.s32.totalorder %s258, 7
      %s262 = scalar_select %p261, %s258, 7
      %s263 = smul.addr %s262, 20
      %s264 = smul.addr %s260, 160
      %s265 = sadd.s32 %s263, %s264
      %s266 = smul.addr %s265, 4
      %s267 = scalar_lea.vmem %s0, %s266
      %s268 = sadd.s32 %s21, %s22
      %s269 = ssub.s32 %s268, 2
      %p270 = scmp.gt.s32.totalorder %s269, 0
      %s271 = scalar_select %p270, %s269, 0
      %p272 = scmp.lt.s32.totalorder %s271, 7
      %s273 = scalar_select %p272, %s271, 7
      %p274 = scmp.lt.s32.totalorder %s20, 1
      %s275 = scalar_select %p274, %s20, 1
      %p276 = scmp.lt.s32.totalorder %s21, 7
      %s277 = scalar_select %p276, %s21, 7
      %s278 = smul.addr %s277, 20
      %s279 = smul.addr %s275, 160
      %s280 = sadd.s32 %s278, %s279
      %s281 = smul.addr %s280, 4
      %s282 = scalar_lea.vmem %s4, %s281
      %p284 = scmp.eq.s32.totalorder %s22, 0
      // Predicated region
      $region37: #{upsample_forward.7} parent=35 // pred_check
        %p285 = pneg %p284
      $region38: #{upsample_forward.7} parent=35 // pred_check_branch
        %287 = sbr.rel (%p285) target = $region40
      $region39: #{upsample_forward.7} parent=35 // pred_region
        %288 = vst [vmem:[#allocation2] sm:$0xff] 0.0
        %289 = vst [vmem:[#allocation2 + $0x8] sm:$0xff] 0.0
        %290 = vst [vmem:[#allocation2 + $0x10] sm:$0xff] 0.0
        %291 = vst [vmem:[#allocation2 + $0x18] sm:$0xff] 0.0
        %292 = vst [vmem:[#allocation2 + $0x20] sm:$0xff] 0.0
        %293 = vst [vmem:[#allocation2 + $0x28] sm:$0xff] 0.0
        %294 = vst [vmem:[#allocation2 + $0x30] sm:$0xff] 0.0
        %295 = vst [vmem:[#allocation2 + $0x38] sm:$0xff] 0.0
        %296 = vst [vmem:[#allocation2 + $0x40] sm:$0xff] 0.0
        %297 = vst [vmem:[#allocation2 + $0x48] sm:$0xff] 0.0
        %298 = vst [vmem:[#allocation2 + $0x50] sm:$0xff] 0.0
        %299 = vst [vmem:[#allocation2 + $0x58] sm:$0xff] 0.0
      $region40: #{upsample_forward.7} parent=35 // pred_fallthru
        _
      %s300 = sadd.s32 %s21, %s22
      %s301 = ssub.s32 %s300, 2
      %p302 = scmp.ge.s32.totalorder %s301, 0
      %p303 = scmp.lt.s32.totalorder %s301, 8
      %p304 = pnand %p302, %p303
      %p305 = pneg %p304
      // Predicated region
      $region41: #{upsample_forward.7} parent=35 // pred_check
        _
      $region42: #{upsample_forward.7} parent=35 // pred_check_branch
        %307 = sbr.rel (%p304) target = $region44
      $region43: #{upsample_forward.7} parent=35 // pred_region
        %v308 = vld [vmem:[%s267] sm:$0xf]
        %v309 = vld [vmem:[%s267 + $0x4] sm:$0xf]
        %v310 = vld [vmem:[%s267 + $0x8] sm:$0xf]
        %v311 = vld [vmem:[%s267 + $0xc] sm:$0xf]
        %v312 = vld [vmem:[%s267 + $0x10] sm:$0xf]
        %v313 = vld [vmem:[%s267 + $0x14] sm:$0xf]
        %v314 = vld [vmem:[%s267 + $0x18] sm:$0xf]
        %v315 = vld [vmem:[%s267 + $0x1c] sm:$0xf]
        %v316 = vld [vmem:[%s267 + $0x20] sm:$0xf]
        %v317 = vld [vmem:[%s267 + $0x24] sm:$0xf]
        %v318 = vld [vmem:[%s267 + $0x28] sm:$0xf]
        %v319 = vld [vmem:[%s267 + $0x2c] sm:$0xf]
        %v320 = vld [vmem:[%s267 + $0x30] sm:$0xf]
        %v321 = vld [vmem:[%s267 + $0x34] sm:$0xf]
        %v322 = vld [vmem:[%s267 + $0x38] sm:$0xf]
        %v323 = vld [vmem:[%s267 + $0x3c] sm:$0xf]
        %v324 = vld [vmem:[%s267 + $0x40] sm:$0xf]
        %v325 = vld [vmem:[%s267 + $0x44] sm:$0xf]
        %v326 = vld [vmem:[%s267 + $0x48] sm:$0xf]
        %v327 = vld [vmem:[%s267 + $0x4c] sm:$0xf]
        %s328 = smul.u32 %s22, 13
        %s329 = smul.addr %s328, 4
        %s330 = scalar_lea.vmem %s1, %s329
        %v331 = vld [vmem:[%s330] sm:$0xf]
        %v332 = vld [vmem:[%s330 + $0x4] sm:$0xf]
        %v333 = vld [vmem:[%s330 + $0x8] sm:$0xf]
        %v334 = vld [vmem:[%s330 + $0xc] sm:$0xf]
        %v335 = vld [vmem:[%s330 + $0x10] sm:$0xf]
        %v336 = vld [vmem:[%s330 + $0x14] sm:$0xf]
        %v337 = vld [vmem:[%s330 + $0x18] sm:$0xf]
        %v338 = vld [vmem:[%s330 + $0x1c] sm:$0xf]
        %v339 = vld [vmem:[%s330 + $0x20] sm:$0xf]
        %v340 = vld [vmem:[%s330 + $0x24] sm:$0xf]
        %v341 = vld [vmem:[%s330 + $0x28] sm:$0xf]
        %v342 = vld [vmem:[%s330 + $0x2c] sm:$0xf]
        %v343 = vld [vmem:[%s330 + $0x30] sm:$0x3]
        %v357 = vunpack.c.l.b16 %v308
        %v358 = vunpack.c.l.b16 %v309
        %v359 = vunpack.c.l.b16 %v310
        %v360 = vunpack.c.l.b16 %v311
        %v361 = vunpack.c.l.b16 %v312
        %v362 = vunpack.c.l.b16 %v313
        %v363 = vunpack.c.l.b16 %v314
        %v364 = vunpack.c.l.b16 %v315
        %v365 = vunpack.c.l.b16 %v316
        %v366 = vunpack.c.l.b16 %v317
        %v367 = vunpack.c.l.b16 %v318
        %v368 = vunpack.c.l.b16 %v319
        %v369 = vunpack.c.l.b16 %v320
        %v370 = vpack.c.b16 %v358, %v357
        %v371 = vpack.c.b16 %v360, %v359
        %v372 = vpack.c.b16 %v362, %v361
        %v373 = vpack.c.b16 %v364, %v363
        %v374 = vpack.c.b16 %v366, %v365
        %v375 = vpack.c.b16 %v368, %v367
        %v376 = vpack.c.b16 %v369, %v369
        %vm377 = vsmask.f32 7424
        %v379 = vshrl.u32 %v370, 16
        %v381 = vshll.u32 %v370, 16
        %v383 = vrot.slane %v381, 1
        %v384 = vor.u32 %v379, %v383
        %v386 = vshll.u32 %v371, 16
        %v388 = vrot.slane %v386, 1
        %v389 = vsel %vm377, %v384, %v388
        %v390 = vshrl.u32 %v371, 16
        %v392 = vor.u32 %v390, %v388
        %v394 = vshll.u32 %v372, 16
        %v396 = vrot.slane %v394, 1
        %v397 = vsel %vm377, %v392, %v396
        %v398 = vshrl.u32 %v372, 16
        %v400 = vor.u32 %v398, %v396
        %v402 = vshll.u32 %v373, 16
        %v404 = vrot.slane %v402, 1
        %v405 = vsel %vm377, %v400, %v404
        %v406 = vshrl.u32 %v373, 16
        %v408 = vor.u32 %v406, %v404
        %v410 = vshll.u32 %v374, 16
        %v412 = vrot.slane %v410, 1
        %v413 = vsel %vm377, %v408, %v412
        %v414 = vshrl.u32 %v374, 16
        %v416 = vor.u32 %v414, %v412
        %v418 = vshll.u32 %v375, 16
        %v420 = vrot.slane %v418, 1
        %v421 = vsel %vm377, %v416, %v420
        %v422 = vshrl.u32 %v375, 16
        %v424 = vor.u32 %v422, %v420
        %v426 = vshll.u32 %v376, 16
        %v428 = vrot.slane %v426, 1
        %v429 = vsel %vm377, %v424, %v428
        %v430 = vshrl.u32 %v376, 16
        %v432 = vor.u32 %v430, %v428
        %433 = vrot.lane.b32.xlu0 %v389, 4
        %v434 = vpop.permute.xlu0 %433
        %435 = vrot.lane.b32.xlu0 %v397, 4
        %v436 = vpop.permute.xlu0 %435
        %437 = vrot.lane.b32.xlu0 %v405, 4
        %v438 = vpop.permute.xlu0 %437
        %439 = vrot.lane.b32.xlu0 %v413, 4
        %v440 = vpop.permute.xlu0 %439
        %441 = vrot.lane.b32.xlu0 %v421, 4
        %v442 = vpop.permute.xlu0 %441
        %443 = vrot.lane.b32.xlu0 %v429, 4
        %v444 = vpop.permute.xlu0 %443
        %445 = vrot.lane.b32.xlu0 %v432, 4
        %v446 = vpop.permute.xlu0 %445
        %v447 = vpack.c.b16 %v359, %v358
        %v448 = vpack.c.b16 %v361, %v360
        %v449 = vpack.c.b16 %v363, %v362
        %v450 = vpack.c.b16 %v365, %v364
        %v451 = vpack.c.b16 %v367, %v366
        %v452 = vpack.c.b16 %v369, %v368
        %vm453 = vcmask 1042432
        %v454 = vrot.slane %v447, 5
        %v455 = vrot.slane %v448, 5
        %v456 = vsel %vm453, %v454, %v455
        %v457 = vrot.slane %v449, 5
        %v458 = vsel %vm453, %v455, %v457
        %v459 = vrot.slane %v450, 5
        %v460 = vsel %vm453, %v457, %v459
        %v461 = vrot.slane %v451, 5
        %v462 = vsel %vm453, %v459, %v461
        %v463 = vrot.slane %v452, 5
        %v464 = vsel %vm453, %v461, %v463
        %465 = vrot.lane.b32.xlu0 %v454, 8
        %v466 = vpop.permute.xlu0 %465
        %467 = vrot.lane.b32.xlu0 %v456, 8
        %v468 = vpop.permute.xlu0 %467
        %469 = vrot.lane.b32.xlu0 %v458, 8
        %v470 = vpop.permute.xlu0 %469
        %471 = vrot.lane.b32.xlu0 %v460, 8
        %v472 = vpop.permute.xlu0 %471
        %473 = vrot.lane.b32.xlu0 %v462, 8
        %v474 = vpop.permute.xlu0 %473
        %475 = vrot.lane.b32.xlu0 %v464, 8
        %v476 = vpop.permute.xlu0 %475
        %477 = vrot.lane.b32.xlu0 %v463, 8
        %v478 = vpop.permute.xlu0 %477
        %v480 = vunpack.c.l.b16 %v321
        %v481 = vpack.c.b16 %v480, %v480
        %vm482 = vsmask.f32 2304
        %v484 = vshrl.u32 %v447, 16
        %v486 = vrot.slane %v484, 5
        %v487 = vshll.u32 %v447, 16
        %v489 = vrot.slane %v487, 6
        %v490 = vor.u32 %v486, %v489
        %v492 = vshrl.u32 %v448, 16
        %v494 = vrot.slane %v492, 5
        %v495 = vshll.u32 %v448, 16
        %v497 = vrot.slane %v495, 6
        %v498 = vor.u32 %v494, %v497
        %v499 = vsel %vm482, %v490, %v498
        %v501 = vshrl.u32 %v449, 16
        %v503 = vrot.slane %v501, 5
        %v504 = vshll.u32 %v449, 16
        %v506 = vrot.slane %v504, 6
        %v507 = vor.u32 %v503, %v506
        %v508 = vsel %vm482, %v498, %v507
        %v510 = vshrl.u32 %v450, 16
        %v512 = vrot.slane %v510, 5
        %v513 = vshll.u32 %v450, 16
        %v515 = vrot.slane %v513, 6
        %v516 = vor.u32 %v512, %v515
        %v517 = vsel %vm482, %v507, %v516
        %v519 = vshrl.u32 %v451, 16
        %v521 = vrot.slane %v519, 5
        %v522 = vshll.u32 %v451, 16
        %v524 = vrot.slane %v522, 6
        %v525 = vor.u32 %v521, %v524
        %v526 = vsel %vm482, %v516, %v525
        %v528 = vshrl.u32 %v452, 16
        %v530 = vrot.slane %v528, 5
        %v531 = vshll.u32 %v452, 16
        %v533 = vrot.slane %v531, 6
        %v534 = vor.u32 %v530, %v533
        %v535 = vsel %vm482, %v525, %v534
        %v537 = vshll.u32 %v481, 16
        %v539 = vrot.slane %v537, 6
        %v540 = vsel %vm482, %v534, %v539
        %541 = vrot.lane.b32.xlu0 %v490, 12
        %v542 = vpop.permute.xlu0 %541
        %543 = vrot.lane.b32.xlu0 %v499, 12
        %v544 = vpop.permute.xlu0 %543
        %545 = vrot.lane.b32.xlu0 %v508, 12
        %v546 = vpop.permute.xlu0 %545
        %547 = vrot.lane.b32.xlu0 %v517, 12
        %v548 = vpop.permute.xlu0 %547
        %549 = vrot.lane.b32.xlu0 %v526, 12
        %v550 = vpop.permute.xlu0 %549
        %551 = vrot.lane.b32.xlu0 %v535, 12
        %v552 = vpop.permute.xlu0 %551
        %553 = vrot.lane.b32.xlu0 %v540, 12
        %v554 = vpop.permute.xlu0 %553
        %vm555 = vcmask 1041408
        %v556 = vrot.slane %v447, 6
        %v557 = vrot.slane %v448, 6
        %v558 = vsel %vm555, %v556, %v557
        %v559 = vrot.slane %v449, 6
        %v560 = vsel %vm555, %v557, %v559
        %v561 = vrot.slane %v450, 6
        %v562 = vsel %vm555, %v559, %v561
        %v563 = vrot.slane %v451, 6
        %v564 = vsel %vm555, %v561, %v563
        %v565 = vrot.slane %v452, 6
        %v566 = vsel %vm555, %v563, %v565
        %v567 = vrot.slane %v481, 6
        %v568 = vsel %vm555, %v565, %v567
        %569 = vrot.lane.b32.xlu0 %v556, 16
        %v570 = vpop.permute.xlu0 %569
        %571 = vrot.lane.b32.xlu0 %v558, 16
        %v572 = vpop.permute.xlu0 %571
        %573 = vrot.lane.b32.xlu0 %v560, 16
        %v574 = vpop.permute.xlu0 %573
        %575 = vrot.lane.b32.xlu0 %v562, 16
        %v576 = vpop.permute.xlu0 %575
        %577 = vrot.lane.b32.xlu0 %v564, 16
        %v578 = vpop.permute.xlu0 %577
        %579 = vrot.lane.b32.xlu0 %v566, 16
        %v580 = vpop.permute.xlu0 %579
        %581 = vrot.lane.b32.xlu0 %v568, 16
        %v582 = vpop.permute.xlu0 %581
        %v584 = vunpack.c.l.b16 %v322
        %v585 = vpack.c.b16 %v480, %v369
        %v586 = vpack.c.b16 %v584, %v584
        %v587 = vrot.slane %v371, 6
        %v588 = vrot.slane %v372, 6
        %v589 = vsel %vm555, %v587, %v588
        %v590 = vrot.slane %v373, 6
        %v591 = vsel %vm555, %v588, %v590
        %v592 = vrot.slane %v374, 6
        %v593 = vsel %vm555, %v590, %v592
        %v594 = vrot.slane %v375, 6
        %v595 = vsel %vm555, %v592, %v594
        %v596 = vrot.slane %v585, 6
        %v597 = vsel %vm555, %v594, %v596
        %v598 = vrot.slane %v586, 6
        %v599 = vsel %vm555, %v596, %v598
        %600 = vrot.lane.b32.xlu0 %v587, 20
        %v601 = vpop.permute.xlu0 %600
        %602 = vrot.lane.b32.xlu0 %v589, 20
        %v603 = vpop.permute.xlu0 %602
        %604 = vrot.lane.b32.xlu0 %v591, 20
        %v605 = vpop.permute.xlu0 %604
        %606 = vrot.lane.b32.xlu0 %v593, 20
        %v607 = vpop.permute.xlu0 %606
        %608 = vrot.lane.b32.xlu0 %v595, 20
        %v609 = vpop.permute.xlu0 %608
        %610 = vrot.lane.b32.xlu0 %v597, 20
        %v611 = vpop.permute.xlu0 %610
        %612 = vrot.lane.b32.xlu0 %v599, 20
        %v613 = vpop.permute.xlu0 %612
        %vm614 = vsmask.f32 1280
        %v615 = vrot.slane %v390, 6
        %v616 = vrot.slane %v386, 7
        %v617 = vor.u32 %v615, %v616
        %v618 = vrot.slane %v398, 6
        %v619 = vrot.slane %v394, 7
        %v620 = vor.u32 %v618, %v619
        %v621 = vsel %vm614, %v617, %v620
        %v622 = vrot.slane %v406, 6
        %v623 = vrot.slane %v402, 7
        %v624 = vor.u32 %v622, %v623
        %v625 = vsel %vm614, %v620, %v624
        %v626 = vrot.slane %v414, 6
        %v627 = vrot.slane %v410, 7
        %v628 = vor.u32 %v626, %v627
        %v629 = vsel %vm614, %v624, %v628
        %v630 = vrot.slane %v422, 6
        %v631 = vrot.slane %v418, 7
        %v632 = vor.u32 %v630, %v631
        %v633 = vsel %vm614, %v628, %v632
        %v635 = vshrl.u32 %v585, 16
        %v637 = vrot.slane %v635, 6
        %v638 = vshll.u32 %v585, 16
        %v640 = vrot.slane %v638, 7
        %v641 = vor.u32 %v637, %v640
        %v642 = vsel %vm614, %v632, %v641
        %v644 = vshrl.u32 %v586, 16
        %v646 = vrot.slane %v644, 6
        %v647 = vshll.u32 %v586, 16
        %v649 = vrot.slane %v647, 7
        %v650 = vor.u32 %v646, %v649
        %v651 = vsel %vm614, %v641, %v650
        %652 = vrot.lane.b32.xlu0 %v617, 24
        %v653 = vpop.permute.xlu0 %652
        %654 = vrot.lane.b32.xlu0 %v621, 24
        %v655 = vpop.permute.xlu0 %654
        %656 = vrot.lane.b32.xlu0 %v625, 24
        %v657 = vpop.permute.xlu0 %656
        %658 = vrot.lane.b32.xlu0 %v629, 24
        %v659 = vpop.permute.xlu0 %658
        %660 = vrot.lane.b32.xlu0 %v633, 24
        %v661 = vpop.permute.xlu0 %660
        %662 = vrot.lane.b32.xlu0 %v642, 24
        %v663 = vpop.permute.xlu0 %662
        %664 = vrot.lane.b32.xlu0 %v651, 24
        %v665 = vpop.permute.xlu0 %664
        %vm666 = vcmask 1040384
        %v667 = vrot.slane %v371, 7
        %v668 = vrot.slane %v372, 7
        %v669 = vsel %vm666, %v667, %v668
        %v670 = vrot.slane %v373, 7
        %v671 = vsel %vm666, %v668, %v670
        %v672 = vrot.slane %v374, 7
        %v673 = vsel %vm666, %v670, %v672
        %v674 = vrot.slane %v375, 7
        %v675 = vsel %vm666, %v672, %v674
        %v676 = vrot.slane %v585, 7
        %v677 = vsel %vm666, %v674, %v676
        %v678 = vrot.slane %v586, 7
        %v679 = vsel %vm666, %v676, %v678
        %680 = vrot.lane.b32.xlu0 %v667, 28
        %v681 = vpop.permute.xlu0 %680
        %682 = vrot.lane.b32.xlu0 %v669, 28
        %v683 = vpop.permute.xlu0 %682
        %684 = vrot.lane.b32.xlu0 %v671, 28
        %v685 = vpop.permute.xlu0 %684
        %686 = vrot.lane.b32.xlu0 %v673, 28
        %v687 = vpop.permute.xlu0 %686
        %688 = vrot.lane.b32.xlu0 %v675, 28
        %v689 = vpop.permute.xlu0 %688
        %690 = vrot.lane.b32.xlu0 %v677, 28
        %v691 = vpop.permute.xlu0 %690
        %692 = vrot.lane.b32.xlu0 %v679, 28
        %v693 = vpop.permute.xlu0 %692
        %vm694 = vsmask.f32 256
        %v695 = vrot.slane %v390, 7
        %v696 = vor.u32 %v695, %v386
        %v697 = vrot.slane %v398, 7
        %v698 = vor.u32 %v697, %v394
        %v699 = vsel %vm694, %v695, %v698
        %v700 = vrot.slane %v406, 7
        %v701 = vor.u32 %v700, %v402
        %v702 = vsel %vm694, %v697, %v701
        %v703 = vrot.slane %v414, 7
        %v704 = vor.u32 %v703, %v410
        %v705 = vsel %vm694, %v700, %v704
        %v706 = vrot.slane %v422, 7
        %v707 = vor.u32 %v706, %v418
        %v708 = vsel %vm694, %v703, %v707
        %v709 = vrot.slane %v635, 7
        %v710 = vor.u32 %v709, %v638
        %v711 = vsel %vm694, %v706, %v710
        %v712 = vrot.slane %v644, 7
        %v713 = vor.u32 %v712, %v647
        %v714 = vsel %vm694, %v709, %v713
        %715 = vrot.lane.b32.xlu0 %v696, 32
        %v716 = vpop.permute.xlu0 %715
        %717 = vrot.lane.b32.xlu0 %v699, 32
        %v718 = vpop.permute.xlu0 %717
        %719 = vrot.lane.b32.xlu0 %v702, 32
        %v720 = vpop.permute.xlu0 %719
        %721 = vrot.lane.b32.xlu0 %v705, 32
        %v722 = vpop.permute.xlu0 %721
        %723 = vrot.lane.b32.xlu0 %v708, 32
        %v724 = vpop.permute.xlu0 %723
        %725 = vrot.lane.b32.xlu0 %v711, 32
        %v726 = vpop.permute.xlu0 %725
        %727 = vrot.lane.b32.xlu0 %v714, 32
        %v728 = vpop.permute.xlu0 %727
        %729 = vrot.lane.b32.xlu0 %v371, 36
        %v730 = vpop.permute.xlu0 %729
        %731 = vrot.lane.b32.xlu0 %v372, 36
        %v732 = vpop.permute.xlu0 %731
        %733 = vrot.lane.b32.xlu0 %v373, 36
        %v734 = vpop.permute.xlu0 %733
        %735 = vrot.lane.b32.xlu0 %v374, 36
        %v736 = vpop.permute.xlu0 %735
        %737 = vrot.lane.b32.xlu0 %v375, 36
        %v738 = vpop.permute.xlu0 %737
        %739 = vrot.lane.b32.xlu0 %v585, 36
        %v740 = vpop.permute.xlu0 %739
        %741 = vrot.lane.b32.xlu0 %v586, 36
        %v742 = vpop.permute.xlu0 %741
        %v744 = vunpack.c.l.b16 %v323
        %v745 = vpack.c.b16 %v584, %v480
        %v746 = vpack.c.b16 %v744, %v744
        %747 = vrot.lane.b32.xlu0 %v448, 40
        %v748 = vpop.permute.xlu0 %747
        %749 = vrot.lane.b32.xlu0 %v449, 40
        %v750 = vpop.permute.xlu0 %749
        %751 = vrot.lane.b32.xlu0 %v450, 40
        %v752 = vpop.permute.xlu0 %751
        %753 = vrot.lane.b32.xlu0 %v451, 40
        %v754 = vpop.permute.xlu0 %753
        %755 = vrot.lane.b32.xlu0 %v452, 40
        %v756 = vpop.permute.xlu0 %755
        %757 = vrot.lane.b32.xlu0 %v745, 40
        %v758 = vpop.permute.xlu0 %757
        %759 = vrot.lane.b32.xlu0 %v746, 40
        %v760 = vpop.permute.xlu0 %759
        %v761 = vrot.slane %v495, 1
        %v762 = vor.u32 %v492, %v761
        %v763 = vrot.slane %v504, 1
        %v764 = vsel %vm377, %v762, %v763
        %v765 = vor.u32 %v501, %v763
        %v766 = vrot.slane %v513, 1
        %v767 = vsel %vm377, %v765, %v766
        %v768 = vor.u32 %v510, %v766
        %v769 = vrot.slane %v522, 1
        %v770 = vsel %vm377, %v768, %v769
        %v771 = vor.u32 %v519, %v769
        %v772 = vrot.slane %v531, 1
        %v773 = vsel %vm377, %v771, %v772
        %v774 = vor.u32 %v528, %v772
        %v776 = vshll.u32 %v745, 16
        %v778 = vrot.slane %v776, 1
        %v779 = vsel %vm377, %v774, %v778
        %v780 = vshrl.u32 %v745, 16
        %v782 = vor.u32 %v780, %v778
        %v784 = vshll.u32 %v746, 16
        %v786 = vrot.slane %v784, 1
        %v787 = vsel %vm377, %v782, %v786
        %v788 = vshrl.u32 %v746, 16
        %v790 = vor.u32 %v788, %v786
        %791 = vrot.lane.b32.xlu0 %v764, 44
        %v792 = vpop.permute.xlu0 %791
        %793 = vrot.lane.b32.xlu0 %v767, 44
        %v794 = vpop.permute.xlu0 %793
        %795 = vrot.lane.b32.xlu0 %v770, 44
        %v796 = vpop.permute.xlu0 %795
        %797 = vrot.lane.b32.xlu0 %v773, 44
        %v798 = vpop.permute.xlu0 %797
        %799 = vrot.lane.b32.xlu0 %v779, 44
        %v800 = vpop.permute.xlu0 %799
        %801 = vrot.lane.b32.xlu0 %v787, 44
        %v802 = vpop.permute.xlu0 %801
        %803 = vrot.lane.b32.xlu0 %v790, 44
        %v804 = vpop.permute.xlu0 %803
        %v805 = vpack.c.b16 %v744, %v584
        %v806 = vrot.slane %v372, 5
        %v807 = vrot.slane %v373, 5
        %v808 = vsel %vm453, %v806, %v807
        %v809 = vrot.slane %v374, 5
        %v810 = vsel %vm453, %v807, %v809
        %v811 = vrot.slane %v375, 5
        %v812 = vsel %vm453, %v809, %v811
        %v813 = vrot.slane %v585, 5
        %v814 = vsel %vm453, %v811, %v813
        %v815 = vrot.slane %v805, 5
        %v816 = vsel %vm453, %v813, %v815
        %817 = vrot.lane.b32.xlu0 %v806, 48
        %v818 = vpop.permute.xlu0 %817
        %819 = vrot.lane.b32.xlu0 %v808, 48
        %v820 = vpop.permute.xlu0 %819
        %821 = vrot.lane.b32.xlu0 %v810, 48
        %v822 = vpop.permute.xlu0 %821
        %823 = vrot.lane.b32.xlu0 %v812, 48
        %v824 = vpop.permute.xlu0 %823
        %825 = vrot.lane.b32.xlu0 %v814, 48
        %v826 = vpop.permute.xlu0 %825
        %827 = vrot.lane.b32.xlu0 %v816, 48
        %v828 = vpop.permute.xlu0 %827
        %829 = vrot.lane.b32.xlu0 %v815, 48
        %v830 = vpop.permute.xlu0 %829
        %v832 = vunpack.c.l.b16 %v324
        %v833 = vpack.c.b16 %v832, %v832
        %v834 = vrot.slane %v398, 5
        %v835 = vrot.slane %v394, 6
        %v836 = vor.u32 %v834, %v835
        %v837 = vrot.slane %v406, 5
        %v838 = vrot.slane %v402, 6
        %v839 = vor.u32 %v837, %v838
        %v840 = vsel %vm482, %v836, %v839
        %v841 = vrot.slane %v414, 5
        %v842 = vrot.slane %v410, 6
        %v843 = vor.u32 %v841, %v842
        %v844 = vsel %vm482, %v839, %v843
        %v845 = vrot.slane %v422, 5
        %v846 = vrot.slane %v418, 6
        %v847 = vor.u32 %v845, %v846
        %v848 = vsel %vm482, %v843, %v847
        %v849 = vrot.slane %v635, 5
        %v850 = vrot.slane %v638, 6
        %v851 = vor.u32 %v849, %v850
        %v852 = vsel %vm482, %v847, %v851
        %v854 = vshrl.u32 %v805, 16
        %v856 = vrot.slane %v854, 5
        %v857 = vshll.u32 %v805, 16
        %v859 = vrot.slane %v857, 6
        %v860 = vor.u32 %v856, %v859
        %v861 = vsel %vm482, %v851, %v860
        %v863 = vshll.u32 %v833, 16
        %v865 = vrot.slane %v863, 6
        %v866 = vsel %vm482, %v860, %v865
        %867 = vrot.lane.b32.xlu0 %v836, 52
        %v868 = vpop.permute.xlu0 %867
        %869 = vrot.lane.b32.xlu0 %v840, 52
        %v870 = vpop.permute.xlu0 %869
        %871 = vrot.lane.b32.xlu0 %v844, 52
        %v872 = vpop.permute.xlu0 %871
        %873 = vrot.lane.b32.xlu0 %v848, 52
        %v874 = vpop.permute.xlu0 %873
        %875 = vrot.lane.b32.xlu0 %v852, 52
        %v876 = vpop.permute.xlu0 %875
        %877 = vrot.lane.b32.xlu0 %v861, 52
        %v878 = vpop.permute.xlu0 %877
        %879 = vrot.lane.b32.xlu0 %v866, 52
        %v880 = vpop.permute.xlu0 %879
        %v881 = vrot.slane %v805, 6
        %v882 = vsel %vm555, %v596, %v881
        %v883 = vrot.slane %v833, 6
        %v884 = vsel %vm555, %v881, %v883
        %885 = vrot.lane.b32.xlu0 %v588, 56
        %v886 = vpop.permute.xlu0 %885
        %887 = vrot.lane.b32.xlu0 %v591, 56
        %v888 = vpop.permute.xlu0 %887
        %889 = vrot.lane.b32.xlu0 %v593, 56
        %v890 = vpop.permute.xlu0 %889
        %891 = vrot.lane.b32.xlu0 %v595, 56
        %v892 = vpop.permute.xlu0 %891
        %893 = vrot.lane.b32.xlu0 %v597, 56
        %v894 = vpop.permute.xlu0 %893
        %895 = vrot.lane.b32.xlu0 %v882, 56
        %v896 = vpop.permute.xlu0 %895
        %897 = vrot.lane.b32.xlu0 %v884, 56
        %v898 = vpop.permute.xlu0 %897
        %v900 = vunpack.c.l.b16 %v325
        %v901 = vpack.c.b16 %v832, %v744
        %v902 = vpack.c.b16 %v900, %v900
        %v903 = vrot.slane %v745, 6
        %v904 = vsel %vm555, %v565, %v903
        %v905 = vrot.slane %v901, 6
        %v906 = vsel %vm555, %v903, %v905
        %v907 = vrot.slane %v902, 6
        %v908 = vsel %vm555, %v905, %v907
        %909 = vrot.lane.b32.xlu0 %v559, 60
        %v910 = vpop.permute.xlu0 %909
        %911 = vrot.lane.b32.xlu0 %v562, 60
        %v912 = vpop.permute.xlu0 %911
        %913 = vrot.lane.b32.xlu0 %v564, 60
        %v914 = vpop.permute.xlu0 %913
        %915 = vrot.lane.b32.xlu0 %v566, 60
        %v916 = vpop.permute.xlu0 %915
        %917 = vrot.lane.b32.xlu0 %v904, 60
        %v918 = vpop.permute.xlu0 %917
        %919 = vrot.lane.b32.xlu0 %v906, 60
        %v920 = vpop.permute.xlu0 %919
        %921 = vrot.lane.b32.xlu0 %v908, 60
        %v922 = vpop.permute.xlu0 %921
        %vm923 = vcmask 31744
        %v925 = vsel %vm923, %v370, %v434
        %v927 = vsel %vm923, %v371, %v436
        %v929 = vsel %vm923, %v372, %v438
        %v931 = vsel %vm923, %v373, %v440
        %v933 = vsel %vm923, %v374, %v442
        %v935 = vsel %vm923, %v375, %v444
        %v937 = vsel %vm923, %v376, %v446
        %vm938 = vcmask 64512
        %v940 = vsel %vm938, %v925, %v466
        %v942 = vsel %vm938, %v927, %v468
        %v944 = vsel %vm938, %v929, %v470
        %v946 = vsel %vm938, %v931, %v472
        %v948 = vsel %vm938, %v933, %v474
        %v950 = vsel %vm938, %v935, %v476
        %v952 = vsel %vm938, %v937, %v478
        %vm953 = vcmask 97280
        %v955 = vsel %vm953, %v940, %v542
        %v957 = vsel %vm953, %v942, %v544
        %v959 = vsel %vm953, %v944, %v546
        %v961 = vsel %vm953, %v946, %v548
        %v963 = vsel %vm953, %v948, %v550
        %v965 = vsel %vm953, %v950, %v552
        %v967 = vsel %vm953, %v952, %v554
        %vm968 = vcmask 130048
        %v970 = vsel %vm968, %v955, %v570
        %v972 = vsel %vm968, %v957, %v572
        %v974 = vsel %vm968, %v959, %v574
        %v976 = vsel %vm968, %v961, %v576
        %v978 = vsel %vm968, %v963, %v578
        %v980 = vsel %vm968, %v965, %v580
        %v982 = vsel %vm968, %v967, %v582
        %vm983 = vcmask 162816
        %v985 = vsel %vm983, %v970, %v601
        %v987 = vsel %vm983, %v972, %v603
        %v989 = vsel %vm983, %v974, %v605
        %v991 = vsel %vm983, %v976, %v607
        %v993 = vsel %vm983, %v978, %v609
        %v995 = vsel %vm983, %v980, %v611
        %v997 = vsel %vm983, %v982, %v613
        %vm998 = vcmask 195584
        %v1000 = vsel %vm998, %v985, %v653
        %v1002 = vsel %vm998, %v987, %v655
        %v1004 = vsel %vm998, %v989, %v657
        %v1006 = vsel %vm998, %v991, %v659
        %v1008 = vsel %vm998, %v993, %v661
        %v1010 = vsel %vm998, %v995, %v663
        %v1012 = vsel %vm998, %v997, %v665
        %vm1013 = vcmask 228352
        %v1015 = vsel %vm1013, %v1000, %v681
        %v1017 = vsel %vm1013, %v1002, %v683
        %v1019 = vsel %vm1013, %v1004, %v685
        %v1021 = vsel %vm1013, %v1006, %v687
        %v1023 = vsel %vm1013, %v1008, %v689
        %v1025 = vsel %vm1013, %v1010, %v691
        %v1027 = vsel %vm1013, %v1012, %v693
        %vm1028 = vcmask 261120
        %v1030 = vsel %vm1028, %v1015, %v716
        %v1032 = vsel %vm1028, %v1017, %v718
        %v1034 = vsel %vm1028, %v1019, %v720
        %v1036 = vsel %vm1028, %v1021, %v722
        %v1038 = vsel %vm1028, %v1023, %v724
        %v1040 = vsel %vm1028, %v1025, %v726
        %v1042 = vsel %vm1028, %v1027, %v728
        %vm1043 = vcmask 293888
        %v1045 = vsel %vm1043, %v1030, %v730
        %v1047 = vsel %vm1043, %v1032, %v732
        %v1049 = vsel %vm1043, %v1034, %v734
        %v1051 = vsel %vm1043, %v1036, %v736
        %v1053 = vsel %vm1043, %v1038, %v738
        %v1055 = vsel %vm1043, %v1040, %v740
        %v1057 = vsel %vm1043, %v1042, %v742
        %vm1058 = vcmask 326656
        %v1060 = vsel %vm1058, %v1045, %v748
        %v1062 = vsel %vm1058, %v1047, %v750
        %v1064 = vsel %vm1058, %v1049, %v752
        %v1066 = vsel %vm1058, %v1051, %v754
        %v1068 = vsel %vm1058, %v1053, %v756
        %v1070 = vsel %vm1058, %v1055, %v758
        %v1072 = vsel %vm1058, %v1057, %v760
        %vm1073 = vcmask 359424
        %v1075 = vsel %vm1073, %v1060, %v792
        %v1077 = vsel %vm1073, %v1062, %v794
        %v1079 = vsel %vm1073, %v1064, %v796
        %v1081 = vsel %vm1073, %v1066, %v798
        %v1083 = vsel %vm1073, %v1068, %v800
        %v1085 = vsel %vm1073, %v1070, %v802
        %v1087 = vsel %vm1073, %v1072, %v804
        %vm1088 = vcmask 392192
        %v1090 = vsel %vm1088, %v1075, %v818
        %v1092 = vsel %vm1088, %v1077, %v820
        %v1094 = vsel %vm1088, %v1079, %v822
        %v1096 = vsel %vm1088, %v1081, %v824
        %v1098 = vsel %vm1088, %v1083, %v826
        %v1100 = vsel %vm1088, %v1085, %v828
        %v1102 = vsel %vm1088, %v1087, %v830
        %vm1103 = vcmask 424960
        %v1105 = vsel %vm1103, %v1090, %v868
        %v1107 = vsel %vm1103, %v1092, %v870
        %v1109 = vsel %vm1103, %v1094, %v872
        %v1111 = vsel %vm1103, %v1096, %v874
        %v1113 = vsel %vm1103, %v1098, %v876
        %v1115 = vsel %vm1103, %v1100, %v878
        %v1117 = vsel %vm1103, %v1102, %v880
        %vm1118 = vcmask 457728
        %v1120 = vsel %vm1118, %v1105, %v886
        %v1122 = vsel %vm1118, %v1107, %v888
        %v1124 = vsel %vm1118, %v1109, %v890
        %v1126 = vsel %vm1118, %v1111, %v892
        %v1128 = vsel %vm1118, %v1113, %v894
        %v1130 = vsel %vm1118, %v1115, %v896
        %v1132 = vsel %vm1118, %v1117, %v898
        %vm1133 = vcmask 490496
        %v1135 = vsel %vm1133, %v1120, %v910
        %v1137 = vsel %vm1133, %v1122, %v912
        %v1139 = vsel %vm1133, %v1124, %v914
        %v1141 = vsel %vm1133, %v1126, %v916
        %v1143 = vsel %vm1133, %v1128, %v918
        %v1145 = vsel %vm1133, %v1130, %v920
        %v1147 = vsel %vm1133, %v1132, %v922
        %v1149 = vshll.u32 %v901, 16
        %v1151 = vrot.slane %v1149, 1
        %v1152 = vsel %vm377, %v782, %v1151
        %v1153 = vshrl.u32 %v901, 16
        %v1155 = vor.u32 %v1153, %v1151
        %v1157 = vshll.u32 %v902, 16
        %v1159 = vrot.slane %v1157, 1
        %v1160 = vsel %vm377, %v1155, %v1159
        %v1161 = vshrl.u32 %v902, 16
        %v1163 = vor.u32 %v1161, %v1159
        %1164 = vrot.lane.b32.xlu0 %v767, 4
        %v1165 = vpop.permute.xlu0 %1164
        %1166 = vrot.lane.b32.xlu0 %v770, 4
        %v1167 = vpop.permute.xlu0 %1166
        %1168 = vrot.lane.b32.xlu0 %v773, 4
        %v1169 = vpop.permute.xlu0 %1168
        %1170 = vrot.lane.b32.xlu0 %v779, 4
        %v1171 = vpop.permute.xlu0 %1170
        %1172 = vrot.lane.b32.xlu0 %v1152, 4
        %v1173 = vpop.permute.xlu0 %1172
        %1174 = vrot.lane.b32.xlu0 %v1160, 4
        %v1175 = vpop.permute.xlu0 %1174
        %1176 = vrot.lane.b32.xlu0 %v1163, 4
        %v1177 = vpop.permute.xlu0 %1176
        %vm1178 = vcmask 1046528
        %v1179 = vrot.slane %v449, 1
        %v1180 = vrot.slane %v450, 1
        %v1181 = vsel %vm1178, %v1179, %v1180
        %v1182 = vrot.slane %v451, 1
        %v1183 = vsel %vm1178, %v1180, %v1182
        %v1184 = vrot.slane %v452, 1
        %v1185 = vsel %vm1178, %v1182, %v1184
        %v1186 = vrot.slane %v745, 1
        %v1187 = vsel %vm1178, %v1184, %v1186
        %v1188 = vrot.slane %v901, 1
        %v1189 = vsel %vm1178, %v1186, %v1188
        %v1190 = vrot.slane %v902, 1
        %v1191 = vsel %vm1178, %v1188, %v1190
        %1192 = vrot.lane.b32.xlu0 %v1181, 8
        %v1193 = vpop.permute.xlu0 %1192
        %1194 = vrot.lane.b32.xlu0 %v1183, 8
        %v1195 = vpop.permute.xlu0 %1194
        %1196 = vrot.lane.b32.xlu0 %v1185, 8
        %v1197 = vpop.permute.xlu0 %1196
        %1198 = vrot.lane.b32.xlu0 %v1187, 8
        %v1199 = vpop.permute.xlu0 %1198
        %1200 = vrot.lane.b32.xlu0 %v1189, 8
        %v1201 = vpop.permute.xlu0 %1200
        %1202 = vrot.lane.b32.xlu0 %v1191, 8
        %v1203 = vpop.permute.xlu0 %1202
        %1204 = vrot.lane.b32.xlu0 %v1190, 8
        %v1205 = vpop.permute.xlu0 %1204
        %vm1206 = vsmask.f32 6400
        %v1207 = vrot.slane %v501, 1
        %v1208 = vrot.slane %v504, 2
        %v1209 = vor.u32 %v1207, %v1208
        %v1210 = vrot.slane %v510, 1
        %v1211 = vrot.slane %v513, 2
        %v1212 = vor.u32 %v1210, %v1211
        %v1213 = vsel %vm1206, %v1209, %v1212
        %v1214 = vrot.slane %v519, 1
        %v1215 = vrot.slane %v522, 2
        %v1216 = vor.u32 %v1214, %v1215
        %v1217 = vsel %vm1206, %v1212, %v1216
        %v1218 = vrot.slane %v528, 1
        %v1219 = vrot.slane %v531, 2
        %v1220 = vor.u32 %v1218, %v1219
        %v1221 = vsel %vm1206, %v1216, %v1220
        %v1222 = vrot.slane %v780, 1
        %v1223 = vrot.slane %v776, 2
        %v1224 = vor.u32 %v1222, %v1223
        %v1225 = vsel %vm1206, %v1220, %v1224
        %v1226 = vrot.slane %v1153, 1
        %v1227 = vrot.slane %v1149, 2
        %v1228 = vor.u32 %v1226, %v1227
        %v1229 = vsel %vm1206, %v1224, %v1228
        %v1230 = vrot.slane %v1161, 1
        %v1231 = vrot.slane %v1157, 2
        %v1232 = vor.u32 %v1230, %v1231
        %v1233 = vsel %vm1206, %v1228, %v1232
        %1234 = vrot.lane.b32.xlu0 %v1213, 12
        %v1235 = vpop.permute.xlu0 %1234
        %1236 = vrot.lane.b32.xlu0 %v1217, 12
        %v1237 = vpop.permute.xlu0 %1236
        %1238 = vrot.lane.b32.xlu0 %v1221, 12
        %v1239 = vpop.permute.xlu0 %1238
        %1240 = vrot.lane.b32.xlu0 %v1225, 12
        %v1241 = vpop.permute.xlu0 %1240
        %1242 = vrot.lane.b32.xlu0 %v1229, 12
        %v1243 = vpop.permute.xlu0 %1242
        %1244 = vrot.lane.b32.xlu0 %v1233, 12
        %v1245 = vpop.permute.xlu0 %1244
        %1246 = vrot.lane.b32.xlu0 %v1232, 12
        %v1247 = vpop.permute.xlu0 %1246
        %v1249 = vunpack.c.l.b16 %v326
        %v1250 = vpack.c.b16 %v900, %v832
        %v1251 = vpack.c.b16 %v1249, %v1249
        %v1252 = vrot.slane %v406, 1
        %v1253 = vrot.slane %v402, 2
        %v1254 = vor.u32 %v1252, %v1253
        %v1255 = vrot.slane %v414, 1
        %v1256 = vrot.slane %v410, 2
        %v1257 = vor.u32 %v1255, %v1256
        %v1258 = vsel %vm1206, %v1254, %v1257
        %v1259 = vrot.slane %v422, 1
        %v1260 = vrot.slane %v418, 2
        %v1261 = vor.u32 %v1259, %v1260
        %v1262 = vsel %vm1206, %v1257, %v1261
        %v1263 = vrot.slane %v635, 1
        %v1264 = vrot.slane %v638, 2
        %v1265 = vor.u32 %v1263, %v1264
        %v1266 = vsel %vm1206, %v1261, %v1265
        %v1267 = vrot.slane %v854, 1
        %v1268 = vrot.slane %v857, 2
        %v1269 = vor.u32 %v1267, %v1268
        %v1270 = vsel %vm1206, %v1265, %v1269
        %v1272 = vshrl.u32 %v1250, 16
        %v1274 = vrot.slane %v1272, 1
        %v1275 = vshll.u32 %v1250, 16
        %v1277 = vrot.slane %v1275, 2
        %v1278 = vor.u32 %v1274, %v1277
        %v1279 = vsel %vm1206, %v1269, %v1278
        %v1281 = vshrl.u32 %v1251, 16
        %v1283 = vrot.slane %v1281, 1
        %v1284 = vshll.u32 %v1251, 16
        %v1286 = vrot.slane %v1284, 2
        %v1287 = vor.u32 %v1283, %v1286
        %v1288 = vsel %vm1206, %v1278, %v1287
        %1289 = vrot.lane.b32.xlu0 %v1258, 16
        %v1290 = vpop.permute.xlu0 %1289
        %1291 = vrot.lane.b32.xlu0 %v1262, 16
        %v1292 = vpop.permute.xlu0 %1291
        %1293 = vrot.lane.b32.xlu0 %v1266, 16
        %v1294 = vpop.permute.xlu0 %1293
        %1295 = vrot.lane.b32.xlu0 %v1270, 16
        %v1296 = vpop.permute.xlu0 %1295
        %1297 = vrot.lane.b32.xlu0 %v1279, 16
        %v1298 = vpop.permute.xlu0 %1297
        %1299 = vrot.lane.b32.xlu0 %v1288, 16
        %v1300 = vpop.permute.xlu0 %1299
        %1301 = vrot.lane.b32.xlu0 %v1287, 16
        %v1302 = vpop.permute.xlu0 %1301
        %vm1303 = vcmask 1045504
        %v1304 = vrot.slane %v373, 2
        %v1305 = vrot.slane %v374, 2
        %v1306 = vsel %vm1303, %v1304, %v1305
        %v1307 = vrot.slane %v375, 2
        %v1308 = vsel %vm1303, %v1305, %v1307
        %v1309 = vrot.slane %v585, 2
        %v1310 = vsel %vm1303, %v1307, %v1309
        %v1311 = vrot.slane %v805, 2
        %v1312 = vsel %vm1303, %v1309, %v1311
        %v1313 = vrot.slane %v1250, 2
        %v1314 = vsel %vm1303, %v1311, %v1313
        %v1315 = vrot.slane %v1251, 2
        %v1316 = vsel %vm1303, %v1313, %v1315
        %1317 = vrot.lane.b32.xlu0 %v1306, 20
        %v1318 = vpop.permute.xlu0 %1317
        %1319 = vrot.lane.b32.xlu0 %v1308, 20
        %v1320 = vpop.permute.xlu0 %1319
        %1321 = vrot.lane.b32.xlu0 %v1310, 20
        %v1322 = vpop.permute.xlu0 %1321
        %1323 = vrot.lane.b32.xlu0 %v1312, 20
        %v1324 = vpop.permute.xlu0 %1323
        %1325 = vrot.lane.b32.xlu0 %v1314, 20
        %v1326 = vpop.permute.xlu0 %1325
        %1327 = vrot.lane.b32.xlu0 %v1316, 20
        %v1328 = vpop.permute.xlu0 %1327
        %1329 = vrot.lane.b32.xlu0 %v1315, 20
        %v1330 = vpop.permute.xlu0 %1329
        %v1331 = vpack.c.b16 %v1249, %v900
        %v1332 = vrot.slane %v510, 6
        %v1333 = vrot.slane %v513, 7
        %v1334 = vor.u32 %v1332, %v1333
        %v1335 = vrot.slane %v519, 6
        %v1336 = vrot.slane %v522, 7
        %v1337 = vor.u32 %v1335, %v1336
        %v1338 = vsel %vm614, %v1334, %v1337
        %v1339 = vrot.slane %v528, 6
        %v1340 = vrot.slane %v531, 7
        %v1341 = vor.u32 %v1339, %v1340
        %v1342 = vsel %vm614, %v1337, %v1341
        %v1343 = vrot.slane %v780, 6
        %v1344 = vrot.slane %v776, 7
        %v1345 = vor.u32 %v1343, %v1344
        %v1346 = vsel %vm614, %v1341, %v1345
        %v1347 = vrot.slane %v1153, 6
        %v1348 = vrot.slane %v1149, 7
        %v1349 = vor.u32 %v1347, %v1348
        %v1350 = vsel %vm614, %v1345, %v1349
        %v1352 = vshrl.u32 %v1331, 16
        %v1354 = vrot.slane %v1352, 6
        %v1355 = vshll.u32 %v1331, 16
        %v1357 = vrot.slane %v1355, 7
        %v1358 = vor.u32 %v1354, %v1357
        %v1359 = vsel %vm614, %v1349, %v1358
        %1360 = vrot.lane.b32.xlu0 %v1334, 24
        %v1361 = vpop.permute.xlu0 %1360
        %1362 = vrot.lane.b32.xlu0 %v1338, 24
        %v1363 = vpop.permute.xlu0 %1362
        %1364 = vrot.lane.b32.xlu0 %v1342, 24
        %v1365 = vpop.permute.xlu0 %1364
        %1366 = vrot.lane.b32.xlu0 %v1346, 24
        %v1367 = vpop.permute.xlu0 %1366
        %1368 = vrot.lane.b32.xlu0 %v1350, 24
        %v1369 = vpop.permute.xlu0 %1368
        %1370 = vrot.lane.b32.xlu0 %v1359, 24
        %v1371 = vpop.permute.xlu0 %1370
        %1372 = vrot.lane.b32.xlu0 %v1358, 24
        %v1373 = vpop.permute.xlu0 %1372
        %v1375 = vunpack.c.l.b16 %v327
        %v1376 = vpack.c.b16 %v1375, %v1375
        %v1377 = vrot.slane %v450, 7
        %v1378 = vrot.slane %v451, 7
        %v1379 = vsel %vm666, %v1377, %v1378
        %v1380 = vrot.slane %v452, 7
        %v1381 = vsel %vm666, %v1378, %v1380
        %v1382 = vrot.slane %v745, 7
        %v1383 = vsel %vm666, %v1380, %v1382
        %v1384 = vrot.slane %v901, 7
        %v1385 = vsel %vm666, %v1382, %v1384
        %v1386 = vrot.slane %v1331, 7
        %v1387 = vsel %vm666, %v1384, %v1386
        %v1388 = vrot.slane %v1376, 7
        %v1389 = vsel %vm666, %v1386, %v1388
        %1390 = vrot.lane.b32.xlu0 %v1377, 28
        %v1391 = vpop.permute.xlu0 %1390
        %1392 = vrot.lane.b32.xlu0 %v1379, 28
        %v1393 = vpop.permute.xlu0 %1392
        %1394 = vrot.lane.b32.xlu0 %v1381, 28
        %v1395 = vpop.permute.xlu0 %1394
        %1396 = vrot.lane.b32.xlu0 %v1383, 28
        %v1397 = vpop.permute.xlu0 %1396
        %1398 = vrot.lane.b32.xlu0 %v1385, 28
        %v1399 = vpop.permute.xlu0 %1398
        %1400 = vrot.lane.b32.xlu0 %v1387, 28
        %v1401 = vpop.permute.xlu0 %1400
        %1402 = vrot.lane.b32.xlu0 %v1389, 28
        %v1403 = vpop.permute.xlu0 %1402
        %v1404 = vrot.slane %v510, 7
        %v1405 = vor.u32 %v1404, %v513
        %v1406 = vrot.slane %v519, 7
        %v1407 = vor.u32 %v1406, %v522
        %v1408 = vsel %vm694, %v1404, %v1407
        %v1409 = vrot.slane %v528, 7
        %v1410 = vor.u32 %v1409, %v531
        %v1411 = vsel %vm694, %v1406, %v1410
        %v1412 = vrot.slane %v780, 7
        %v1413 = vor.u32 %v1412, %v776
        %v1414 = vsel %vm694, %v1409, %v1413
        %v1415 = vrot.slane %v1153, 7
        %v1416 = vor.u32 %v1415, %v1149
        %v1417 = vsel %vm694, %v1412, %v1416
        %v1418 = vrot.slane %v1352, 7
        %v1419 = vor.u32 %v1418, %v1355
        %v1420 = vsel %vm694, %v1415, %v1419
        %v1422 = vshrl.u32 %v1376, 16
        %v1424 = vrot.slane %v1422, 7
        %v1425 = vshll.u32 %v1376, 16
        %v1427 = vor.u32 %v1424, %v1425
        %v1428 = vsel %vm694, %v1418, %v1427
        %1429 = vrot.lane.b32.xlu0 %v1405, 32
        %v1430 = vpop.permute.xlu0 %1429
        %1431 = vrot.lane.b32.xlu0 %v1408, 32
        %v1432 = vpop.permute.xlu0 %1431
        %1433 = vrot.lane.b32.xlu0 %v1411, 32
        %v1434 = vpop.permute.xlu0 %1433
        %1435 = vrot.lane.b32.xlu0 %v1414, 32
        %v1436 = vpop.permute.xlu0 %1435
        %1437 = vrot.lane.b32.xlu0 %v1417, 32
        %v1438 = vpop.permute.xlu0 %1437
        %1439 = vrot.lane.b32.xlu0 %v1420, 32
        %v1440 = vpop.permute.xlu0 %1439
        %1441 = vrot.lane.b32.xlu0 %v1428, 32
        %v1442 = vpop.permute.xlu0 %1441
        %v1444 = vsel %vm923, %v449, %v1165
        %v1446 = vsel %vm923, %v450, %v1167
        %v1448 = vsel %vm923, %v451, %v1169
        %v1450 = vsel %vm923, %v452, %v1171
        %v1452 = vsel %vm923, %v745, %v1173
        %v1454 = vsel %vm923, %v901, %v1175
        %v1456 = vsel %vm923, %v902, %v1177
        %v1458 = vsel %vm938, %v1444, %v1193
        %v1460 = vsel %vm938, %v1446, %v1195
        %v1462 = vsel %vm938, %v1448, %v1197
        %v1464 = vsel %vm938, %v1450, %v1199
        %v1466 = vsel %vm938, %v1452, %v1201
        %v1468 = vsel %vm938, %v1454, %v1203
        %v1470 = vsel %vm938, %v1456, %v1205
        %v1472 = vsel %vm953, %v1458, %v1235
        %v1474 = vsel %vm953, %v1460, %v1237
        %v1476 = vsel %vm953, %v1462, %v1239
        %v1478 = vsel %vm953, %v1464, %v1241
        %v1480 = vsel %vm953, %v1466, %v1243
        %v1482 = vsel %vm953, %v1468, %v1245
        %v1484 = vsel %vm953, %v1470, %v1247
        %v1486 = vsel %vm968, %v1472, %v1290
        %v1488 = vsel %vm968, %v1474, %v1292
        %v1490 = vsel %vm968, %v1476, %v1294
        %v1492 = vsel %vm968, %v1478, %v1296
        %v1494 = vsel %vm968, %v1480, %v1298
        %v1496 = vsel %vm968, %v1482, %v1300
        %v1498 = vsel %vm968, %v1484, %v1302
        %v1500 = vsel %vm983, %v1486, %v1318
        %v1502 = vsel %vm983, %v1488, %v1320
        %v1504 = vsel %vm983, %v1490, %v1322
        %v1506 = vsel %vm983, %v1492, %v1324
        %v1508 = vsel %vm983, %v1494, %v1326
        %v1510 = vsel %vm983, %v1496, %v1328
        %v1512 = vsel %vm983, %v1498, %v1330
        %v1514 = vsel %vm998, %v1500, %v1361
        %v1516 = vsel %vm998, %v1502, %v1363
        %v1518 = vsel %vm998, %v1504, %v1365
        %v1520 = vsel %vm998, %v1506, %v1367
        %v1522 = vsel %vm998, %v1508, %v1369
        %v1524 = vsel %vm998, %v1510, %v1371
        %v1526 = vsel %vm998, %v1512, %v1373
        %v1528 = vsel %vm1013, %v1514, %v1391
        %v1530 = vsel %vm1013, %v1516, %v1393
        %v1532 = vsel %vm1013, %v1518, %v1395
        %v1534 = vsel %vm1013, %v1520, %v1397
        %v1536 = vsel %vm1013, %v1522, %v1399
        %v1538 = vsel %vm1013, %v1524, %v1401
        %v1540 = vsel %vm1013, %v1526, %v1403
        %v1542 = vsel %vm1028, %v1528, %v1430
        %v1544 = vsel %vm1028, %v1530, %v1432
        %v1546 = vsel %vm1028, %v1532, %v1434
        %v1548 = vsel %vm1028, %v1534, %v1436
        %v1550 = vsel %vm1028, %v1536, %v1438
        %v1552 = vsel %vm1028, %v1538, %v1440
        %v1554 = vsel %vm1028, %v1540, %v1442
        %v1555 = vshrl.u32 %v1542, 16
        %v1557 = vrot.slane %v1555, 6
        %v1558 = vshll.u32 %v1542, 16
        %v1560 = vrot.slane %v1558, 7
        %v1561 = vor.u32 %v1557, %v1560
        %v1562 = vshrl.u32 %v1544, 16
        %v1564 = vrot.slane %v1562, 6
        %v1565 = vshll.u32 %v1544, 16
        %v1567 = vrot.slane %v1565, 7
        %v1568 = vor.u32 %v1564, %v1567
        %v1569 = vsel %vm614, %v1561, %v1568
        %v1570 = vshrl.u32 %v1546, 16
        %v1572 = vrot.slane %v1570, 6
        %v1573 = vshll.u32 %v1546, 16
        %v1575 = vrot.slane %v1573, 7
        %v1576 = vor.u32 %v1572, %v1575
        %v1577 = vsel %vm614, %v1568, %v1576
        %v1578 = vshrl.u32 %v1548, 16
        %v1580 = vrot.slane %v1578, 6
        %v1581 = vshll.u32 %v1548, 16
        %v1583 = vrot.slane %v1581, 7
        %v1584 = vor.u32 %v1580, %v1583
        %v1585 = vsel %vm614, %v1576, %v1584
        %v1586 = vshrl.u32 %v1550, 16
        %v1588 = vrot.slane %v1586, 6
        %v1589 = vshll.u32 %v1550, 16
        %v1591 = vrot.slane %v1589, 7
        %v1592 = vor.u32 %v1588, %v1591
        %v1593 = vsel %vm614, %v1584, %v1592
        %v1594 = vshrl.u32 %v1552, 16
        %v1596 = vrot.slane %v1594, 6
        %v1597 = vshll.u32 %v1552, 16
        %v1599 = vrot.slane %v1597, 7
        %v1600 = vor.u32 %v1596, %v1599
        %v1601 = vsel %vm614, %v1592, %v1600
        %v1602 = vshrl.u32 %v1554, 16
        %v1604 = vrot.slane %v1602, 6
        %v1605 = vshll.u32 %v1554, 16
        %v1607 = vrot.slane %v1605, 7
        %v1608 = vor.u32 %v1604, %v1607
        %v1609 = vsel %vm614, %v1600, %v1608
        %1610 = vrot.lane.b32.xlu0 %v1561, 64
        %v1611 = vpop.permute.xlu0 %1610
        %1612 = vrot.lane.b32.xlu0 %v1569, 64
        %v1613 = vpop.permute.xlu0 %1612
        %1614 = vrot.lane.b32.xlu0 %v1577, 64
        %v1615 = vpop.permute.xlu0 %1614
        %1616 = vrot.lane.b32.xlu0 %v1585, 64
        %v1617 = vpop.permute.xlu0 %1616
        %1618 = vrot.lane.b32.xlu0 %v1593, 64
        %v1619 = vpop.permute.xlu0 %1618
        %1620 = vrot.lane.b32.xlu0 %v1601, 64
        %v1621 = vpop.permute.xlu0 %1620
        %1622 = vrot.lane.b32.xlu0 %v1609, 64
        %v1623 = vpop.permute.xlu0 %1622
        %vm1624 = vcmask 523264
        %v1626 = vsel %vm1624, %v1135, %v1611
        %v1628 = vsel %vm1624, %v1137, %v1613
        %v1630 = vsel %vm1624, %v1139, %v1615
        %v1632 = vsel %vm1624, %v1141, %v1617
        %v1634 = vsel %vm1624, %v1143, %v1619
        %v1636 = vsel %vm1624, %v1145, %v1621
        %v1638 = vsel %vm1624, %v1147, %v1623
        %vm1646 = vcmask 1044480
        %v1647 = vrot.slane %v1626, 3
        %v1648 = vrot.slane %v1628, 3
        %v1649 = vsel %vm1646, %v1647, %v1648
        %v1650 = vrot.slane %v1630, 3
        %v1651 = vsel %vm1646, %v1648, %v1650
        %v1652 = vrot.slane %v1632, 3
        %v1653 = vsel %vm1646, %v1650, %v1652
        %v1654 = vrot.slane %v1634, 3
        %v1655 = vsel %vm1646, %v1652, %v1654
        %v1656 = vrot.slane %v1636, 3
        %v1657 = vsel %vm1646, %v1654, %v1656
        %v1658 = vrot.slane %v1638, 3
        %v1659 = vsel %vm1646, %v1656, %v1658
        %v1673 = vunpack.c.l.b16 %v331
        %v1674 = vunpack.c.l.b16 %v332
        %v1675 = vunpack.c.l.b16 %v333
        %v1676 = vunpack.c.l.b16 %v334
        %v1677 = vunpack.c.l.b16 %v335
        %v1678 = vunpack.c.l.b16 %v336
        %v1679 = vunpack.c.l.b16 %v337
        %v1680 = vunpack.c.l.b16 %v338
        %v1681 = vunpack.c.l.b16 %v339
        %v1682 = vunpack.c.l.b16 %v340
        %v1683 = vunpack.c.l.b16 %v341
        %v1684 = vunpack.c.l.b16 %v342
        %v1685 = vunpack.c.l.b16 %v343
        %v1686 = vpack.c.b16 %v1674, %v1673
        %v1687 = vpack.c.b16 %v1676, %v1675
        %v1688 = vpack.c.b16 %v1678, %v1677
        %v1689 = vpack.c.b16 %v1680, %v1679
        %v1690 = vpack.c.b16 %v1682, %v1681
        %v1691 = vpack.c.b16 %v1684, %v1683
        %v1692 = vpack.c.b16 %v1685, %v1685
        %vm1699 = vcmask 818176
        %v1701 = vsel %vm1699, %v1649, 0
        %v1704 = vsel %vm1699, %v1651, 0
        %v1707 = vsel %vm1699, %v1653, 0
        %v1710 = vsel %vm1699, %v1655, 0
        %v1713 = vsel %vm1699, %v1657, 0
        %v1716 = vsel %vm1699, %v1659, 0
        %vm1718 = vcmask 1041408
        %v1720 = vsel %vm1718, %v1692, 0
        %1722 = vmatpush.bf16.msra.mxu0 0
        %1723 = vmatpush.bf16.msra.mxu0 %v1720
        %1724 = vmatpush.bf16.msra.mxu0 %v1691
        %1725 = vmatpush.bf16.msra.mxu0 %v1690
        %1726 = vmatpush.bf16.msra.mxu0 %v1689
        %1727 = vmatpush.bf16.msra.mxu0 %v1688
        %1728 = vmatpush.bf16.msra.mxu0 %v1687
        %1729 = vmatpush.bf16.msra.mxu0 %v1686
        %1730 = vmatmul.bf16.gmra.mxu0 %v1701
        %v1731 = vpop.f32.mrf.mxu0
        %v1732 = vadd.f32 0.0, %v1731
        %v1733 = vpop.f32.mrf.mxu0
        %v1734 = vadd.f32 0.0, %v1733
        %1735 = vmatmul.bf16.gmra.mxu0 %v1704
        %v1736 = vpop.f32.mrf.mxu0
        %v1737 = vadd.f32 0.0, %v1736
        %v1738 = vpop.f32.mrf.mxu0
        %v1739 = vadd.f32 0.0, %v1738
        %1740 = vmatmul.bf16.gmra.mxu0 %v1707
        %v1741 = vpop.f32.mrf.mxu0
        %v1742 = vadd.f32 0.0, %v1741
        %v1743 = vpop.f32.mrf.mxu0
        %v1744 = vadd.f32 0.0, %v1743
        %1745 = vmatmul.bf16.gmra.mxu0 %v1710
        %v1746 = vpop.f32.mrf.mxu0
        %v1747 = vadd.f32 0.0, %v1746
        %v1748 = vpop.f32.mrf.mxu0
        %v1749 = vadd.f32 0.0, %v1748
        %1750 = vmatmul.bf16.gmra.mxu0 %v1713
        %v1751 = vpop.f32.mrf.mxu0
        %v1752 = vadd.f32 0.0, %v1751
        %v1753 = vpop.f32.mrf.mxu0
        %v1754 = vadd.f32 0.0, %v1753
        %1755 = vmatmul.bf16.gmra.mxu0 %v1716
        %v1756 = vpop.f32.mrf.mxu0
        %v1757 = vadd.f32 0.0, %v1756
        %v1758 = vpop.f32.mrf.mxu0
        %v1759 = vadd.f32 0.0, %v1758
        %1760 = vdwg.mxu0
        %v1761 = vld [vmem:[#allocation2] sm:$0xff]
        %v1762 = vld [vmem:[#allocation2 + $0x8] sm:$0xff]
        %v1763 = vld [vmem:[#allocation2 + $0x10] sm:$0xff]
        %v1764 = vld [vmem:[#allocation2 + $0x18] sm:$0xff]
        %v1765 = vld [vmem:[#allocation2 + $0x20] sm:$0xff]
        %v1766 = vld [vmem:[#allocation2 + $0x28] sm:$0xff]
        %v1767 = vld [vmem:[#allocation2 + $0x30] sm:$0xff]
        %v1768 = vld [vmem:[#allocation2 + $0x38] sm:$0xff]
        %v1769 = vld [vmem:[#allocation2 + $0x40] sm:$0xff]
        %v1770 = vld [vmem:[#allocation2 + $0x48] sm:$0xff]
        %v1771 = vld [vmem:[#allocation2 + $0x50] sm:$0xff]
        %v1772 = vld [vmem:[#allocation2 + $0x58] sm:$0xff]
        %v1773 = vadd.f32 %v1761, %v1732
        %v1774 = vadd.f32 %v1762, %v1734
        %v1775 = vadd.f32 %v1763, %v1737
        %v1776 = vadd.f32 %v1764, %v1739
        %v1777 = vadd.f32 %v1765, %v1742
        %v1778 = vadd.f32 %v1766, %v1744
        %v1779 = vadd.f32 %v1767, %v1747
        %v1780 = vadd.f32 %v1768, %v1749
        %v1781 = vadd.f32 %v1769, %v1752
        %v1782 = vadd.f32 %v1770, %v1754
        %v1783 = vadd.f32 %v1771, %v1757
        %v1784 = vadd.f32 %v1772, %v1759
        %1785 = vst [vmem:[#allocation2] sm:$0xff] %v1773
        %1786 = vst [vmem:[#allocation2 + $0x8] sm:$0xff] %v1774
        %1787 = vst [vmem:[#allocation2 + $0x10] sm:$0xff] %v1775
        %1788 = vst [vmem:[#allocation2 + $0x18] sm:$0xff] %v1776
        %1789 = vst [vmem:[#allocation2 + $0x20] sm:$0xff] %v1777
        %1790 = vst [vmem:[#allocation2 + $0x28] sm:$0xff] %v1778
        %1791 = vst [vmem:[#allocation2 + $0x30] sm:$0xff] %v1779
        %1792 = vst [vmem:[#allocation2 + $0x38] sm:$0xff] %v1780
        %1793 = vst [vmem:[#allocation2 + $0x40] sm:$0xff] %v1781
        %1794 = vst [vmem:[#allocation2 + $0x48] sm:$0xff] %v1782
        %1795 = vst [vmem:[#allocation2 + $0x50] sm:$0xff] %v1783
        %1796 = vst [vmem:[#allocation2 + $0x58] sm:$0xff] %v1784
      $region44: #{upsample_forward.7} parent=35 // pred_fallthru
        _
      %p1797 = scmp.eq.s32.totalorder %s22, 4
      // Predicated region
      $region45: #{upsample_forward.7} parent=35 // pred_check
        %p1798 = pneg %p1797
      $region46: #{upsample_forward.7} parent=35 // pred_check_branch
        %1800 = sbr.rel (%p1798) target = $region48
      $region47: #{upsample_forward.7} parent=35 // pred_region
        %v1801 = vld [vmem:[#allocation2] sm:$0xff]
        %v1802 = vld [vmem:[#allocation2 + $0x8] sm:$0xff]
        %v1803 = vld [vmem:[#allocation2 + $0x10] sm:$0xff]
        %v1804 = vld [vmem:[#allocation2 + $0x18] sm:$0xff]
        %v1805 = vld [vmem:[#allocation2 + $0x20] sm:$0xff]
        %v1806 = vld [vmem:[#allocation2 + $0x28] sm:$0xff]
        %v1807 = vld [vmem:[#allocation2 + $0x30] sm:$0xff]
        %v1808 = vld [vmem:[#allocation2 + $0x38] sm:$0xff]
        %v1809 = vld [vmem:[#allocation2 + $0x40] sm:$0xff]
        %v1810 = vld [vmem:[#allocation2 + $0x48] sm:$0xff]
        %v1811 = vld [vmem:[#allocation2 + $0x50] sm:$0xff]
        %v1812 = vld [vmem:[#allocation2 + $0x58] sm:$0xff]
        %v1813 = vld [vmem:[%s2] sm:$0x1]
        %v1815 = vperm.slane %v1813, 0
        %v1817 = vadd.f32 %v1801, %v1815
        %v1818 = vadd.f32 %v1802, %v1815
        %v1819 = vadd.f32 %v1803, %v1815
        %v1820 = vadd.f32 %v1804, %v1815
        %v1821 = vadd.f32 %v1805, %v1815
        %v1822 = vadd.f32 %v1806, %v1815
        %v1823 = vadd.f32 %v1807, %v1815
        %v1824 = vadd.f32 %v1808, %v1815
        %v1825 = vadd.f32 %v1809, %v1815
        %v1826 = vadd.f32 %v1810, %v1815
        %v1827 = vadd.f32 %v1811, %v1815
        %v1828 = vadd.f32 %v1812, %v1815
        %v1829 = vmax.f32 %v1817, 0.0
        %v1830 = vmax.f32 %v1818, 0.0
        %v1831 = vmax.f32 %v1819, 0.0
        %v1832 = vmax.f32 %v1820, 0.0
        %v1833 = vmax.f32 %v1821, 0.0
        %v1834 = vmax.f32 %v1822, 0.0
        %v1835 = vmax.f32 %v1823, 0.0
        %v1836 = vmax.f32 %v1824, 0.0
        %v1837 = vmax.f32 %v1825, 0.0
        %v1838 = vmax.f32 %v1826, 0.0
        %v1839 = vmax.f32 %v1827, 0.0
        %v1840 = vmax.f32 %v1828, 0.0
        %v1841 = vld [vmem:[%s3] sm:$0xff]
        %v1842 = vld [vmem:[%s3 + $0x8] sm:$0xff]
        %v1843 = vld [vmem:[%s3 + $0x10] sm:$0xff]
        %v1844 = vld [vmem:[%s3 + $0x18] sm:$0xff]
        %v1845 = vld [vmem:[%s3 + $0x20] sm:$0xff]
        %v1846 = vld [vmem:[%s3 + $0x28] sm:$0xff]
        %v1847 = vld [vmem:[%s3 + $0x30] sm:$0xff]
        %v1848 = vld [vmem:[%s3 + $0x38] sm:$0xff]
        %v1849 = vld [vmem:[%s3 + $0x40] sm:$0xff]
        %v1850 = vld [vmem:[%s3 + $0x48] sm:$0xff]
        %v1851 = vld [vmem:[%s3 + $0x50] sm:$0xff]
        %v1852 = vld [vmem:[%s3 + $0x58] sm:$0xff]
        %1854 = vset.pattern.permute.xlu0 0
        %1855 = vperm.xlu0 %1854, %v1841
        %v1856 = vpop.permute.xlu0 %1855
        %1859 = vset.pattern.permute.xlu0 0
        %1860 = vperm.xlu0 %1859, %v1842
        %v1861 = vpop.permute.xlu0 %1860
        %1864 = vset.pattern.permute.xlu0 0
        %1865 = vperm.xlu0 %1864, %v1843
        %v1866 = vpop.permute.xlu0 %1865
        %1869 = vset.pattern.permute.xlu0 0
        %1870 = vperm.xlu0 %1869, %v1844
        %v1871 = vpop.permute.xlu0 %1870
        %1874 = vset.pattern.permute.xlu0 0
        %1875 = vperm.xlu0 %1874, %v1845
        %v1876 = vpop.permute.xlu0 %1875
        %1879 = vset.pattern.permute.xlu0 0
        %1880 = vperm.xlu0 %1879, %v1846
        %v1881 = vpop.permute.xlu0 %1880
        %1884 = vset.pattern.permute.xlu0 0
        %1885 = vperm.xlu0 %1884, %v1847
        %v1886 = vpop.permute.xlu0 %1885
        %1889 = vset.pattern.permute.xlu0 0
        %1890 = vperm.xlu0 %1889, %v1848
        %v1891 = vpop.permute.xlu0 %1890
        %1894 = vset.pattern.permute.xlu0 0
        %1895 = vperm.xlu0 %1894, %v1849
        %v1896 = vpop.permute.xlu0 %1895
        %1899 = vset.pattern.permute.xlu0 0
        %1900 = vperm.xlu0 %1899, %v1850
        %v1901 = vpop.permute.xlu0 %1900
        %1904 = vset.pattern.permute.xlu0 0
        %1905 = vperm.xlu0 %1904, %v1851
        %v1906 = vpop.permute.xlu0 %1905
        %1909 = vset.pattern.permute.xlu0 0
        %1910 = vperm.xlu0 %1909, %v1852
        %v1911 = vpop.permute.xlu0 %1910
        %v1913 = vmul.f32 %v1829, %v1856
        %v1914 = vmul.f32 %v1830, %v1861
        %v1915 = vmul.f32 %v1831, %v1866
        %v1916 = vmul.f32 %v1832, %v1871
        %v1917 = vmul.f32 %v1833, %v1876
        %v1918 = vmul.f32 %v1834, %v1881
        %v1919 = vmul.f32 %v1835, %v1886
        %v1920 = vmul.f32 %v1836, %v1891
        %v1921 = vmul.f32 %v1837, %v1896
        %v1922 = vmul.f32 %v1838, %v1901
        %v1923 = vmul.f32 %v1839, %v1906
        %v1924 = vmul.f32 %v1840, %v1911
        %1925 = vst [vmem:[%s282] sm:$0xf] 0
        %1926 = vst [vmem:[%s282 + $0x4] sm:$0xf] 0
        %1927 = vst [vmem:[%s282 + $0x8] sm:$0xf] 0
        %1928 = vst [vmem:[%s282 + $0xc] sm:$0xf] 0
        %1929 = vst [vmem:[%s282 + $0x10] sm:$0xf] 0
        %1930 = vst [vmem:[%s282 + $0x14] sm:$0xf] 0
        %1931 = vst [vmem:[%s282 + $0x18] sm:$0xf] 0
        %1932 = vst [vmem:[%s282 + $0x1c] sm:$0xf] 0
        %1933 = vst [vmem:[%s282 + $0x20] sm:$0xf] 0
        %1934 = vst [vmem:[%s282 + $0x24] sm:$0xf] 0
        %1935 = vst [vmem:[%s282 + $0x28] sm:$0xf] 0
        %1936 = vst [vmem:[%s282 + $0x2c] sm:$0xf] 0
        %1937 = vst [vmem:[%s282 + $0x30] sm:$0xf] 0
        %1938 = vst [vmem:[%s282 + $0x34] sm:$0xf] 0
        %1939 = vst [vmem:[%s282 + $0x38] sm:$0xf] 0
        %1940 = vst [vmem:[%s282 + $0x3c] sm:$0xf] 0
        %1941 = vst [vmem:[%s282 + $0x40] sm:$0xf] 0
        %1942 = vst [vmem:[%s282 + $0x44] sm:$0xf] 0
        %1943 = vst [vmem:[%s282 + $0x48] sm:$0xf] 0
        %1944 = vst [vmem:[%s282 + $0x4c] sm:$0xf] 0
        %v1945 = vpack.c.bf16 %v1913, %v1913
        %v1946 = vpack.c.bf16 %v1914, %v1914
        %v1947 = vpack.c.bf16 %v1915, %v1915
        %v1948 = vpack.c.bf16 %v1916, %v1916
        %v1949 = vpack.c.bf16 %v1917, %v1917
        %v1950 = vpack.c.bf16 %v1918, %v1918
        %v1951 = vpack.c.bf16 %v1919, %v1919
        %v1952 = vpack.c.bf16 %v1920, %v1920
        %v1953 = vpack.c.bf16 %v1921, %v1921
        %v1954 = vpack.c.bf16 %v1922, %v1922
        %v1955 = vpack.c.bf16 %v1923, %v1923
        %v1956 = vpack.c.bf16 %v1924, %v1924
        %1957 = vst [vmem:[%s282 + $0x10] sm:$0xf] %v1945
        %1958 = vst [vmem:[%s282 + $0x14] sm:$0xf] %v1946
        %1959 = vst [vmem:[%s282 + $0x18] sm:$0xf] %v1947
        %1960 = vst [vmem:[%s282 + $0x1c] sm:$0xf] %v1948
        %1961 = vst [vmem:[%s282 + $0x20] sm:$0xf] %v1949
        %1962 = vst [vmem:[%s282 + $0x24] sm:$0xf] %v1950
        %1963 = vst [vmem:[%s282 + $0x28] sm:$0xf] %v1951
        %1964 = vst [vmem:[%s282 + $0x2c] sm:$0xf] %v1952
        %1965 = vst [vmem:[%s282 + $0x30] sm:$0xf] %v1953
        %1966 = vst [vmem:[%s282 + $0x34] sm:$0xf] %v1954
        %1967 = vst [vmem:[%s282 + $0x38] sm:$0xf] %v1955
        %1968 = vst [vmem:[%s282 + $0x3c] sm:$0xf] %v1956
      $region48: #{upsample_forward.7} parent=35 // pred_fallthru
        _
      %p1969 = scmp.lt.s32.totalorder %s20, 1
      %s1970 = scalar_select %p1969, %s20, 1
      %p1971 = scmp.lt.s32.totalorder %s21, 7
      %s1972 = scalar_select %p1971, %s21, 7
      %s1973 = smul.addr %s1972, 20
      %s1974 = smul.addr %s1970, 160
      %s1975 = sadd.s32 %s1973, %s1974
      %s1976 = smul.addr %s1975, 4
      %s1977 = scalar_lea.vmem %s4, %s1976
      // Predicated region
      $region49: #{upsample_forward.7} parent=35 // pred_check
        %p1978 = pneg %p157
      $region50: #{upsample_forward.7} parent=35 // pred_check_branch
        %1980 = sbr.rel (%p1978) target = $region52
      $region51: #{upsample_forward.7} parent=35 // pred_region
        _
      $region52: #{upsample_forward.7} parent=35 // pred_fallthru
        _
    $region36: #{upsample_forward.7} parent=5 // pred_fallthru
      _
    %p1981 = scmp.le.s32.totalorder 2, %s10
    // Predicated region
    $region53: #{upsample_forward.7} parent=5 // pred_check
      %p1982 = pneg %p1981
    $region54: #{upsample_forward.7} parent=5 // pred_check_branch
      %1984 = sbr.rel (%p1982) target = $region56
    $region55: #{upsample_forward.7} parent=5 // pred_region
      %s1985 = ssub.s32 %s10, 2
      // Predicated region
      $region57: #{upsample_forward.7} parent=55 // pred_check
        %p1986 = pneg %p163
      $region58: #{upsample_forward.7} parent=55 // pred_check_branch
        %1988 = sbr.rel (%p1986) target = $region60
      $region59: #{upsample_forward.7} parent=55 // pred_region
        %p1989 = scmp.lt.s32.totalorder %s23, 1
        %s1990 = scalar_select %p1989, %s23, 1
        %p1991 = scmp.lt.s32.totalorder %s24, 7
        %s1992 = scalar_select %p1991, %s24, 7
        %s1993 = smul.addr %s1992, 20
        %s1994 = smul.addr %s1990, 160
        %s1995 = sadd.s32 %s1993, %s1994
        %s1996 = smul.addr %s1995, 4
        %s1997 = scalar_lea.vmem %s4, %s1996
      $region60: #{upsample_forward.7} parent=55 // pred_fallthru
        _
    $region56: #{upsample_forward.7} parent=5 // pred_fallthru
      _
  $region6: #{upsample_forward.7} parent=0 // loop_footer
    %s14 = sadd.s32 1, %s10
  $region7: #{upsample_forward.7} parent=0 // loop_footer_branch
    %9 = sbr.rel target = $region3
  $region8: #{upsample_forward.7} parent=0 // loop_exit
    _

</llo_original>
